<compile_context>
chip_gen: v5e
topology: v5e:2x2
jax: 0.10.0
libtpu: 0.0.40
codegen_flags: <defaults>
</compile_context>

<pallas_src>
import jax
import jax.numpy as jnp
from jax.experimental import pallas as pl
from jax.experimental.pallas import tpu as pltpu

_EPS = 1e-5  # nn.InstanceNorm2d default eps (affine=False, biased variance)


def _reflect_pad1(z):
    """(H, W, C) -> (H+2, W+2, C), reflection pad of 1 (requires H, W >= 3)."""
    H, W = z.shape[0], z.shape[1]
    z = jnp.concatenate([z[1:2, :, :], z, z[H - 2:H - 1, :, :]], axis=0)
    z = jnp.concatenate([z[:, 1:2, :], z, z[:, W - 2:W - 1, :]], axis=1)
    return z


def _conv3x3_im2col(pad_ref, w_flat, b, H, W):
    """3x3 VALID conv as a single MXU matmul.

    pad_ref: (H+2, W+2, C) bf16 VMEM scratch holding the padded input.
    w_flat:  (9*C, Cout) bf16, rows ordered (kh, kw, cin).
    b:       (1, Cout) f32.
    returns: (H*W, Cout) f32.
    """
    taps = [pad_ref[pl.ds(kh, H), pl.ds(kw, W), :]            # static-offset loads
            for kh in range(3) for kw in range(3)]            # 9 x (H, W, C) bf16
    patches = jnp.concatenate(taps, axis=-1)                  # (H, W, 9*C)
    patches = patches.reshape(H * W, patches.shape[-1])       # (H*W, 9*C)
    acc = jnp.dot(patches, w_flat, preferred_element_type=jnp.float32)
    return acc + b                                            # bias fused, no zero init


def _instance_norm(y):
    """InstanceNorm2d (affine=False) over flattened spatial axis, single pass.

    y: (H*W, C) f32.  var = E[x^2] - E[x]^2 (f32 accumulation), rsqrt on EUP.
    """
    inv_n = 1.0 / y.shape[0]
    mean = jnp.sum(y, axis=0, keepdims=True) * inv_n
    ex2 = jnp.sum(y * y, axis=0, keepdims=True) * inv_n
    var = ex2 - mean * mean
    return (y - mean) * jax.lax.rsqrt(var + _EPS)


def _resnet_block_kernel(x_ref, w1_ref, b1_ref, w2_ref, b2_ref, o_ref, pad_ref):
    H, W, C = o_ref.shape[1], o_ref.shape[2], o_ref.shape[3]

    x = x_ref[0]                                              # (H, W, C) f32 residual

    # --- reflection pad -> conv1 -> instance norm -> relu ---
    pad_ref[...] = _reflect_pad1(x.astype(jnp.bfloat16))      # one full-tile store
    y = _conv3x3_im2col(pad_ref, w1_ref[...], b1_ref[...], H, W)
    y = _instance_norm(y)
    y = jnp.maximum(y, 0.0)

    # --- reflection pad -> conv2 -> instance norm ---
    pad_ref[...] = _reflect_pad1(y.reshape(H, W, C).astype(jnp.bfloat16))
    y2 = _conv3x3_im2col(pad_ref, w2_ref[...], b2_ref[...], H, W)
    y2 = _instance_norm(y2)

    # --- residual add (f32) ---
    o_ref[0] = (x + y2.reshape(H, W, C)).astype(o_ref.dtype)


def fold_resnet_block_params(w1_oihw, b1, w2_oihw, b2):
    """One-time parameter fold (do this at load time, not per call):
    OIHW conv weights -> (9*Cin, Cout) bf16 im2col matrices (row order kh,kw,cin),
    biases -> (1, Cout) f32."""
    def fold(w_oihw, b):
        c_out, c_in, kh, kw = w_oihw.shape
        w_flat = jnp.transpose(w_oihw, (2, 3, 1, 0)).reshape(kh * kw * c_in, c_out)
        return w_flat.astype(jnp.bfloat16), b.reshape(1, c_out).astype(jnp.float32)
    w1f, b1f = fold(w1_oihw, b1)
    w2f, b2f = fold(w2_oihw, b2)
    return w1f, b1f, w2f, b2f


@jax.jit
def resnet_block_nhwc(x_nhwc, w1_flat, b1, w2_flat, b2):
    """x_nhwc: (N, H, W, C) float32; weights pre-folded by fold_resnet_block_params."""
    N, H, W, C = x_nhwc.shape
    assert H >= 3 and W >= 3, "reflection pad of 1 requires H, W >= 3"

    # Scheduler hint: 2 convs of 2*H*W*(9C)*C flops per sample, tiny transcendentals.
    cost = pl.CostEstimate(
        flops=2 * 2 * N * H * W * 9 * C * C,
        transcendentals=2 * N * C,
        bytes_accessed=(2 * N * H * W * C * 4          # x in + out (f32)
                        + 2 * 9 * C * C * 2            # folded weights (bf16)
                        + 2 * C * 4),                  # biases
    )

    return pl.pallas_call(
        _resnet_block_kernel,
        out_shape=jax.ShapeDtypeStruct((N, H, W, C), x_nhwc.dtype),
        grid_spec=pltpu.PrefetchScalarGridSpec(
            num_scalar_prefetch=0,
            grid=(N,),
            in_specs=[
                pl.BlockSpec((1, H, W, C), lambda n: (n, 0, 0, 0)),   # x (unpadded)
                pl.BlockSpec((9 * C, C), lambda n: (0, 0)),           # w1 im2col, bf16
                pl.BlockSpec((1, C), lambda n: (0, 0)),               # b1
                pl.BlockSpec((9 * C, C), lambda n: (0, 0)),           # w2 im2col, bf16
                pl.BlockSpec((1, C), lambda n: (0, 0)),               # b2
            ],
            out_specs=pl.BlockSpec((1, H, W, C), lambda n: (n, 0, 0, 0)),
            scratch_shapes=[pltpu.VMEM((H + 2, W + 2, C), jnp.bfloat16)],
        ),
        compiler_params=pltpu.CompilerParams(
            dimension_semantics=("parallel",),
            vmem_limit_bytes=32 * 1024 * 1024,
        ),
        cost_estimate=cost,
    )(x_nhwc, w1_flat, b1, w2_flat, b2)


def reference_nchw(x, w1, b1, w2, b2):
    """Pure-JAX (XLA) reference matching the PyTorch module, NCHW."""
    def refl_pad(z):
        return jnp.pad(z, ((0, 0), (0, 0), (1, 1), (1, 1)), mode="reflect")

    def conv(z, w, b):
        out = jax.lax.conv_general_dilated(
            z, w, (1, 1), "VALID",
            dimension_numbers=("NCHW", "OIHW", "NCHW"),
            precision=jax.lax.Precision.HIGHEST)
        return out + b[None, :, None, None]

    def inorm(z):
        m = jnp.mean(z, axis=(2, 3), keepdims=True)
        v = jnp.mean((z - m) ** 2, axis=(2, 3), keepdims=True)
        return (z - m) / jnp.sqrt(v + _EPS)

    y = conv(refl_pad(x), w1, b1)
    y = inorm(y)
    y = jnp.maximum(y, 0.0)
    y = conv(refl_pad(y), w2, b2)
    y = inorm(y)
    return x + y


if __name__ == "__main__":
    N, C, H, W = 2, 4, 16, 16
    key = jax.random.PRNGKey(0)
    k1, k2, k3, k4, k5 = jax.random.split(key, 5)
    x_nchw = jax.random.normal(k1, (N, C, H, W), jnp.float32)
    w1 = 0.1 * jax.random.normal(k2, (C, C, 3, 3), jnp.float32)   # Conv2d(dim, dim, 3)
    b1 = 0.1 * jax.random.normal(k3, (C,), jnp.float32)
    w2 = 0.1 * jax.random.normal(k4, (C, C, 3, 3), jnp.float32)
    b2 = 0.1 * jax.random.normal(k5, (C,), jnp.float32)

    # One-time layout work (keep activations NHWC across the model and fold
    # weights at parameter-load time, not per call).
    x_nhwc = jnp.transpose(x_nchw, (0, 2, 3, 1))
    w1f, b1f, w2f, b2f = fold_resnet_block_params(w1, b1, w2, b2)

    out_nhwc = resnet_block_nhwc(x_nhwc, w1f, b1f, w2f, b2f)
    out_nhwc = jax.block_until_ready(out_nhwc)

    ref = reference_nchw(x_nchw, w1, b1, w2, b2)
    out_nchw = jnp.transpose(out_nhwc, (0, 3, 1, 2))
    err = float(jnp.max(jnp.abs(out_nchw - ref)))
    # Tolerance derived for bf16 MXU inputs: inputs/weights are bf16-rounded
    # (~2^-9 relative) and InstanceNorm renormalizes after each conv, giving
    # ~1e-2-scale worst-case deviation vs the HIGHEST-precision reference.
    if err > 7.5e-2:
        raise AssertionError(f"Pallas kernel mismatch vs reference: max abs err = {err}")
    print("KERNEL_OK")
</pallas_src>

<mosaic_0001>
module attributes {stable_mosaic.version = 11 : i64} {
  func.func @_resnet_block_kernel(%arg0: i32, %arg1: memref<1x16x16x4xf32, #tpu.memory_space<vmem>>, %arg2: memref<36x4xbf16, #tpu.memory_space<vmem>>, %arg3: memref<1x4xf32, #tpu.memory_space<vmem>>, %arg4: memref<36x4xbf16, #tpu.memory_space<vmem>>, %arg5: memref<1x4xf32, #tpu.memory_space<vmem>>, %arg6: memref<1x16x16x4xf32, #tpu.memory_space<vmem>>, %arg7: memref<18x18x4xbf16, #tpu.memory_space<vmem>>) attributes {dimension_semantics = [#tpu.dimension_semantics<parallel>], iteration_bounds = array<i64: 2>, scalar_prefetch = 0 : i64, scratch_operands = 1 : i64, tpu.core_type = #tpu.core_type<tc>, window_params = [{transform_indices = @transform_0, window_bounds = array<i64: 1, 16, 16, 4>}, {pipeline_mode = #tpu.pipeline_mode<synchronous>, transform_indices = @transform_1, window_bounds = array<i64: 36, 4>}, {pipeline_mode = #tpu.pipeline_mode<synchronous>, transform_indices = @transform_2, window_bounds = array<i64: 1, 4>}, {pipeline_mode = #tpu.pipeline_mode<synchronous>, transform_indices = @transform_3, window_bounds = array<i64: 36, 4>}, {pipeline_mode = #tpu.pipeline_mode<synchronous>, transform_indices = @transform_4, window_bounds = array<i64: 1, 4>}, {transform_indices = @transform_5, window_bounds = array<i64: 1, 16, 16, 4>}]} {
    %c0 = arith.constant 0 : index
    %c0_0 = arith.constant 0 : index
    %c0_1 = arith.constant 0 : index
    %c0_2 = arith.constant 0 : index
    %0 = vector.load %arg1[%c0, %c0_0, %c0_1, %c0_2] : memref<1x16x16x4xf32, #tpu.memory_space<vmem>>, vector<1x16x16x4xf32>
    %1 = vector.shape_cast %0 : vector<1x16x16x4xf32> to vector<16x16x4xf32>
    %2 = arith.truncf %1 : vector<16x16x4xf32> to vector<16x16x4xbf16>
    %3 = vector.extract_strided_slice %2 {offsets = [1, 0, 0], sizes = [1, 16, 4], strides = [1, 1, 1]} : vector<16x16x4xbf16> to vector<1x16x4xbf16>
    %4 = vector.extract_strided_slice %2 {offsets = [14, 0, 0], sizes = [1, 16, 4], strides = [1, 1, 1]} : vector<16x16x4xbf16> to vector<1x16x4xbf16>
    %5 = tpu.concatenate %3, %2, %4 in 0 : vector<1x16x4xbf16>, vector<16x16x4xbf16>, vector<1x16x4xbf16> -> vector<18x16x4xbf16>
    %6 = vector.extract_strided_slice %5 {offsets = [0, 1, 0], sizes = [18, 1, 4], strides = [1, 1, 1]} : vector<18x16x4xbf16> to vector<18x1x4xbf16>
    %7 = vector.extract_strided_slice %5 {offsets = [0, 14, 0], sizes = [18, 1, 4], strides = [1, 1, 1]} : vector<18x16x4xbf16> to vector<18x1x4xbf16>
    %8 = tpu.concatenate %6, %5, %7 in 1 : vector<18x1x4xbf16>, vector<18x16x4xbf16>, vector<18x1x4xbf16> -> vector<18x18x4xbf16>
    %c0_3 = arith.constant 0 : index
    %c0_4 = arith.constant 0 : index
    %c0_5 = arith.constant 0 : index
    %9 = vector.load %arg7[%c0_3, %c0_4, %c0_5] : memref<18x18x4xbf16, #tpu.memory_space<vmem>>, vector<18x18x4xbf16>
    tpu.vector_store %arg7[%c0_3, %c0_4, %c0_5], %8 {strides = array<i32>} : memref<18x18x4xbf16, #tpu.memory_space<vmem>>, vector<18x18x4xbf16>,
    %c0_6 = arith.constant 0 : index
    %c0_7 = arith.constant 0 : index
    %10 = vector.load %arg2[%c0_6, %c0_7] : memref<36x4xbf16, #tpu.memory_space<vmem>>, vector<36x4xbf16>
    %c0_8 = arith.constant 0 : index
    %c0_9 = arith.constant 0 : index
    %11 = vector.load %arg3[%c0_8, %c0_9] : memref<1x4xf32, #tpu.memory_space<vmem>>, vector<1x4xf32>
    %c0_10 = arith.constant 0 : index
    %c0_11 = arith.constant 0 : index
    %c0_12 = arith.constant 0 : index
    %12 = vector.load %arg7[%c0_10, %c0_11, %c0_12] : memref<18x18x4xbf16, #tpu.memory_space<vmem>>, vector<16x16x4xbf16>
    %c0_13 = arith.constant 0 : index
    %c1 = arith.constant 1 : index
    %c0_14 = arith.constant 0 : index
    %13 = vector.load %arg7[%c0_13, %c1, %c0_14] : memref<18x18x4xbf16, #tpu.memory_space<vmem>>, vector<16x16x4xbf16>
    %c0_15 = arith.constant 0 : index
    %c2 = arith.constant 2 : index
    %c0_16 = arith.constant 0 : index
    %14 = vector.load %arg7[%c0_15, %c2, %c0_16] : memref<18x18x4xbf16, #tpu.memory_space<vmem>>, vector<16x16x4xbf16>
    %c1_17 = arith.constant 1 : index
    %c0_18 = arith.constant 0 : index
    %c0_19 = arith.constant 0 : index
    %15 = vector.load %arg7[%c1_17, %c0_18, %c0_19] : memref<18x18x4xbf16, #tpu.memory_space<vmem>>, vector<16x16x4xbf16>
    %c1_20 = arith.constant 1 : index
    %c1_21 = arith.constant 1 : index
    %c0_22 = arith.constant 0 : index
    %16 = vector.load %arg7[%c1_20, %c1_21, %c0_22] : memref<18x18x4xbf16, #tpu.memory_space<vmem>>, vector<16x16x4xbf16>
    %c1_23 = arith.constant 1 : index
    %c2_24 = arith.constant 2 : index
    %c0_25 = arith.constant 0 : index
    %17 = vector.load %arg7[%c1_23, %c2_24, %c0_25] : memref<18x18x4xbf16, #tpu.memory_space<vmem>>, vector<16x16x4xbf16>
    %c2_26 = arith.constant 2 : index
    %c0_27 = arith.constant 0 : index
    %c0_28 = arith.constant 0 : index
    %18 = vector.load %arg7[%c2_26, %c0_27, %c0_28] : memref<18x18x4xbf16, #tpu.memory_space<vmem>>, vector<16x16x4xbf16>
    %c2_29 = arith.constant 2 : index
    %c1_30 = arith.constant 1 : index
    %c0_31 = arith.constant 0 : index
    %19 = vector.load %arg7[%c2_29, %c1_30, %c0_31] : memref<18x18x4xbf16, #tpu.memory_space<vmem>>, vector<16x16x4xbf16>
    %c2_32 = arith.constant 2 : index
    %c2_33 = arith.constant 2 : index
    %c0_34 = arith.constant 0 : index
    %20 = vector.load %arg7[%c2_32, %c2_33, %c0_34] : memref<18x18x4xbf16, #tpu.memory_space<vmem>>, vector<16x16x4xbf16>
    %21 = tpu.concatenate %12, %13, %14, %15, %16, %17, %18, %19, %20 in 2 : vector<16x16x4xbf16>, vector<16x16x4xbf16>, vector<16x16x4xbf16>, vector<16x16x4xbf16>, vector<16x16x4xbf16>, vector<16x16x4xbf16>, vector<16x16x4xbf16>, vector<16x16x4xbf16>, vector<16x16x4xbf16> -> vector<16x16x36xbf16>
    %22 = vector.shape_cast %21 : vector<16x16x36xbf16> to vector<256x36xbf16>
    %cst = arith.constant dense<0.000000e+00> : vector<256x4xf32>
    %23 = tpu.matmul %22, %10, %cst {dimension_numbers = #tpu.dot_dimension_numbers<[1], [0], [0], [1], [0, 0, 1, 1], [], []>} : vector<256x36xbf16>, vector<36x4xbf16>, vector<256x4xf32> -> vector<256x4xf32>
    %24 = vector.broadcast %11 : vector<1x4xf32> to vector<256x4xf32>
    %25 = arith.addf %23, %24 : vector<256x4xf32>
    %cst_35 = arith.constant dense<0.000000e+00> : vector<4xf32>
    %26 = vector.multi_reduction <add>, %25, %cst_35 [0] : vector<256x4xf32> to vector<4xf32>
    %27 = vector.shape_cast %26 : vector<4xf32> to vector<1x4xf32>
    %cst_36 = arith.constant 3.906250e-03 : f32
    %28 = vector.broadcast %cst_36 : f32 to vector<1x4xf32>
    %29 = arith.mulf %27, %28 : vector<1x4xf32>
    %30 = arith.mulf %25, %25 : vector<256x4xf32>
    %cst_37 = arith.constant dense<0.000000e+00> : vector<4xf32>
    %31 = vector.multi_reduction <add>, %30, %cst_37 [0] : vector<256x4xf32> to vector<4xf32>
    %32 = vector.shape_cast %31 : vector<4xf32> to vector<1x4xf32>
    %cst_38 = arith.constant 3.906250e-03 : f32
    %33 = vector.broadcast %cst_38 : f32 to vector<1x4xf32>
    %34 = arith.mulf %32, %33 : vector<1x4xf32>
    %35 = arith.mulf %29, %29 : vector<1x4xf32>
    %36 = arith.subf %34, %35 : vector<1x4xf32>
    %37 = vector.broadcast %29 : vector<1x4xf32> to vector<256x4xf32>
    %38 = arith.subf %25, %37 : vector<256x4xf32>
    %cst_39 = arith.constant 9.99999974E-6 : f32
    %39 = vector.broadcast %cst_39 : f32 to vector<1x4xf32>
    %40 = arith.addf %36, %39 : vector<1x4xf32>
    %41 = math.rsqrt %40 : vector<1x4xf32>
    %42 = vector.broadcast %41 : vector<1x4xf32> to vector<256x4xf32>
    %43 = arith.mulf %38, %42 : vector<256x4xf32>
    %cst_40 = arith.constant 0.000000e+00 : f32
    %44 = vector.broadcast %cst_40 : f32 to vector<256x4xf32>
    %45 = arith.maximumf %43, %44 : vector<256x4xf32>
    %46 = vector.shape_cast %45 : vector<256x4xf32> to vector<16x16x4xf32>
    %47 = arith.truncf %46 : vector<16x16x4xf32> to vector<16x16x4xbf16>
    %48 = vector.extract_strided_slice %47 {offsets = [1, 0, 0], sizes = [1, 16, 4], strides = [1, 1, 1]} : vector<16x16x4xbf16> to vector<1x16x4xbf16>
    %49 = vector.extract_strided_slice %47 {offsets = [14, 0, 0], sizes = [1, 16, 4], strides = [1, 1, 1]} : vector<16x16x4xbf16> to vector<1x16x4xbf16>
    %50 = tpu.concatenate %48, %47, %49 in 0 : vector<1x16x4xbf16>, vector<16x16x4xbf16>, vector<1x16x4xbf16> -> vector<18x16x4xbf16>
    %51 = vector.extract_strided_slice %50 {offsets = [0, 1, 0], sizes = [18, 1, 4], strides = [1, 1, 1]} : vector<18x16x4xbf16> to vector<18x1x4xbf16>
    %52 = vector.extract_strided_slice %50 {offsets = [0, 14, 0], sizes = [18, 1, 4], strides = [1, 1, 1]} : vector<18x16x4xbf16> to vector<18x1x4xbf16>
    %53 = tpu.concatenate %51, %50, %52 in 1 : vector<18x1x4xbf16>, vector<18x16x4xbf16>, vector<18x1x4xbf16> -> vector<18x18x4xbf16>
    %c0_41 = arith.constant 0 : index
    %c0_42 = arith.constant 0 : index
    %c0_43 = arith.constant 0 : index
    %54 = vector.load %arg7[%c0_41, %c0_42, %c0_43] : memref<18x18x4xbf16, #tpu.memory_space<vmem>>, vector<18x18x4xbf16>
    tpu.vector_store %arg7[%c0_41, %c0_42, %c0_43], %53 {strides = array<i32>} : memref<18x18x4xbf16, #tpu.memory_space<vmem>>, vector<18x18x4xbf16>,
    %c0_44 = arith.constant 0 : index
    %c0_45 = arith.constant 0 : index
    %55 = vector.load %arg4[%c0_44, %c0_45] : memref<36x4xbf16, #tpu.memory_space<vmem>>, vector<36x4xbf16>
    %c0_46 = arith.constant 0 : index
    %c0_47 = arith.constant 0 : index
    %56 = vector.load %arg5[%c0_46, %c0_47] : memref<1x4xf32, #tpu.memory_space<vmem>>, vector<1x4xf32>
    %c0_48 = arith.constant 0 : index
    %c0_49 = arith.constant 0 : index
    %c0_50 = arith.constant 0 : index
    %57 = vector.load %arg7[%c0_48, %c0_49, %c0_50] : memref<18x18x4xbf16, #tpu.memory_space<vmem>>, vector<16x16x4xbf16>
    %c0_51 = arith.constant 0 : index
    %c1_52 = arith.constant 1 : index
    %c0_53 = arith.constant 0 : index
    %58 = vector.load %arg7[%c0_51, %c1_52, %c0_53] : memref<18x18x4xbf16, #tpu.memory_space<vmem>>, vector<16x16x4xbf16>
    %c0_54 = arith.constant 0 : index
    %c2_55 = arith.constant 2 : index
    %c0_56 = arith.constant 0 : index
    %59 = vector.load %arg7[%c0_54, %c2_55, %c0_56] : memref<18x18x4xbf16, #tpu.memory_space<vmem>>, vector<16x16x4xbf16>
    %c1_57 = arith.constant 1 : index
    %c0_58 = arith.constant 0 : index
    %c0_59 = arith.constant 0 : index
    %60 = vector.load %arg7[%c1_57, %c0_58, %c0_59] : memref<18x18x4xbf16, #tpu.memory_space<vmem>>, vector<16x16x4xbf16>
    %c1_60 = arith.constant 1 : index
    %c1_61 = arith.constant 1 : index
    %c0_62 = arith.constant 0 : index
    %61 = vector.load %arg7[%c1_60, %c1_61, %c0_62] : memref<18x18x4xbf16, #tpu.memory_space<vmem>>, vector<16x16x4xbf16>
    %c1_63 = arith.constant 1 : index
    %c2_64 = arith.constant 2 : index
    %c0_65 = arith.constant 0 : index
    %62 = vector.load %arg7[%c1_63, %c2_64, %c0_65] : memref<18x18x4xbf16, #tpu.memory_space<vmem>>, vector<16x16x4xbf16>
    %c2_66 = arith.constant 2 : index
    %c0_67 = arith.constant 0 : index
    %c0_68 = arith.constant 0 : index
    %63 = vector.load %arg7[%c2_66, %c0_67, %c0_68] : memref<18x18x4xbf16, #tpu.memory_space<vmem>>, vector<16x16x4xbf16>
    %c2_69 = arith.constant 2 : index
    %c1_70 = arith.constant 1 : index
    %c0_71 = arith.constant 0 : index
    %64 = vector.load %arg7[%c2_69, %c1_70, %c0_71] : memref<18x18x4xbf16, #tpu.memory_space<vmem>>, vector<16x16x4xbf16>
    %c2_72 = arith.constant 2 : index
    %c2_73 = arith.constant 2 : index
    %c0_74 = arith.constant 0 : index
    %65 = vector.load %arg7[%c2_72, %c2_73, %c0_74] : memref<18x18x4xbf16, #tpu.memory_space<vmem>>, vector<16x16x4xbf16>
    %66 = tpu.concatenate %57, %58, %59, %60, %61, %62, %63, %64, %65 in 2 : vector<16x16x4xbf16>, vector<16x16x4xbf16>, vector<16x16x4xbf16>, vector<16x16x4xbf16>, vector<16x16x4xbf16>, vector<16x16x4xbf16>, vector<16x16x4xbf16>, vector<16x16x4xbf16>, vector<16x16x4xbf16> -> vector<16x16x36xbf16>
    %67 = vector.shape_cast %66 : vector<16x16x36xbf16> to vector<256x36xbf16>
    %cst_75 = arith.constant dense<0.000000e+00> : vector<256x4xf32>
    %68 = tpu.matmul %67, %55, %cst_75 {dimension_numbers = #tpu.dot_dimension_numbers<[1], [0], [0], [1], [0, 0, 1, 1], [], []>} : vector<256x36xbf16>, vector<36x4xbf16>, vector<256x4xf32> -> vector<256x4xf32>
    %69 = vector.broadcast %56 : vector<1x4xf32> to vector<256x4xf32>
    %70 = arith.addf %68, %69 : vector<256x4xf32>
    %cst_76 = arith.constant dense<0.000000e+00> : vector<4xf32>
    %71 = vector.multi_reduction <add>, %70, %cst_76 [0] : vector<256x4xf32> to vector<4xf32>
    %72 = vector.shape_cast %71 : vector<4xf32> to vector<1x4xf32>
    %cst_77 = arith.constant 3.906250e-03 : f32
    %73 = vector.broadcast %cst_77 : f32 to vector<1x4xf32>
    %74 = arith.mulf %72, %73 : vector<1x4xf32>
    %75 = arith.mulf %70, %70 : vector<256x4xf32>
    %cst_78 = arith.constant dense<0.000000e+00> : vector<4xf32>
    %76 = vector.multi_reduction <add>, %75, %cst_78 [0] : vector<256x4xf32> to vector<4xf32>
    %77 = vector.shape_cast %76 : vector<4xf32> to vector<1x4xf32>
    %cst_79 = arith.constant 3.906250e-03 : f32
    %78 = vector.broadcast %cst_79 : f32 to vector<1x4xf32>
    %79 = arith.mulf %77, %78 : vector<1x4xf32>
    %80 = arith.mulf %74, %74 : vector<1x4xf32>
    %81 = arith.subf %79, %80 : vector<1x4xf32>
    %82 = vector.broadcast %74 : vector<1x4xf32> to vector<256x4xf32>
    %83 = arith.subf %70, %82 : vector<256x4xf32>
    %cst_80 = arith.constant 9.99999974E-6 : f32
    %84 = vector.broadcast %cst_80 : f32 to vector<1x4xf32>
    %85 = arith.addf %81, %84 : vector<1x4xf32>
    %86 = math.rsqrt %85 : vector<1x4xf32>
    %87 = vector.broadcast %86 : vector<1x4xf32> to vector<256x4xf32>
    %88 = arith.mulf %83, %87 : vector<256x4xf32>
    %89 = vector.shape_cast %88 : vector<256x4xf32> to vector<16x16x4xf32>
    %90 = arith.addf %1, %89 : vector<16x16x4xf32>
    %c0_81 = arith.constant 0 : index
    %c0_82 = arith.constant 0 : index
    %c0_83 = arith.constant 0 : index
    %c0_84 = arith.constant 0 : index
    %91 = vector.load %arg6[%c0_81, %c0_82, %c0_83, %c0_84] : memref<1x16x16x4xf32, #tpu.memory_space<vmem>>, vector<1x16x16x4xf32>
    %92 = vector.shape_cast %91 : vector<1x16x16x4xf32> to vector<16x16x4xf32>
    %93 = vector.shape_cast %90 : vector<16x16x4xf32> to vector<1x16x16x4xf32>
    tpu.vector_store %arg6[%c0_81, %c0_82, %c0_83, %c0_84], %93 {strides = array<i32>} : memref<1x16x16x4xf32, #tpu.memory_space<vmem>>, vector<1x16x16x4xf32>,
    return
  }
  func.func @transform_0(%arg0: i32) -> (i32, i32, i32, i32) {
    %c0_i32 = arith.constant 0 : i32
    %c0_i32_0 = arith.constant 0 : i32
    %c0_i32_1 = arith.constant 0 : i32
    %c0_i32_2 = arith.constant 0 : i32
    return %arg0, %c0_i32, %c0_i32_0, %c0_i32_1 : i32, i32, i32, i32
  }
  func.func @transform_1(%arg0: i32) -> (i32, i32) {
    %c0_i32 = arith.constant 0 : i32
    %c0_i32_0 = arith.constant 0 : i32
    %c0_i32_1 = arith.constant 0 : i32
    return %c0_i32, %c0_i32_0 : i32, i32
  }
  func.func @transform_2(%arg0: i32) -> (i32, i32) {
    %c0_i32 = arith.constant 0 : i32
    %c0_i32_0 = arith.constant 0 : i32
    %c0_i32_1 = arith.constant 0 : i32
    return %c0_i32, %c0_i32_0 : i32, i32
  }
  func.func @transform_3(%arg0: i32) -> (i32, i32) {
    %c0_i32 = arith.constant 0 : i32
    %c0_i32_0 = arith.constant 0 : i32
    %c0_i32_1 = arith.constant 0 : i32
    return %c0_i32, %c0_i32_0 : i32, i32
  }
  func.func @transform_4(%arg0: i32) -> (i32, i32) {
    %c0_i32 = arith.constant 0 : i32
    %c0_i32_0 = arith.constant 0 : i32
    %c0_i32_1 = arith.constant 0 : i32
    return %c0_i32, %c0_i32_0 : i32, i32
  }
  func.func @transform_5(%arg0: i32) -> (i32, i32, i32, i32) {
    %c0_i32 = arith.constant 0 : i32
    %c0_i32_0 = arith.constant 0 : i32
    %c0_i32_1 = arith.constant 0 : i32
    %c0_i32_2 = arith.constant 0 : i32
    return %arg0, %c0_i32, %c0_i32_0, %c0_i32_1 : i32, i32, i32, i32
  }
}

</mosaic_0001>

<llo_original>
// kernel: resnet_block_nhwc.1
$region0: #{resnet_block_nhwc.1}
  #allocation0 [shape = 'u32[]', space=smem, size = 0x4, offset = 0x4, fixed_abs, tag = 'smem constant byte address 0x4 - core index']
  #allocation1 [shape = 'u32[72,128]{1,0:T(1,128)}', space=vmem, size = 0x9000, scoped, tag = 'internal scratch']
  #allocation2 [shape = 'bf16[18,18,4]{2,1,0:T(8,128)(2,1)}', space=vmem, size = 0x1b000, scoped, tag = 'scratch operand']
  %s0 = inlined_call_operand.vmem [shape: f32[2,16,16,4], index: 0, kind: input, shape index: {}]
  %s1 = inlined_call_operand.vmem [shape: bf16[36,4], index: 1, kind: input, shape index: {}]
  %s2 = inlined_call_operand.vmem [shape: f32[1,4], index: 2, kind: input, shape index: {}]
  %s3 = inlined_call_operand.vmem [shape: bf16[36,4], index: 3, kind: input, shape index: {}]
  %s4 = inlined_call_operand.vmem [shape: f32[1,4], index: 4, kind: input, shape index: {}]
  %s5 = inlined_call_operand.vmem [shape: f32[2,16,16,4], index: 5, kind: output, shape index: {}]
  %s6 = sld [smem:[#allocation0]]
  $region53: #{resnet_block_nhwc.1} parent=0
    _
  %s8 = ssub.s32 1, %s6
  %s9 = scalar_select 0, %s8, %s6
  loop: start=0, step=1, limit=4
  $region2: #{resnet_block_nhwc.1} parent=0 // loop_pre_header
    _
  $region3: #{resnet_block_nhwc.1} parent=0 // loop_header
    %s11 = sphi 0, %s15
    %p12 = scmp.ge.s32.totalorder %s11, 4
    %s21 = sphi 0, %s23
    %s24 = sphi 0, %s21
    %s25 = sphi 0, %s24
    %s41 = sphi 0, %s25
    %s45 = sphi 0, %s45
    %s47 = sphi 0, %s45
    %s48 = sphi 0, %s47
    %s62 = sphi 0, %s48
    %s66 = sphi 0, %s66
    %s68 = sphi 0, %s66
    %s69 = sphi 0, %s68
    %s83 = sphi 0, %s69
    %s87 = sphi 0, %s87
    %s89 = sphi 0, %s87
    %s90 = sphi 0, %s89
    %s104 = sphi 0, %s90
    %s108 = sphi 0, %s108
    %s110 = sphi 0, %s108
    %s111 = sphi 0, %s110
    %s125 = sphi 0, %s111
    %s131 = sphi 0, %s133
    %s134 = sphi 0, %s131
    %s135 = sphi 0, %s134
    %s151 = sphi 0, %s135
  $region4: #{resnet_block_nhwc.1} parent=0 // loop_header_branch
    %14 = sbr.rel (%p12) target = $region8
  $region5: #{resnet_block_nhwc.1} parent=0 // loop_body
    %s16 = ssub.s32 %s11, 1
    %s17 = ssub.s32 %s11, 2
    %s18 = sadd.s32 %s11, 1
    %s19 = ssub.s32 %s11, %s18
    %p20 = scmp.eq.s32.totalorder %s19, 0
    %s22 = sadd.s32 %s21, 1
    %s23 = scalar_select %p20, %s21, %s22
    %p26 = pneg %p20
    %p27 = scmp.eq.s32.totalorder %s11, 1
    %p28 = por %p26, %p27
    %p29 = scmp.ne.s32.totalorder %s21, %s24
    %p30 = scmp.eq.s32.totalorder %s11, 0
    %p31 = por %p29, %p30
    %p32 = scmp.ne.s32.totalorder %s21, %s24
    %p33 = scmp.eq.s32.totalorder %s16, 1
    %p34 = por %p32, %p33
    %p35 = scmp.ne.s32.totalorder %s24, %s25
    %p36 = scmp.eq.s32.totalorder %s16, 0
    %p37 = por %p35, %p36
    %p38 = scmp.ne.s32.totalorder %s24, %s25
    %p39 = scmp.eq.s32.totalorder %s17, 1
    %p40 = por %p38, %p39
    %p42 = scmp.ne.s32.totalorder %s25, %s41
    %p43 = scmp.eq.s32.totalorder %s17, 0
    %p44 = por %p42, %p43
    %s46 = sadd.s32 %s45, 1
    %p49 = scmp.eq.s32.totalorder %s11, 1
    %p50 = scmp.ne.s32.totalorder %s45, %s47
    %p51 = scmp.eq.s32.totalorder %s11, 0
    %p52 = por %p50, %p51
    %p53 = scmp.ne.s32.totalorder %s45, %s47
    %p54 = scmp.eq.s32.totalorder %s16, 1
    %p55 = por %p53, %p54
    %p56 = scmp.ne.s32.totalorder %s47, %s48
    %p57 = scmp.eq.s32.totalorder %s16, 0
    %p58 = por %p56, %p57
    %p59 = scmp.ne.s32.totalorder %s47, %s48
    %p60 = scmp.eq.s32.totalorder %s17, 1
    %p61 = por %p59, %p60
    %p63 = scmp.ne.s32.totalorder %s48, %s62
    %p64 = scmp.eq.s32.totalorder %s17, 0
    %p65 = por %p63, %p64
    %s67 = sadd.s32 %s66, 1
    %p70 = scmp.eq.s32.totalorder %s11, 1
    %p71 = scmp.ne.s32.totalorder %s66, %s68
    %p72 = scmp.eq.s32.totalorder %s11, 0
    %p73 = por %p71, %p72
    %p74 = scmp.ne.s32.totalorder %s66, %s68
    %p75 = scmp.eq.s32.totalorder %s16, 1
    %p76 = por %p74, %p75
    %p77 = scmp.ne.s32.totalorder %s68, %s69
    %p78 = scmp.eq.s32.totalorder %s16, 0
    %p79 = por %p77, %p78
    %p80 = scmp.ne.s32.totalorder %s68, %s69
    %p81 = scmp.eq.s32.totalorder %s17, 1
    %p82 = por %p80, %p81
    %p84 = scmp.ne.s32.totalorder %s69, %s83
    %p85 = scmp.eq.s32.totalorder %s17, 0
    %p86 = por %p84, %p85
    %s88 = sadd.s32 %s87, 1
    %p91 = scmp.eq.s32.totalorder %s11, 1
    %p92 = scmp.ne.s32.totalorder %s87, %s89
    %p93 = scmp.eq.s32.totalorder %s11, 0
    %p94 = por %p92, %p93
    %p95 = scmp.ne.s32.totalorder %s87, %s89
    %p96 = scmp.eq.s32.totalorder %s16, 1
    %p97 = por %p95, %p96
    %p98 = scmp.ne.s32.totalorder %s89, %s90
    %p99 = scmp.eq.s32.totalorder %s16, 0
    %p100 = por %p98, %p99
    %p101 = scmp.ne.s32.totalorder %s89, %s90
    %p102 = scmp.eq.s32.totalorder %s17, 1
    %p103 = por %p101, %p102
    %p105 = scmp.ne.s32.totalorder %s90, %s104
    %p106 = scmp.eq.s32.totalorder %s17, 0
    %p107 = por %p105, %p106
    %s109 = sadd.s32 %s108, 1
    %p112 = scmp.eq.s32.totalorder %s11, 1
    %p113 = scmp.ne.s32.totalorder %s108, %s110
    %p114 = scmp.eq.s32.totalorder %s11, 0
    %p115 = por %p113, %p114
    %p116 = scmp.ne.s32.totalorder %s108, %s110
    %p117 = scmp.eq.s32.totalorder %s16, 1
    %p118 = por %p116, %p117
    %p119 = scmp.ne.s32.totalorder %s110, %s111
    %p120 = scmp.eq.s32.totalorder %s16, 0
    %p121 = por %p119, %p120
    %p122 = scmp.ne.s32.totalorder %s110, %s111
    %p123 = scmp.eq.s32.totalorder %s17, 1
    %p124 = por %p122, %p123
    %p126 = scmp.ne.s32.totalorder %s111, %s125
    %p127 = scmp.eq.s32.totalorder %s17, 0
    %p128 = por %p126, %p127
    %s129 = ssub.s32 %s11, %s18
    %p130 = scmp.eq.s32.totalorder %s129, 0
    %s132 = sadd.s32 %s131, 1
    %s133 = scalar_select %p130, %s131, %s132
    %p136 = pneg %p130
    %p137 = scmp.eq.s32.totalorder %s11, 1
    %p138 = por %p136, %p137
    %p139 = scmp.ne.s32.totalorder %s131, %s134
    %p140 = scmp.eq.s32.totalorder %s11, 0
    %p141 = por %p139, %p140
    %p142 = scmp.ne.s32.totalorder %s131, %s134
    %p143 = scmp.eq.s32.totalorder %s16, 1
    %p144 = por %p142, %p143
    %p145 = scmp.ne.s32.totalorder %s134, %s135
    %p146 = scmp.eq.s32.totalorder %s16, 0
    %p147 = por %p145, %p146
    %p148 = scmp.ne.s32.totalorder %s134, %s135
    %p149 = scmp.eq.s32.totalorder %s17, 1
    %p150 = por %p148, %p149
    %p152 = scmp.ne.s32.totalorder %s135, %s151
    %p153 = scmp.eq.s32.totalorder %s17, 0
    %p154 = por %p152, %p153
    %p155 = scmp.le.s32.totalorder 1, %s11
    %p156 = scmp.lt.s32.totalorder %s11, 3
    %p157 = pnand %p155, %p156
    %p158 = pneg %p157
    // Predicated region
    $region9: #{resnet_block_nhwc.1} parent=5 // pred_check
      _
    $region10: #{resnet_block_nhwc.1} parent=5 // pred_check_branch
      %160 = sbr.rel (%p157) target = $region12
    $region11: #{resnet_block_nhwc.1} parent=5 // pred_region
      %s161 = ssub.s32 %s11, 1
      // Predicated region
      $region13: #{resnet_block_nhwc.1} parent=11 // pred_check
        %p162 = pneg %p58
      $region14: #{resnet_block_nhwc.1} parent=11 // pred_check_branch
        %164 = sbr.rel (%p162) target = $region16
      $region15: #{resnet_block_nhwc.1} parent=11 // pred_region
        _
      $region16: #{resnet_block_nhwc.1} parent=11 // pred_fallthru
        _
      // Predicated region
      $region17: #{resnet_block_nhwc.1} parent=11 // pred_check
        %p165 = pneg %p79
      $region18: #{resnet_block_nhwc.1} parent=11 // pred_check_branch
        %167 = sbr.rel (%p165) target = $region20
      $region19: #{resnet_block_nhwc.1} parent=11 // pred_region
        _
      $region20: #{resnet_block_nhwc.1} parent=11 // pred_fallthru
        _
      // Predicated region
      $region21: #{resnet_block_nhwc.1} parent=11 // pred_check
        %p168 = pneg %p100
      $region22: #{resnet_block_nhwc.1} parent=11 // pred_check_branch
        %170 = sbr.rel (%p168) target = $region24
      $region23: #{resnet_block_nhwc.1} parent=11 // pred_region
        _
      $region24: #{resnet_block_nhwc.1} parent=11 // pred_fallthru
        _
      // Predicated region
      $region25: #{resnet_block_nhwc.1} parent=11 // pred_check
        %p171 = pneg %p121
      $region26: #{resnet_block_nhwc.1} parent=11 // pred_check_branch
        %173 = sbr.rel (%p171) target = $region28
      $region27: #{resnet_block_nhwc.1} parent=11 // pred_region
        _
      $region28: #{resnet_block_nhwc.1} parent=11 // pred_fallthru
        _
    $region12: #{resnet_block_nhwc.1} parent=5 // pred_fallthru
      _
    %p174 = scmp.lt.s32.totalorder %s11, 2
    // Predicated region
    $region29: #{resnet_block_nhwc.1} parent=5 // pred_check
      %p175 = pneg %p174
    $region30: #{resnet_block_nhwc.1} parent=5 // pred_check_branch
      %177 = sbr.rel (%p175) target = $region32
    $region31: #{resnet_block_nhwc.1} parent=5 // pred_region
      // Predicated region
      $region33: #{resnet_block_nhwc.1} parent=31 // pred_check
        %p178 = pneg %p31
      $region34: #{resnet_block_nhwc.1} parent=31 // pred_check_branch
        %180 = sbr.rel (%p178) target = $region36
      $region35: #{resnet_block_nhwc.1} parent=31 // pred_region
        %p181 = scmp.lt.s32.totalorder %s11, 1
        %s182 = scalar_select %p181, %s11, 1
        %s183 = smul.addr %s182, 32
        %s184 = smul.addr %s183, 8
        %s185 = scalar_lea.vmem %s0, %s184
      $region36: #{resnet_block_nhwc.1} parent=31 // pred_fallthru
        _
    $region32: #{resnet_block_nhwc.1} parent=5 // pred_fallthru
      _
    %p186 = scmp.le.s32.totalorder 1, %s11
    %p187 = scmp.lt.s32.totalorder %s11, 3
    %p188 = pnand %p186, %p187
    %p189 = pneg %p188
    // Predicated region
    $region37: #{resnet_block_nhwc.1} parent=5 // pred_check
      _
    $region38: #{resnet_block_nhwc.1} parent=5 // pred_check_branch
      %191 = sbr.rel (%p188) target = $region40
    $region39: #{resnet_block_nhwc.1} parent=5 // pred_region
      %s192 = ssub.s32 %s11, 1
      %p193 = scmp.lt.s32.totalorder %s16, 1
      %s194 = scalar_select %p193, %s16, 1
      %s195 = smul.addr %s194, 32
      %s196 = smul.addr %s195, 8
      %s197 = scalar_lea.vmem %s0, %s196
      %p198 = pneg %p37
      %p199 = pneg %p34
      %p200 = pneg %p58
      %p201 = pneg %p55
      %p202 = pneg %p79
      %p203 = pneg %p76
      %p204 = pneg %p100
      %p205 = pneg %p97
      %p206 = pneg %p121
      %p207 = pneg %p118
      %p208 = pneg %p147
      %p209 = pneg %p144
      %p210 = scmp.lt.s32.totalorder %s16, 1
      %s211 = scalar_select %p210, %s16, 1
      %s212 = smul.addr %s211, 32
      %s213 = smul.addr %s212, 8
      %s214 = scalar_lea.vmem %s5, %s213
      %p215 = scmp.lt.s32.totalorder %s16, 1
      %s216 = scalar_select %p215, %s16, 1
      %s217 = smul.addr %s216, 32
      %s218 = smul.addr %s217, 8
      %s219 = scalar_lea.vmem %s0, %s218
      %p220 = scmp.lt.s32.totalorder %s16, 1
      %s221 = scalar_select %p220, %s16, 1
      %s222 = smul.addr %s221, 32
      %s223 = smul.addr %s222, 8
      %s224 = scalar_lea.vmem %s5, %s223
      %v226 = vld [vmem:[%s219] sm:$0xff]
      %v227 = vld [vmem:[%s219 + $0x8] sm:$0xff]
      %v228 = vld [vmem:[%s219 + $0x10] sm:$0xff]
      %v229 = vld [vmem:[%s219 + $0x18] sm:$0xff]
      %v230 = vld [vmem:[%s219 + $0x20] sm:$0xff]
      %v231 = vld [vmem:[%s219 + $0x28] sm:$0xff]
      %v232 = vld [vmem:[%s219 + $0x30] sm:$0xff]
      %v233 = vld [vmem:[%s219 + $0x38] sm:$0xff]
      %v234 = vld [vmem:[%s219 + $0x40] sm:$0xff]
      %v235 = vld [vmem:[%s219 + $0x48] sm:$0xff]
      %v236 = vld [vmem:[%s219 + $0x50] sm:$0xff]
      %v237 = vld [vmem:[%s219 + $0x58] sm:$0xff]
      %v238 = vld [vmem:[%s219 + $0x60] sm:$0xff]
      %v239 = vld [vmem:[%s219 + $0x68] sm:$0xff]
      %v240 = vld [vmem:[%s219 + $0x70] sm:$0xff]
      %v241 = vld [vmem:[%s219 + $0x78] sm:$0xff]
      %v242 = vld [vmem:[%s219 + $0x80] sm:$0xff]
      %v243 = vld [vmem:[%s219 + $0x88] sm:$0xff]
      %v244 = vld [vmem:[%s219 + $0x90] sm:$0xff]
      %v245 = vld [vmem:[%s219 + $0x98] sm:$0xff]
      %v246 = vld [vmem:[%s219 + $0xa0] sm:$0xff]
      %v247 = vld [vmem:[%s219 + $0xa8] sm:$0xff]
      %v248 = vld [vmem:[%s219 + $0xb0] sm:$0xff]
      %v249 = vld [vmem:[%s219 + $0xb8] sm:$0xff]
      %v250 = vld [vmem:[%s219 + $0xc0] sm:$0xff]
      %v251 = vld [vmem:[%s219 + $0xc8] sm:$0xff]
      %v252 = vld [vmem:[%s219 + $0xd0] sm:$0xff]
      %v253 = vld [vmem:[%s219 + $0xd8] sm:$0xff]
      %v254 = vld [vmem:[%s219 + $0xe0] sm:$0xff]
      %v255 = vld [vmem:[%s219 + $0xe8] sm:$0xff]
      %v256 = vld [vmem:[%s219 + $0xf0] sm:$0xff]
      %v257 = vld [vmem:[%s219 + $0xf8] sm:$0xff]
      %v258 = vpack.c.bf16 %v226, %v226
      %v259 = vpack.c.bf16 %v227, %v227
      %v260 = vpack.c.bf16 %v228, %v228
      %v261 = vpack.c.bf16 %v229, %v229
      %v262 = vpack.c.bf16 %v230, %v230
      %v263 = vpack.c.bf16 %v231, %v231
      %v264 = vpack.c.bf16 %v232, %v232
      %v265 = vpack.c.bf16 %v233, %v233
      %v266 = vpack.c.bf16 %v234, %v234
      %v267 = vpack.c.bf16 %v235, %v235
      %v268 = vpack.c.bf16 %v236, %v236
      %v269 = vpack.c.bf16 %v237, %v237
      %v270 = vpack.c.bf16 %v238, %v238
      %v271 = vpack.c.bf16 %v239, %v239
      %v272 = vpack.c.bf16 %v240, %v240
      %v273 = vpack.c.bf16 %v241, %v241
      %v274 = vpack.c.bf16 %v242, %v242
      %v275 = vpack.c.bf16 %v243, %v243
      %v276 = vpack.c.bf16 %v244, %v244
      %v277 = vpack.c.bf16 %v245, %v245
      %v278 = vpack.c.bf16 %v246, %v246
      %v279 = vpack.c.bf16 %v247, %v247
      %v280 = vpack.c.bf16 %v248, %v248
      %v281 = vpack.c.bf16 %v249, %v249
      %v282 = vpack.c.bf16 %v250, %v250
      %v283 = vpack.c.bf16 %v251, %v251
      %v284 = vpack.c.bf16 %v252, %v252
      %v285 = vpack.c.bf16 %v253, %v253
      %v286 = vpack.c.bf16 %v254, %v254
      %v287 = vpack.c.bf16 %v255, %v255
      %v288 = vpack.c.bf16 %v256, %v256
      %v289 = vpack.c.bf16 %v257, %v257
      %v306 = vunpack.c.l.b16 %v260
      %v307 = vunpack.c.l.b16 %v258
      %v308 = vunpack.c.l.b16 %v262
      %v309 = vunpack.c.l.b16 %v264
      %v310 = vunpack.c.l.b16 %v266
      %v311 = vunpack.c.l.b16 %v268
      %v312 = vunpack.c.l.b16 %v270
      %v313 = vunpack.c.l.b16 %v272
      %v314 = vunpack.c.l.b16 %v274
      %v315 = vunpack.c.l.b16 %v276
      %v316 = vunpack.c.l.b16 %v278
      %v317 = vunpack.c.l.b16 %v280
      %v318 = vunpack.c.l.b16 %v282
      %v319 = vunpack.c.l.b16 %v284
      %v320 = vunpack.c.l.b16 %v286
      %v321 = vunpack.c.l.b16 %v288
      %v322 = vpack.c.b16 %v306, %v306
      %v323 = vpack.c.b16 %v307, %v307
      %v324 = vpack.c.b16 %v308, %v308
      %v325 = vpack.c.b16 %v309, %v309
      %v326 = vpack.c.b16 %v310, %v310
      %v327 = vpack.c.b16 %v311, %v311
      %v328 = vpack.c.b16 %v312, %v312
      %v329 = vpack.c.b16 %v313, %v313
      %v330 = vpack.c.b16 %v314, %v314
      %v331 = vpack.c.b16 %v315, %v315
      %v332 = vpack.c.b16 %v316, %v316
      %v333 = vpack.c.b16 %v317, %v317
      %v334 = vpack.c.b16 %v318, %v318
      %v335 = vpack.c.b16 %v319, %v319
      %v336 = vpack.c.b16 %v320, %v320
      %v337 = vpack.c.b16 %v321, %v321
      %v339 = vshrl.u32 %v322, 16
      %v342 = vshrl.u32 %v323, 16
      %v345 = vshrl.u32 %v324, 16
      %v348 = vshrl.u32 %v325, 16
      %v351 = vshrl.u32 %v326, 16
      %v354 = vshrl.u32 %v327, 16
      %v357 = vshrl.u32 %v328, 16
      %v360 = vshrl.u32 %v329, 16
      %v363 = vshrl.u32 %v330, 16
      %v366 = vshrl.u32 %v331, 16
      %v369 = vshrl.u32 %v332, 16
      %v372 = vshrl.u32 %v333, 16
      %v375 = vshrl.u32 %v334, 16
      %v378 = vshrl.u32 %v335, 16
      %v381 = vshrl.u32 %v336, 16
      %v384 = vshrl.u32 %v337, 16
      %v418 = vunpack.c.l.b16 %v261
      %v419 = vunpack.c.l.b16 %v259
      %v420 = vunpack.c.l.b16 %v263
      %v421 = vunpack.c.l.b16 %v265
      %v422 = vunpack.c.l.b16 %v267
      %v423 = vunpack.c.l.b16 %v269
      %v424 = vunpack.c.l.b16 %v271
      %v425 = vunpack.c.l.b16 %v273
      %v426 = vunpack.c.l.b16 %v275
      %v427 = vunpack.c.l.b16 %v277
      %v428 = vunpack.c.l.b16 %v279
      %v429 = vunpack.c.l.b16 %v281
      %v430 = vunpack.c.l.b16 %v283
      %v431 = vunpack.c.l.b16 %v285
      %v432 = vunpack.c.l.b16 %v287
      %v433 = vunpack.c.l.b16 %v289
      %v434 = vpack.c.b16 %v418, %v306
      %v435 = vpack.c.b16 %v419, %v307
      %v436 = vpack.c.b16 %v420, %v308
      %v437 = vpack.c.b16 %v421, %v309
      %v438 = vpack.c.b16 %v422, %v310
      %v439 = vpack.c.b16 %v423, %v311
      %v440 = vpack.c.b16 %v424, %v312
      %v441 = vpack.c.b16 %v425, %v313
      %v442 = vpack.c.b16 %v426, %v314
      %v443 = vpack.c.b16 %v427, %v315
      %v444 = vpack.c.b16 %v428, %v316
      %v445 = vpack.c.b16 %v429, %v317
      %v446 = vpack.c.b16 %v430, %v318
      %v447 = vpack.c.b16 %v431, %v319
      %v448 = vpack.c.b16 %v432, %v320
      %v449 = vpack.c.b16 %v433, %v321
      %v451 = vshrl.u32 %v434, 16
      %v453 = vrot.slane %v451, 7
      %v454 = vshll.u32 %v434, 16
      %v456 = vor.u32 %v453, %v454
      %v458 = vshrl.u32 %v435, 16
      %v460 = vrot.slane %v458, 7
      %v461 = vshll.u32 %v435, 16
      %v463 = vor.u32 %v460, %v461
      %v465 = vshrl.u32 %v436, 16
      %v467 = vrot.slane %v465, 7
      %v468 = vshll.u32 %v436, 16
      %v470 = vor.u32 %v467, %v468
      %v472 = vshrl.u32 %v437, 16
      %v474 = vrot.slane %v472, 7
      %v475 = vshll.u32 %v437, 16
      %v477 = vor.u32 %v474, %v475
      %v479 = vshrl.u32 %v438, 16
      %v481 = vrot.slane %v479, 7
      %v482 = vshll.u32 %v438, 16
      %v484 = vor.u32 %v481, %v482
      %v486 = vshrl.u32 %v439, 16
      %v488 = vrot.slane %v486, 7
      %v489 = vshll.u32 %v439, 16
      %v491 = vor.u32 %v488, %v489
      %v493 = vshrl.u32 %v440, 16
      %v495 = vrot.slane %v493, 7
      %v496 = vshll.u32 %v440, 16
      %v498 = vor.u32 %v495, %v496
      %v500 = vshrl.u32 %v441, 16
      %v502 = vrot.slane %v500, 7
      %v503 = vshll.u32 %v441, 16
      %v505 = vor.u32 %v502, %v503
      %v507 = vshrl.u32 %v442, 16
      %v509 = vrot.slane %v507, 7
      %v510 = vshll.u32 %v442, 16
      %v512 = vor.u32 %v509, %v510
      %v514 = vshrl.u32 %v443, 16
      %v516 = vrot.slane %v514, 7
      %v517 = vshll.u32 %v443, 16
      %v519 = vor.u32 %v516, %v517
      %v521 = vshrl.u32 %v444, 16
      %v523 = vrot.slane %v521, 7
      %v524 = vshll.u32 %v444, 16
      %v526 = vor.u32 %v523, %v524
      %v528 = vshrl.u32 %v445, 16
      %v530 = vrot.slane %v528, 7
      %v531 = vshll.u32 %v445, 16
      %v533 = vor.u32 %v530, %v531
      %v535 = vshrl.u32 %v446, 16
      %v537 = vrot.slane %v535, 7
      %v538 = vshll.u32 %v446, 16
      %v540 = vor.u32 %v537, %v538
      %v542 = vshrl.u32 %v447, 16
      %v544 = vrot.slane %v542, 7
      %v545 = vshll.u32 %v447, 16
      %v547 = vor.u32 %v544, %v545
      %v549 = vshrl.u32 %v448, 16
      %v551 = vrot.slane %v549, 7
      %v552 = vshll.u32 %v448, 16
      %v554 = vor.u32 %v551, %v552
      %v556 = vshrl.u32 %v449, 16
      %v558 = vrot.slane %v556, 7
      %v559 = vshll.u32 %v449, 16
      %v561 = vor.u32 %v558, %v559
      %v594 = vpack.c.b16 %v418, %v418
      %v595 = vpack.c.b16 %v419, %v419
      %v596 = vpack.c.b16 %v420, %v420
      %v597 = vpack.c.b16 %v421, %v421
      %v598 = vpack.c.b16 %v422, %v422
      %v599 = vpack.c.b16 %v423, %v423
      %v600 = vpack.c.b16 %v424, %v424
      %v601 = vpack.c.b16 %v425, %v425
      %v602 = vpack.c.b16 %v426, %v426
      %v603 = vpack.c.b16 %v427, %v427
      %v604 = vpack.c.b16 %v428, %v428
      %v605 = vpack.c.b16 %v429, %v429
      %v606 = vpack.c.b16 %v430, %v430
      %v607 = vpack.c.b16 %v431, %v431
      %v608 = vpack.c.b16 %v432, %v432
      %v609 = vpack.c.b16 %v433, %v433
      %v611 = vshll.u32 %v594, 16
      %v613 = vrot.slane %v611, 3
      %v615 = vshll.u32 %v595, 16
      %v617 = vrot.slane %v615, 3
      %v619 = vshll.u32 %v596, 16
      %v621 = vrot.slane %v619, 3
      %v623 = vshll.u32 %v597, 16
      %v625 = vrot.slane %v623, 3
      %v627 = vshll.u32 %v598, 16
      %v629 = vrot.slane %v627, 3
      %v631 = vshll.u32 %v599, 16
      %v633 = vrot.slane %v631, 3
      %v635 = vshll.u32 %v600, 16
      %v637 = vrot.slane %v635, 3
      %v639 = vshll.u32 %v601, 16
      %v641 = vrot.slane %v639, 3
      %v643 = vshll.u32 %v602, 16
      %v645 = vrot.slane %v643, 3
      %v647 = vshll.u32 %v603, 16
      %v649 = vrot.slane %v647, 3
      %v651 = vshll.u32 %v604, 16
      %v653 = vrot.slane %v651, 3
      %v655 = vshll.u32 %v605, 16
      %v657 = vrot.slane %v655, 3
      %v659 = vshll.u32 %v606, 16
      %v661 = vrot.slane %v659, 3
      %v663 = vshll.u32 %v607, 16
      %v665 = vrot.slane %v663, 3
      %v667 = vshll.u32 %v608, 16
      %v669 = vrot.slane %v667, 3
      %v671 = vshll.u32 %v609, 16
      %v673 = vrot.slane %v671, 3
      %vm690 = vcmask 1040384
      %vm691 = vsmask.f32 256
      %vm692 = vmand %vm690, %vm691
      %v693 = vsel %vm692, %v339, %v456
      %v694 = vsel %vm692, %v342, %v463
      %v695 = vsel %vm692, %v345, %v470
      %v696 = vsel %vm692, %v348, %v477
      %v697 = vsel %vm692, %v351, %v484
      %v698 = vsel %vm692, %v354, %v491
      %v699 = vsel %vm692, %v357, %v498
      %v700 = vsel %vm692, %v360, %v505
      %v701 = vsel %vm692, %v363, %v512
      %v702 = vsel %vm692, %v366, %v519
      %v703 = vsel %vm692, %v369, %v526
      %v704 = vsel %vm692, %v372, %v533
      %v705 = vsel %vm692, %v375, %v540
      %v706 = vsel %vm692, %v378, %v547
      %v707 = vsel %vm692, %v381, %v554
      %v708 = vsel %vm692, %v384, %v561
      %v709 = vsel %vm692, %v453, %v613
      %v710 = vsel %vm692, %v460, %v617
      %v711 = vsel %vm692, %v467, %v621
      %v712 = vsel %vm692, %v474, %v625
      %v713 = vsel %vm692, %v481, %v629
      %v714 = vsel %vm692, %v488, %v633
      %v715 = vsel %vm692, %v495, %v637
      %v716 = vsel %vm692, %v502, %v641
      %v717 = vsel %vm692, %v509, %v645
      %v718 = vsel %vm692, %v516, %v649
      %v719 = vsel %vm692, %v523, %v653
      %v720 = vsel %vm692, %v530, %v657
      %v721 = vsel %vm692, %v537, %v661
      %v722 = vsel %vm692, %v544, %v665
      %v723 = vsel %vm692, %v551, %v669
      %v724 = vsel %vm692, %v558, %v673
      %v757 = vunpack.c.l.b16 %v693
      %v758 = vunpack.c.h.b16 %v693
      %v759 = vunpack.c.l.b16 %v709
      %v760 = vunpack.c.l.b16 %v694
      %v761 = vunpack.c.h.b16 %v694
      %v762 = vunpack.c.l.b16 %v710
      %v763 = vunpack.c.l.b16 %v695
      %v764 = vunpack.c.h.b16 %v695
      %v765 = vunpack.c.l.b16 %v711
      %v766 = vunpack.c.l.b16 %v696
      %v767 = vunpack.c.h.b16 %v696
      %v768 = vunpack.c.l.b16 %v712
      %v769 = vunpack.c.l.b16 %v697
      %v770 = vunpack.c.h.b16 %v697
      %v771 = vunpack.c.l.b16 %v713
      %v772 = vunpack.c.l.b16 %v698
      %v773 = vunpack.c.h.b16 %v698
      %v774 = vunpack.c.l.b16 %v714
      %v775 = vunpack.c.l.b16 %v699
      %v776 = vunpack.c.h.b16 %v699
      %v777 = vunpack.c.l.b16 %v715
      %v778 = vunpack.c.l.b16 %v700
      %v779 = vunpack.c.h.b16 %v700
      %v780 = vunpack.c.l.b16 %v716
      %v781 = vunpack.c.l.b16 %v701
      %v782 = vunpack.c.h.b16 %v701
      %v783 = vunpack.c.l.b16 %v717
      %v784 = vunpack.c.l.b16 %v702
      %v785 = vunpack.c.h.b16 %v702
      %v786 = vunpack.c.l.b16 %v718
      %v787 = vunpack.c.l.b16 %v703
      %v788 = vunpack.c.h.b16 %v703
      %v789 = vunpack.c.l.b16 %v719
      %v790 = vunpack.c.l.b16 %v704
      %v791 = vunpack.c.h.b16 %v704
      %v792 = vunpack.c.l.b16 %v720
      %v793 = vunpack.c.l.b16 %v705
      %v794 = vunpack.c.h.b16 %v705
      %v795 = vunpack.c.l.b16 %v721
      %v796 = vunpack.c.l.b16 %v706
      %v797 = vunpack.c.h.b16 %v706
      %v798 = vunpack.c.l.b16 %v722
      %v799 = vunpack.c.l.b16 %v707
      %v800 = vunpack.c.h.b16 %v707
      %v801 = vunpack.c.l.b16 %v723
      %v802 = vunpack.c.l.b16 %v708
      %v803 = vunpack.c.h.b16 %v708
      %v804 = vunpack.c.l.b16 %v724
      %v805 = vpack.c.b16 %v757, %v757
      %v806 = vpack.c.b16 %v758, %v758
      %v807 = vpack.c.b16 %v759, %v759
      %v808 = vpack.c.b16 %v760, %v760
      %v809 = vpack.c.b16 %v761, %v761
      %v810 = vpack.c.b16 %v762, %v762
      %v811 = vpack.c.b16 %v763, %v763
      %v812 = vpack.c.b16 %v764, %v764
      %v813 = vpack.c.b16 %v765, %v765
      %v814 = vpack.c.b16 %v766, %v766
      %v815 = vpack.c.b16 %v767, %v767
      %v816 = vpack.c.b16 %v768, %v768
      %v817 = vpack.c.b16 %v769, %v769
      %v818 = vpack.c.b16 %v770, %v770
      %v819 = vpack.c.b16 %v771, %v771
      %v820 = vpack.c.b16 %v772, %v772
      %v821 = vpack.c.b16 %v773, %v773
      %v822 = vpack.c.b16 %v774, %v774
      %v823 = vpack.c.b16 %v775, %v775
      %v824 = vpack.c.b16 %v776, %v776
      %v825 = vpack.c.b16 %v777, %v777
      %v826 = vpack.c.b16 %v778, %v778
      %v827 = vpack.c.b16 %v779, %v779
      %v828 = vpack.c.b16 %v780, %v780
      %v829 = vpack.c.b16 %v781, %v781
      %v830 = vpack.c.b16 %v782, %v782
      %v831 = vpack.c.b16 %v783, %v783
      %v832 = vpack.c.b16 %v784, %v784
      %v833 = vpack.c.b16 %v785, %v785
      %v834 = vpack.c.b16 %v786, %v786
      %v835 = vpack.c.b16 %v787, %v787
      %v836 = vpack.c.b16 %v788, %v788
      %v837 = vpack.c.b16 %v789, %v789
      %v838 = vpack.c.b16 %v790, %v790
      %v839 = vpack.c.b16 %v791, %v791
      %v840 = vpack.c.b16 %v792, %v792
      %v841 = vpack.c.b16 %v793, %v793
      %v842 = vpack.c.b16 %v794, %v794
      %v843 = vpack.c.b16 %v795, %v795
      %v844 = vpack.c.b16 %v796, %v796
      %v845 = vpack.c.b16 %v797, %v797
      %v846 = vpack.c.b16 %v798, %v798
      %v847 = vpack.c.b16 %v799, %v799
      %v848 = vpack.c.b16 %v800, %v800
      %v849 = vpack.c.b16 %v801, %v801
      %v850 = vpack.c.b16 %v802, %v802
      %v851 = vpack.c.b16 %v803, %v803
      %v852 = vpack.c.b16 %v804, %v804
      %vm901 = vcmask 27648
      %902 = vst.msk [vmem:[#allocation2] sm:$0xf] %vm901, %v805
      %903 = vst.msk [vmem:[#allocation2 + $0x4] sm:$0xf] %vm901, %v806
      %vm904 = vcmask 24576
      %905 = vst.msk [vmem:[#allocation2 + $0x8] sm:$0x1] %vm904, %v807
      %906 = vst.msk [vmem:[#allocation2 + $0xc] sm:$0xf] %vm901, %v808
      %907 = vst.msk [vmem:[#allocation2 + $0x10] sm:$0xf] %vm901, %v809
      %908 = vst.msk [vmem:[#allocation2 + $0x14] sm:$0x1] %vm904, %v810
      %909 = vst.msk [vmem:[#allocation2 + $0x18] sm:$0xf] %vm901, %v805
      %910 = vst.msk [vmem:[#allocation2 + $0x1c] sm:$0xf] %vm901, %v806
      %911 = vst.msk [vmem:[#allocation2 + $0x20] sm:$0x1] %vm904, %v807
      %912 = vst.msk [vmem:[#allocation2 + $0x24] sm:$0xf] %vm901, %v811
      %913 = vst.msk [vmem:[#allocation2 + $0x28] sm:$0xf] %vm901, %v812
      %914 = vst.msk [vmem:[#allocation2 + $0x2c] sm:$0x1] %vm904, %v813
      %915 = vst.msk [vmem:[#allocation2 + $0x30] sm:$0xf] %vm901, %v814
      %916 = vst.msk [vmem:[#allocation2 + $0x34] sm:$0xf] %vm901, %v815
      %917 = vst.msk [vmem:[#allocation2 + $0x38] sm:$0x1] %vm904, %v816
      %918 = vst.msk [vmem:[#allocation2 + $0x3c] sm:$0xf] %vm901, %v817
      %919 = vst.msk [vmem:[#allocation2 + $0x40] sm:$0xf] %vm901, %v818
      %920 = vst.msk [vmem:[#allocation2 + $0x44] sm:$0x1] %vm904, %v819
      %921 = vst.msk [vmem:[#allocation2 + $0x48] sm:$0xf] %vm901, %v820
      %922 = vst.msk [vmem:[#allocation2 + $0x4c] sm:$0xf] %vm901, %v821
      %923 = vst.msk [vmem:[#allocation2 + $0x50] sm:$0x1] %vm904, %v822
      %924 = vst.msk [vmem:[#allocation2 + $0x54] sm:$0xf] %vm901, %v823
      %925 = vst.msk [vmem:[#allocation2 + $0x58] sm:$0xf] %vm901, %v824
      %926 = vst.msk [vmem:[#allocation2 + $0x5c] sm:$0x1] %vm904, %v825
      %927 = vst.msk [vmem:[#allocation2 + $0x60] sm:$0xf] %vm901, %v826
      %928 = vst.msk [vmem:[#allocation2 + $0x64] sm:$0xf] %vm901, %v827
      %929 = vst.msk [vmem:[#allocation2 + $0x68] sm:$0x1] %vm904, %v828
      %930 = vst.msk [vmem:[#allocation2 + $0x6c] sm:$0xf] %vm901, %v829
      %931 = vst.msk [vmem:[#allocation2 + $0x70] sm:$0xf] %vm901, %v830
      %932 = vst.msk [vmem:[#allocation2 + $0x74] sm:$0x1] %vm904, %v831
      %933 = vst.msk [vmem:[#allocation2 + $0x78] sm:$0xf] %vm901, %v832
      %934 = vst.msk [vmem:[#allocation2 + $0x7c] sm:$0xf] %vm901, %v833
      %935 = vst.msk [vmem:[#allocation2 + $0x80] sm:$0x1] %vm904, %v834
      %936 = vst.msk [vmem:[#allocation2 + $0x84] sm:$0xf] %vm901, %v835
      %937 = vst.msk [vmem:[#allocation2 + $0x88] sm:$0xf] %vm901, %v836
      %938 = vst.msk [vmem:[#allocation2 + $0x8c] sm:$0x1] %vm904, %v837
      %939 = vst.msk [vmem:[#allocation2 + $0x90] sm:$0xf] %vm901, %v838
      %940 = vst.msk [vmem:[#allocation2 + $0x94] sm:$0xf] %vm901, %v839
      %941 = vst.msk [vmem:[#allocation2 + $0x98] sm:$0x1] %vm904, %v840
      %942 = vst.msk [vmem:[#allocation2 + $0x9c] sm:$0xf] %vm901, %v841
      %943 = vst.msk [vmem:[#allocation2 + $0xa0] sm:$0xf] %vm901, %v842
      %944 = vst.msk [vmem:[#allocation2 + $0xa4] sm:$0x1] %vm904, %v843
      %945 = vst.msk [vmem:[#allocation2 + $0xa8] sm:$0xf] %vm901, %v844
      %946 = vst.msk [vmem:[#allocation2 + $0xac] sm:$0xf] %vm901, %v845
      %947 = vst.msk [vmem:[#allocation2 + $0xb0] sm:$0x1] %vm904, %v846
      %948 = vst.msk [vmem:[#allocation2 + $0xb4] sm:$0xf] %vm901, %v847
      %949 = vst.msk [vmem:[#allocation2 + $0xb8] sm:$0xf] %vm901, %v848
      %950 = vst.msk [vmem:[#allocation2 + $0xbc] sm:$0x1] %vm904, %v849
      %951 = vst.msk [vmem:[#allocation2 + $0xc0] sm:$0xf] %vm901, %v850
      %952 = vst.msk [vmem:[#allocation2 + $0xc4] sm:$0xf] %vm901, %v851
      %953 = vst.msk [vmem:[#allocation2 + $0xc8] sm:$0x1] %vm904, %v852
      %954 = vst.msk [vmem:[#allocation2 + $0xcc] sm:$0xf] %vm901, %v847
      %955 = vst.msk [vmem:[#allocation2 + $0xd0] sm:$0xf] %vm901, %v848
      %956 = vst.msk [vmem:[#allocation2 + $0xd4] sm:$0x1] %vm904, %v849
      %v957 = vld [vmem:[%s1] sm:$0xf]
      %v958 = vld [vmem:[%s1 + $0x4] sm:$0xf]
      %v959 = vld [vmem:[%s1 + $0x8] sm:$0xf]
      %v960 = vld [vmem:[%s1 + $0xc] sm:$0xf]
      %v961 = vld [vmem:[%s1 + $0x10] sm:$0x3]
      %v962 = vld [vmem:[%s2] sm:$0x1]
      %v963 = vld [vmem:[#allocation2] sm:$0xf]
      %v964 = vld [vmem:[#allocation2 + $0x4] sm:$0xf]
      %v965 = vld [vmem:[#allocation2 + $0xc] sm:$0xf]
      %v966 = vld [vmem:[#allocation2 + $0x10] sm:$0xf]
      %v967 = vld [vmem:[#allocation2 + $0x18] sm:$0xf]
      %v968 = vld [vmem:[#allocation2 + $0x1c] sm:$0xf]
      %v969 = vld [vmem:[#allocation2 + $0x24] sm:$0xf]
      %v970 = vld [vmem:[#allocation2 + $0x28] sm:$0xf]
      %v971 = vld [vmem:[#allocation2 + $0x30] sm:$0xf]
      %v972 = vld [vmem:[#allocation2 + $0x34] sm:$0xf]
      %v973 = vld [vmem:[#allocation2 + $0x3c] sm:$0xf]
      %v974 = vld [vmem:[#allocation2 + $0x40] sm:$0xf]
      %v975 = vld [vmem:[#allocation2 + $0x48] sm:$0xf]
      %v976 = vld [vmem:[#allocation2 + $0x4c] sm:$0xf]
      %v977 = vld [vmem:[#allocation2 + $0x54] sm:$0xf]
      %v978 = vld [vmem:[#allocation2 + $0x58] sm:$0xf]
      %v979 = vld [vmem:[#allocation2 + $0x60] sm:$0xf]
      %v980 = vld [vmem:[#allocation2 + $0x64] sm:$0xf]
      %v981 = vld [vmem:[#allocation2 + $0x6c] sm:$0xf]
      %v982 = vld [vmem:[#allocation2 + $0x70] sm:$0xf]
      %v983 = vld [vmem:[#allocation2 + $0x78] sm:$0xf]
      %v984 = vld [vmem:[#allocation2 + $0x7c] sm:$0xf]
      %v985 = vld [vmem:[#allocation2 + $0x84] sm:$0xf]
      %v986 = vld [vmem:[#allocation2 + $0x88] sm:$0xf]
      %v987 = vld [vmem:[#allocation2 + $0x90] sm:$0xf]
      %v988 = vld [vmem:[#allocation2 + $0x94] sm:$0xf]
      %v989 = vld [vmem:[#allocation2 + $0x9c] sm:$0xf]
      %v990 = vld [vmem:[#allocation2 + $0xa0] sm:$0xf]
      %v991 = vld [vmem:[#allocation2 + $0xa8] sm:$0xf]
      %v992 = vld [vmem:[#allocation2 + $0xac] sm:$0xf]
      %v993 = vld [vmem:[#allocation2 + $0xb4] sm:$0xf]
      %v994 = vld [vmem:[#allocation2 + $0xb8] sm:$0xf]
      %v995 = vld [vmem:[#allocation2 + $0x8] sm:$0x1]
      %v996 = vld [vmem:[#allocation2 + $0x14] sm:$0x1]
      %v997 = vld [vmem:[#allocation2 + $0x20] sm:$0x1]
      %v998 = vld [vmem:[#allocation2 + $0x2c] sm:$0x1]
      %v999 = vld [vmem:[#allocation2 + $0x38] sm:$0x1]
      %v1000 = vld [vmem:[#allocation2 + $0x44] sm:$0x1]
      %v1001 = vld [vmem:[#allocation2 + $0x50] sm:$0x1]
      %v1002 = vld [vmem:[#allocation2 + $0x5c] sm:$0x1]
      %v1003 = vld [vmem:[#allocation2 + $0x68] sm:$0x1]
      %v1004 = vld [vmem:[#allocation2 + $0x74] sm:$0x1]
      %v1005 = vld [vmem:[#allocation2 + $0x80] sm:$0x1]
      %v1006 = vld [vmem:[#allocation2 + $0x8c] sm:$0x1]
      %v1007 = vld [vmem:[#allocation2 + $0x98] sm:$0x1]
      %v1008 = vld [vmem:[#allocation2 + $0xa4] sm:$0x1]
      %v1009 = vld [vmem:[#allocation2 + $0xb0] sm:$0x1]
      %v1010 = vld [vmem:[#allocation2 + $0xbc] sm:$0x1]
      %v1011 = vld [vmem:[#allocation2] sm:$0xe]
      %v1012 = vld [vmem:[#allocation2 + $0xc] sm:$0xe]
      %v1013 = vld [vmem:[#allocation2 + $0x18] sm:$0xe]
      %v1014 = vld [vmem:[#allocation2 + $0x24] sm:$0xe]
      %v1015 = vld [vmem:[#allocation2 + $0x30] sm:$0xe]
      %v1016 = vld [vmem:[#allocation2 + $0x3c] sm:$0xe]
      %v1017 = vld [vmem:[#allocation2 + $0x48] sm:$0xe]
      %v1018 = vld [vmem:[#allocation2 + $0x54] sm:$0xe]
      %v1019 = vld [vmem:[#allocation2 + $0x60] sm:$0xe]
      %v1020 = vld [vmem:[#allocation2 + $0x6c] sm:$0xe]
      %v1021 = vld [vmem:[#allocation2 + $0x78] sm:$0xe]
      %v1022 = vld [vmem:[#allocation2 + $0x84] sm:$0xe]
      %v1023 = vld [vmem:[#allocation2 + $0x90] sm:$0xe]
      %v1024 = vld [vmem:[#allocation2 + $0x9c] sm:$0xe]
      %v1025 = vld [vmem:[#allocation2 + $0xa8] sm:$0xe]
      %v1026 = vld [vmem:[#allocation2 + $0xb4] sm:$0xe]
      %s1027 = scalar_lea.vmem [#allocation2], 12
      %v1028 = vld [vmem:[%s1027] sm:$0xf]
      %v1029 = vld [vmem:[%s1027 + $0x4] sm:$0xf]
      %v1030 = vld [vmem:[%s1027 + $0xc] sm:$0xf]
      %v1031 = vld [vmem:[%s1027 + $0x10] sm:$0xf]
      %v1032 = vld [vmem:[%s1027 + $0x18] sm:$0xf]
      %v1033 = vld [vmem:[%s1027 + $0x1c] sm:$0xf]
      %v1034 = vld [vmem:[%s1027 + $0x24] sm:$0xf]
      %v1035 = vld [vmem:[%s1027 + $0x28] sm:$0xf]
      %v1036 = vld [vmem:[%s1027 + $0x30] sm:$0xf]
      %v1037 = vld [vmem:[%s1027 + $0x34] sm:$0xf]
      %v1038 = vld [vmem:[%s1027 + $0x3c] sm:$0xf]
      %v1039 = vld [vmem:[%s1027 + $0x40] sm:$0xf]
      %v1040 = vld [vmem:[%s1027 + $0x48] sm:$0xf]
      %v1041 = vld [vmem:[%s1027 + $0x4c] sm:$0xf]
      %v1042 = vld [vmem:[%s1027 + $0x54] sm:$0xf]
      %v1043 = vld [vmem:[%s1027 + $0x58] sm:$0xf]
      %v1044 = vld [vmem:[%s1027 + $0x60] sm:$0xf]
      %v1045 = vld [vmem:[%s1027 + $0x64] sm:$0xf]
      %v1046 = vld [vmem:[%s1027 + $0x6c] sm:$0xf]
      %v1047 = vld [vmem:[%s1027 + $0x70] sm:$0xf]
      %v1048 = vld [vmem:[%s1027 + $0x78] sm:$0xf]
      %v1049 = vld [vmem:[%s1027 + $0x7c] sm:$0xf]
      %v1050 = vld [vmem:[%s1027 + $0x84] sm:$0xf]
      %v1051 = vld [vmem:[%s1027 + $0x88] sm:$0xf]
      %v1052 = vld [vmem:[%s1027 + $0x90] sm:$0xf]
      %v1053 = vld [vmem:[%s1027 + $0x94] sm:$0xf]
      %v1054 = vld [vmem:[%s1027 + $0x9c] sm:$0xf]
      %v1055 = vld [vmem:[%s1027 + $0xa0] sm:$0xf]
      %v1056 = vld [vmem:[%s1027 + $0xa8] sm:$0xf]
      %v1057 = vld [vmem:[%s1027 + $0xac] sm:$0xf]
      %v1058 = vld [vmem:[%s1027 + $0xb4] sm:$0xf]
      %v1059 = vld [vmem:[%s1027 + $0xb8] sm:$0xf]
      %v1060 = vld [vmem:[%s1027 + $0x8] sm:$0x1]
      %v1061 = vld [vmem:[%s1027 + $0x14] sm:$0x1]
      %v1062 = vld [vmem:[%s1027 + $0x20] sm:$0x1]
      %v1063 = vld [vmem:[%s1027 + $0x2c] sm:$0x1]
      %v1064 = vld [vmem:[%s1027 + $0x38] sm:$0x1]
      %v1065 = vld [vmem:[%s1027 + $0x44] sm:$0x1]
      %v1066 = vld [vmem:[%s1027 + $0x50] sm:$0x1]
      %v1067 = vld [vmem:[%s1027 + $0x5c] sm:$0x1]
      %v1068 = vld [vmem:[%s1027 + $0x68] sm:$0x1]
      %v1069 = vld [vmem:[%s1027 + $0x74] sm:$0x1]
      %v1070 = vld [vmem:[%s1027 + $0x80] sm:$0x1]
      %v1071 = vld [vmem:[%s1027 + $0x8c] sm:$0x1]
      %v1072 = vld [vmem:[%s1027 + $0x98] sm:$0x1]
      %v1073 = vld [vmem:[%s1027 + $0xa4] sm:$0x1]
      %v1074 = vld [vmem:[%s1027 + $0xb0] sm:$0x1]
      %v1075 = vld [vmem:[%s1027 + $0xbc] sm:$0x1]
      %v1076 = vld [vmem:[%s1027] sm:$0xe]
      %v1077 = vld [vmem:[%s1027 + $0xc] sm:$0xe]
      %v1078 = vld [vmem:[%s1027 + $0x18] sm:$0xe]
      %v1079 = vld [vmem:[%s1027 + $0x24] sm:$0xe]
      %v1080 = vld [vmem:[%s1027 + $0x30] sm:$0xe]
      %v1081 = vld [vmem:[%s1027 + $0x3c] sm:$0xe]
      %v1082 = vld [vmem:[%s1027 + $0x48] sm:$0xe]
      %v1083 = vld [vmem:[%s1027 + $0x54] sm:$0xe]
      %v1084 = vld [vmem:[%s1027 + $0x60] sm:$0xe]
      %v1085 = vld [vmem:[%s1027 + $0x6c] sm:$0xe]
      %v1086 = vld [vmem:[%s1027 + $0x78] sm:$0xe]
      %v1087 = vld [vmem:[%s1027 + $0x84] sm:$0xe]
      %v1088 = vld [vmem:[%s1027 + $0x90] sm:$0xe]
      %v1089 = vld [vmem:[%s1027 + $0x9c] sm:$0xe]
      %v1090 = vld [vmem:[%s1027 + $0xa8] sm:$0xe]
      %v1091 = vld [vmem:[%s1027 + $0xb4] sm:$0xe]
      %s1092 = scalar_lea.vmem [#allocation2], 24
      %v1093 = vld [vmem:[%s1092] sm:$0xf]
      %v1094 = vld [vmem:[%s1092 + $0x4] sm:$0xf]
      %v1095 = vld [vmem:[%s1092 + $0xc] sm:$0xf]
      %v1096 = vld [vmem:[%s1092 + $0x10] sm:$0xf]
      %v1097 = vld [vmem:[%s1092 + $0x18] sm:$0xf]
      %v1098 = vld [vmem:[%s1092 + $0x1c] sm:$0xf]
      %v1099 = vld [vmem:[%s1092 + $0x24] sm:$0xf]
      %v1100 = vld [vmem:[%s1092 + $0x28] sm:$0xf]
      %v1101 = vld [vmem:[%s1092 + $0x30] sm:$0xf]
      %v1102 = vld [vmem:[%s1092 + $0x34] sm:$0xf]
      %v1103 = vld [vmem:[%s1092 + $0x3c] sm:$0xf]
      %v1104 = vld [vmem:[%s1092 + $0x40] sm:$0xf]
      %v1105 = vld [vmem:[%s1092 + $0x48] sm:$0xf]
      %v1106 = vld [vmem:[%s1092 + $0x4c] sm:$0xf]
      %v1107 = vld [vmem:[%s1092 + $0x54] sm:$0xf]
      %v1108 = vld [vmem:[%s1092 + $0x58] sm:$0xf]
      %v1109 = vld [vmem:[%s1092 + $0x60] sm:$0xf]
      %v1110 = vld [vmem:[%s1092 + $0x64] sm:$0xf]
      %v1111 = vld [vmem:[%s1092 + $0x6c] sm:$0xf]
      %v1112 = vld [vmem:[%s1092 + $0x70] sm:$0xf]
      %v1113 = vld [vmem:[%s1092 + $0x78] sm:$0xf]
      %v1114 = vld [vmem:[%s1092 + $0x7c] sm:$0xf]
      %v1115 = vld [vmem:[%s1092 + $0x84] sm:$0xf]
      %v1116 = vld [vmem:[%s1092 + $0x88] sm:$0xf]
      %v1117 = vld [vmem:[%s1092 + $0x90] sm:$0xf]
      %v1118 = vld [vmem:[%s1092 + $0x94] sm:$0xf]
      %v1119 = vld [vmem:[%s1092 + $0x9c] sm:$0xf]
      %v1120 = vld [vmem:[%s1092 + $0xa0] sm:$0xf]
      %v1121 = vld [vmem:[%s1092 + $0xa8] sm:$0xf]
      %v1122 = vld [vmem:[%s1092 + $0xac] sm:$0xf]
      %v1123 = vld [vmem:[%s1092 + $0xb4] sm:$0xf]
      %v1124 = vld [vmem:[%s1092 + $0xb8] sm:$0xf]
      %v1125 = vld [vmem:[%s1092 + $0x8] sm:$0x1]
      %v1126 = vld [vmem:[%s1092 + $0x14] sm:$0x1]
      %v1127 = vld [vmem:[%s1092 + $0x20] sm:$0x1]
      %v1128 = vld [vmem:[%s1092 + $0x2c] sm:$0x1]
      %v1129 = vld [vmem:[%s1092 + $0x38] sm:$0x1]
      %v1130 = vld [vmem:[%s1092 + $0x44] sm:$0x1]
      %v1131 = vld [vmem:[%s1092 + $0x50] sm:$0x1]
      %v1132 = vld [vmem:[%s1092 + $0x5c] sm:$0x1]
      %v1133 = vld [vmem:[%s1092 + $0x68] sm:$0x1]
      %v1134 = vld [vmem:[%s1092 + $0x74] sm:$0x1]
      %v1135 = vld [vmem:[%s1092 + $0x80] sm:$0x1]
      %v1136 = vld [vmem:[%s1092 + $0x8c] sm:$0x1]
      %v1137 = vld [vmem:[%s1092 + $0x98] sm:$0x1]
      %v1138 = vld [vmem:[%s1092 + $0xa4] sm:$0x1]
      %v1139 = vld [vmem:[%s1092 + $0xb0] sm:$0x1]
      %v1140 = vld [vmem:[%s1092 + $0xbc] sm:$0x1]
      %v1141 = vld [vmem:[%s1092] sm:$0xe]
      %v1142 = vld [vmem:[%s1092 + $0xc] sm:$0xe]
      %v1143 = vld [vmem:[%s1092 + $0x18] sm:$0xe]
      %v1144 = vld [vmem:[%s1092 + $0x24] sm:$0xe]
      %v1145 = vld [vmem:[%s1092 + $0x30] sm:$0xe]
      %v1146 = vld [vmem:[%s1092 + $0x3c] sm:$0xe]
      %v1147 = vld [vmem:[%s1092 + $0x48] sm:$0xe]
      %v1148 = vld [vmem:[%s1092 + $0x54] sm:$0xe]
      %v1149 = vld [vmem:[%s1092 + $0x60] sm:$0xe]
      %v1150 = vld [vmem:[%s1092 + $0x6c] sm:$0xe]
      %v1151 = vld [vmem:[%s1092 + $0x78] sm:$0xe]
      %v1152 = vld [vmem:[%s1092 + $0x84] sm:$0xe]
      %v1153 = vld [vmem:[%s1092 + $0x90] sm:$0xe]
      %v1154 = vld [vmem:[%s1092 + $0x9c] sm:$0xe]
      %v1155 = vld [vmem:[%s1092 + $0xa8] sm:$0xe]
      %v1156 = vld [vmem:[%s1092 + $0xb4] sm:$0xe]
      %v1189 = vunpack.c.l.b16 %v963
      %v1190 = vunpack.c.l.b16 %v964
      %v1191 = vunpack.c.l.b16 %v965
      %v1192 = vunpack.c.l.b16 %v966
      %v1193 = vunpack.c.l.b16 %v967
      %v1194 = vunpack.c.l.b16 %v968
      %v1195 = vunpack.c.l.b16 %v969
      %v1196 = vunpack.c.l.b16 %v970
      %v1197 = vunpack.c.l.b16 %v971
      %v1198 = vunpack.c.l.b16 %v972
      %v1199 = vunpack.c.l.b16 %v973
      %v1200 = vunpack.c.l.b16 %v974
      %v1201 = vunpack.c.l.b16 %v975
      %v1202 = vunpack.c.l.b16 %v976
      %v1203 = vunpack.c.l.b16 %v977
      %v1204 = vunpack.c.l.b16 %v978
      %v1205 = vunpack.c.l.b16 %v979
      %v1206 = vunpack.c.l.b16 %v980
      %v1207 = vunpack.c.l.b16 %v981
      %v1208 = vunpack.c.l.b16 %v982
      %v1209 = vunpack.c.l.b16 %v983
      %v1210 = vunpack.c.l.b16 %v984
      %v1211 = vunpack.c.l.b16 %v985
      %v1212 = vunpack.c.l.b16 %v986
      %v1213 = vunpack.c.l.b16 %v987
      %v1214 = vunpack.c.l.b16 %v988
      %v1215 = vunpack.c.l.b16 %v989
      %v1216 = vunpack.c.l.b16 %v990
      %v1217 = vunpack.c.l.b16 %v991
      %v1218 = vunpack.c.l.b16 %v992
      %v1219 = vunpack.c.l.b16 %v993
      %v1220 = vunpack.c.l.b16 %v994
      %v1221 = vpack.c.b16 %v1190, %v1189
      %v1222 = vpack.c.b16 %v1192, %v1191
      %v1223 = vpack.c.b16 %v1194, %v1193
      %v1224 = vpack.c.b16 %v1196, %v1195
      %v1225 = vpack.c.b16 %v1198, %v1197
      %v1226 = vpack.c.b16 %v1200, %v1199
      %v1227 = vpack.c.b16 %v1202, %v1201
      %v1228 = vpack.c.b16 %v1204, %v1203
      %v1229 = vpack.c.b16 %v1206, %v1205
      %v1230 = vpack.c.b16 %v1208, %v1207
      %v1231 = vpack.c.b16 %v1210, %v1209
      %v1232 = vpack.c.b16 %v1212, %v1211
      %v1233 = vpack.c.b16 %v1214, %v1213
      %v1234 = vpack.c.b16 %v1216, %v1215
      %v1235 = vpack.c.b16 %v1218, %v1217
      %v1236 = vpack.c.b16 %v1220, %v1219
      %v1253 = vunpack.c.l.b16 %v995
      %v1254 = vunpack.c.l.b16 %v996
      %v1255 = vunpack.c.l.b16 %v997
      %v1256 = vunpack.c.l.b16 %v998
      %v1257 = vunpack.c.l.b16 %v999
      %v1258 = vunpack.c.l.b16 %v1000
      %v1259 = vunpack.c.l.b16 %v1001
      %v1260 = vunpack.c.l.b16 %v1002
      %v1261 = vunpack.c.l.b16 %v1003
      %v1262 = vunpack.c.l.b16 %v1004
      %v1263 = vunpack.c.l.b16 %v1005
      %v1264 = vunpack.c.l.b16 %v1006
      %v1265 = vunpack.c.l.b16 %v1007
      %v1266 = vunpack.c.l.b16 %v1008
      %v1267 = vunpack.c.l.b16 %v1009
      %v1268 = vunpack.c.l.b16 %v1010
      %v1269 = vpack.c.b16 %v1253, %v1253
      %v1270 = vpack.c.b16 %v1254, %v1254
      %v1271 = vpack.c.b16 %v1255, %v1255
      %v1272 = vpack.c.b16 %v1256, %v1256
      %v1273 = vpack.c.b16 %v1257, %v1257
      %v1274 = vpack.c.b16 %v1258, %v1258
      %v1275 = vpack.c.b16 %v1259, %v1259
      %v1276 = vpack.c.b16 %v1260, %v1260
      %v1277 = vpack.c.b16 %v1261, %v1261
      %v1278 = vpack.c.b16 %v1262, %v1262
      %v1279 = vpack.c.b16 %v1263, %v1263
      %v1280 = vpack.c.b16 %v1264, %v1264
      %v1281 = vpack.c.b16 %v1265, %v1265
      %v1282 = vpack.c.b16 %v1266, %v1266
      %v1283 = vpack.c.b16 %v1267, %v1267
      %v1284 = vpack.c.b16 %v1268, %v1268
      %vm1285 = vsmask.f32 7424
      %v1287 = vshrl.u32 %v1221, 16
      %v1289 = vshll.u32 %v1221, 16
      %v1291 = vrot.slane %v1289, 1
      %v1292 = vor.u32 %v1287, %v1291
      %v1294 = vshll.u32 %v1269, 16
      %v1296 = vrot.slane %v1294, 1
      %v1297 = vsel %vm1285, %v1292, %v1296
      %v1299 = vshrl.u32 %v1222, 16
      %v1301 = vshll.u32 %v1222, 16
      %v1303 = vrot.slane %v1301, 1
      %v1304 = vor.u32 %v1299, %v1303
      %v1306 = vshll.u32 %v1270, 16
      %v1308 = vrot.slane %v1306, 1
      %v1309 = vsel %vm1285, %v1304, %v1308
      %v1311 = vshrl.u32 %v1223, 16
      %v1313 = vshll.u32 %v1223, 16
      %v1315 = vrot.slane %v1313, 1
      %v1316 = vor.u32 %v1311, %v1315
      %v1318 = vshll.u32 %v1271, 16
      %v1320 = vrot.slane %v1318, 1
      %v1321 = vsel %vm1285, %v1316, %v1320
      %v1323 = vshrl.u32 %v1224, 16
      %v1325 = vshll.u32 %v1224, 16
      %v1327 = vrot.slane %v1325, 1
      %v1328 = vor.u32 %v1323, %v1327
      %v1330 = vshll.u32 %v1272, 16
      %v1332 = vrot.slane %v1330, 1
      %v1333 = vsel %vm1285, %v1328, %v1332
      %v1335 = vshrl.u32 %v1225, 16
      %v1337 = vshll.u32 %v1225, 16
      %v1339 = vrot.slane %v1337, 1
      %v1340 = vor.u32 %v1335, %v1339
      %v1342 = vshll.u32 %v1273, 16
      %v1344 = vrot.slane %v1342, 1
      %v1345 = vsel %vm1285, %v1340, %v1344
      %v1347 = vshrl.u32 %v1226, 16
      %v1349 = vshll.u32 %v1226, 16
      %v1351 = vrot.slane %v1349, 1
      %v1352 = vor.u32 %v1347, %v1351
      %v1354 = vshll.u32 %v1274, 16
      %v1356 = vrot.slane %v1354, 1
      %v1357 = vsel %vm1285, %v1352, %v1356
      %v1359 = vshrl.u32 %v1227, 16
      %v1361 = vshll.u32 %v1227, 16
      %v1363 = vrot.slane %v1361, 1
      %v1364 = vor.u32 %v1359, %v1363
      %v1366 = vshll.u32 %v1275, 16
      %v1368 = vrot.slane %v1366, 1
      %v1369 = vsel %vm1285, %v1364, %v1368
      %v1371 = vshrl.u32 %v1228, 16
      %v1373 = vshll.u32 %v1228, 16
      %v1375 = vrot.slane %v1373, 1
      %v1376 = vor.u32 %v1371, %v1375
      %v1378 = vshll.u32 %v1276, 16
      %v1380 = vrot.slane %v1378, 1
      %v1381 = vsel %vm1285, %v1376, %v1380
      %v1383 = vshrl.u32 %v1229, 16
      %v1385 = vshll.u32 %v1229, 16
      %v1387 = vrot.slane %v1385, 1
      %v1388 = vor.u32 %v1383, %v1387
      %v1390 = vshll.u32 %v1277, 16
      %v1392 = vrot.slane %v1390, 1
      %v1393 = vsel %vm1285, %v1388, %v1392
      %v1395 = vshrl.u32 %v1230, 16
      %v1397 = vshll.u32 %v1230, 16
      %v1399 = vrot.slane %v1397, 1
      %v1400 = vor.u32 %v1395, %v1399
      %v1402 = vshll.u32 %v1278, 16
      %v1404 = vrot.slane %v1402, 1
      %v1405 = vsel %vm1285, %v1400, %v1404
      %v1407 = vshrl.u32 %v1231, 16
      %v1409 = vshll.u32 %v1231, 16
      %v1411 = vrot.slane %v1409, 1
      %v1412 = vor.u32 %v1407, %v1411
      %v1414 = vshll.u32 %v1279, 16
      %v1416 = vrot.slane %v1414, 1
      %v1417 = vsel %vm1285, %v1412, %v1416
      %v1419 = vshrl.u32 %v1232, 16
      %v1421 = vshll.u32 %v1232, 16
      %v1423 = vrot.slane %v1421, 1
      %v1424 = vor.u32 %v1419, %v1423
      %v1426 = vshll.u32 %v1280, 16
      %v1428 = vrot.slane %v1426, 1
      %v1429 = vsel %vm1285, %v1424, %v1428
      %v1431 = vshrl.u32 %v1233, 16
      %v1433 = vshll.u32 %v1233, 16
      %v1435 = vrot.slane %v1433, 1
      %v1436 = vor.u32 %v1431, %v1435
      %v1438 = vshll.u32 %v1281, 16
      %v1440 = vrot.slane %v1438, 1
      %v1441 = vsel %vm1285, %v1436, %v1440
      %v1443 = vshrl.u32 %v1234, 16
      %v1445 = vshll.u32 %v1234, 16
      %v1447 = vrot.slane %v1445, 1
      %v1448 = vor.u32 %v1443, %v1447
      %v1450 = vshll.u32 %v1282, 16
      %v1452 = vrot.slane %v1450, 1
      %v1453 = vsel %vm1285, %v1448, %v1452
      %v1455 = vshrl.u32 %v1235, 16
      %v1457 = vshll.u32 %v1235, 16
      %v1459 = vrot.slane %v1457, 1
      %v1460 = vor.u32 %v1455, %v1459
      %v1462 = vshll.u32 %v1283, 16
      %v1464 = vrot.slane %v1462, 1
      %v1465 = vsel %vm1285, %v1460, %v1464
      %v1467 = vshrl.u32 %v1236, 16
      %v1469 = vshll.u32 %v1236, 16
      %v1471 = vrot.slane %v1469, 1
      %v1472 = vor.u32 %v1467, %v1471
      %v1474 = vshll.u32 %v1284, 16
      %v1476 = vrot.slane %v1474, 1
      %v1477 = vsel %vm1285, %v1472, %v1476
      %1478 = vrot.lane.b32.xlu0 %v1297, 4
      %v1479 = vpop.permute.xlu0 %1478
      %1480 = vrot.lane.b32.xlu0 %v1309, 4
      %v1481 = vpop.permute.xlu0 %1480
      %1482 = vrot.lane.b32.xlu0 %v1321, 4
      %v1483 = vpop.permute.xlu0 %1482
      %1484 = vrot.lane.b32.xlu0 %v1333, 4
      %v1485 = vpop.permute.xlu0 %1484
      %1486 = vrot.lane.b32.xlu0 %v1345, 4
      %v1487 = vpop.permute.xlu0 %1486
      %1488 = vrot.lane.b32.xlu0 %v1357, 4
      %v1489 = vpop.permute.xlu0 %1488
      %1490 = vrot.lane.b32.xlu0 %v1369, 4
      %v1491 = vpop.permute.xlu0 %1490
      %1492 = vrot.lane.b32.xlu0 %v1381, 4
      %v1493 = vpop.permute.xlu0 %1492
      %1494 = vrot.lane.b32.xlu0 %v1393, 4
      %v1495 = vpop.permute.xlu0 %1494
      %1496 = vrot.lane.b32.xlu0 %v1405, 4
      %v1497 = vpop.permute.xlu0 %1496
      %1498 = vrot.lane.b32.xlu0 %v1417, 4
      %v1499 = vpop.permute.xlu0 %1498
      %1500 = vrot.lane.b32.xlu0 %v1429, 4
      %v1501 = vpop.permute.xlu0 %1500
      %1502 = vrot.lane.b32.xlu0 %v1441, 4
      %v1503 = vpop.permute.xlu0 %1502
      %1504 = vrot.lane.b32.xlu0 %v1453, 4
      %v1505 = vpop.permute.xlu0 %1504
      %1506 = vrot.lane.b32.xlu0 %v1465, 4
      %v1507 = vpop.permute.xlu0 %1506
      %1508 = vrot.lane.b32.xlu0 %v1477, 4
      %v1509 = vpop.permute.xlu0 %1508
      %v1526 = vunpack.c.l.b16 %v1011
      %v1527 = vunpack.c.l.b16 %v1012
      %v1528 = vunpack.c.l.b16 %v1013
      %v1529 = vunpack.c.l.b16 %v1014
      %v1530 = vunpack.c.l.b16 %v1015
      %v1531 = vunpack.c.l.b16 %v1016
      %v1532 = vunpack.c.l.b16 %v1017
      %v1533 = vunpack.c.l.b16 %v1018
      %v1534 = vunpack.c.l.b16 %v1019
      %v1535 = vunpack.c.l.b16 %v1020
      %v1536 = vunpack.c.l.b16 %v1021
      %v1537 = vunpack.c.l.b16 %v1022
      %v1538 = vunpack.c.l.b16 %v1023
      %v1539 = vunpack.c.l.b16 %v1024
      %v1540 = vunpack.c.l.b16 %v1025
      %v1541 = vunpack.c.l.b16 %v1026
      %v1542 = vpack.c.b16 %v1190, %v1526
      %v1543 = vpack.c.b16 %v1192, %v1527
      %v1544 = vpack.c.b16 %v1194, %v1528
      %v1545 = vpack.c.b16 %v1196, %v1529
      %v1546 = vpack.c.b16 %v1198, %v1530
      %v1547 = vpack.c.b16 %v1200, %v1531
      %v1548 = vpack.c.b16 %v1202, %v1532
      %v1549 = vpack.c.b16 %v1204, %v1533
      %v1550 = vpack.c.b16 %v1206, %v1534
      %v1551 = vpack.c.b16 %v1208, %v1535
      %v1552 = vpack.c.b16 %v1210, %v1536
      %v1553 = vpack.c.b16 %v1212, %v1537
      %v1554 = vpack.c.b16 %v1214, %v1538
      %v1555 = vpack.c.b16 %v1216, %v1539
      %v1556 = vpack.c.b16 %v1218, %v1540
      %v1557 = vpack.c.b16 %v1220, %v1541
      %vm1558 = vcmask 1046528
      %v1559 = vrot.slane %v1542, 1
      %v1560 = vrot.slane %v1269, 1
      %v1561 = vsel %vm1558, %v1559, %v1560
      %v1562 = vrot.slane %v1543, 1
      %v1563 = vrot.slane %v1270, 1
      %v1564 = vsel %vm1558, %v1562, %v1563
      %v1565 = vrot.slane %v1544, 1
      %v1566 = vrot.slane %v1271, 1
      %v1567 = vsel %vm1558, %v1565, %v1566
      %v1568 = vrot.slane %v1545, 1
      %v1569 = vrot.slane %v1272, 1
      %v1570 = vsel %vm1558, %v1568, %v1569
      %v1571 = vrot.slane %v1546, 1
      %v1572 = vrot.slane %v1273, 1
      %v1573 = vsel %vm1558, %v1571, %v1572
      %v1574 = vrot.slane %v1547, 1
      %v1575 = vrot.slane %v1274, 1
      %v1576 = vsel %vm1558, %v1574, %v1575
      %v1577 = vrot.slane %v1548, 1
      %v1578 = vrot.slane %v1275, 1
      %v1579 = vsel %vm1558, %v1577, %v1578
      %v1580 = vrot.slane %v1549, 1
      %v1581 = vrot.slane %v1276, 1
      %v1582 = vsel %vm1558, %v1580, %v1581
      %v1583 = vrot.slane %v1550, 1
      %v1584 = vrot.slane %v1277, 1
      %v1585 = vsel %vm1558, %v1583, %v1584
      %v1586 = vrot.slane %v1551, 1
      %v1587 = vrot.slane %v1278, 1
      %v1588 = vsel %vm1558, %v1586, %v1587
      %v1589 = vrot.slane %v1552, 1
      %v1590 = vrot.slane %v1279, 1
      %v1591 = vsel %vm1558, %v1589, %v1590
      %v1592 = vrot.slane %v1553, 1
      %v1593 = vrot.slane %v1280, 1
      %v1594 = vsel %vm1558, %v1592, %v1593
      %v1595 = vrot.slane %v1554, 1
      %v1596 = vrot.slane %v1281, 1
      %v1597 = vsel %vm1558, %v1595, %v1596
      %v1598 = vrot.slane %v1555, 1
      %v1599 = vrot.slane %v1282, 1
      %v1600 = vsel %vm1558, %v1598, %v1599
      %v1601 = vrot.slane %v1556, 1
      %v1602 = vrot.slane %v1283, 1
      %v1603 = vsel %vm1558, %v1601, %v1602
      %v1604 = vrot.slane %v1557, 1
      %v1605 = vrot.slane %v1284, 1
      %v1606 = vsel %vm1558, %v1604, %v1605
      %1607 = vrot.lane.b32.xlu0 %v1561, 8
      %v1608 = vpop.permute.xlu0 %1607
      %1609 = vrot.lane.b32.xlu0 %v1564, 8
      %v1610 = vpop.permute.xlu0 %1609
      %1611 = vrot.lane.b32.xlu0 %v1567, 8
      %v1612 = vpop.permute.xlu0 %1611
      %1613 = vrot.lane.b32.xlu0 %v1570, 8
      %v1614 = vpop.permute.xlu0 %1613
      %1615 = vrot.lane.b32.xlu0 %v1573, 8
      %v1616 = vpop.permute.xlu0 %1615
      %1617 = vrot.lane.b32.xlu0 %v1576, 8
      %v1618 = vpop.permute.xlu0 %1617
      %1619 = vrot.lane.b32.xlu0 %v1579, 8
      %v1620 = vpop.permute.xlu0 %1619
      %1621 = vrot.lane.b32.xlu0 %v1582, 8
      %v1622 = vpop.permute.xlu0 %1621
      %1623 = vrot.lane.b32.xlu0 %v1585, 8
      %v1624 = vpop.permute.xlu0 %1623
      %1625 = vrot.lane.b32.xlu0 %v1588, 8
      %v1626 = vpop.permute.xlu0 %1625
      %1627 = vrot.lane.b32.xlu0 %v1591, 8
      %v1628 = vpop.permute.xlu0 %1627
      %1629 = vrot.lane.b32.xlu0 %v1594, 8
      %v1630 = vpop.permute.xlu0 %1629
      %1631 = vrot.lane.b32.xlu0 %v1597, 8
      %v1632 = vpop.permute.xlu0 %1631
      %1633 = vrot.lane.b32.xlu0 %v1600, 8
      %v1634 = vpop.permute.xlu0 %1633
      %1635 = vrot.lane.b32.xlu0 %v1603, 8
      %v1636 = vpop.permute.xlu0 %1635
      %1637 = vrot.lane.b32.xlu0 %v1606, 8
      %v1638 = vpop.permute.xlu0 %1637
      %v1671 = vunpack.c.l.b16 %v1028
      %v1672 = vunpack.c.l.b16 %v1029
      %v1673 = vunpack.c.l.b16 %v1030
      %v1674 = vunpack.c.l.b16 %v1031
      %v1675 = vunpack.c.l.b16 %v1032
      %v1676 = vunpack.c.l.b16 %v1033
      %v1677 = vunpack.c.l.b16 %v1034
      %v1678 = vunpack.c.l.b16 %v1035
      %v1679 = vunpack.c.l.b16 %v1036
      %v1680 = vunpack.c.l.b16 %v1037
      %v1681 = vunpack.c.l.b16 %v1038
      %v1682 = vunpack.c.l.b16 %v1039
      %v1683 = vunpack.c.l.b16 %v1040
      %v1684 = vunpack.c.l.b16 %v1041
      %v1685 = vunpack.c.l.b16 %v1042
      %v1686 = vunpack.c.l.b16 %v1043
      %v1687 = vunpack.c.l.b16 %v1044
      %v1688 = vunpack.c.l.b16 %v1045
      %v1689 = vunpack.c.l.b16 %v1046
      %v1690 = vunpack.c.l.b16 %v1047
      %v1691 = vunpack.c.l.b16 %v1048
      %v1692 = vunpack.c.l.b16 %v1049
      %v1693 = vunpack.c.l.b16 %v1050
      %v1694 = vunpack.c.l.b16 %v1051
      %v1695 = vunpack.c.l.b16 %v1052
      %v1696 = vunpack.c.l.b16 %v1053
      %v1697 = vunpack.c.l.b16 %v1054
      %v1698 = vunpack.c.l.b16 %v1055
      %v1699 = vunpack.c.l.b16 %v1056
      %v1700 = vunpack.c.l.b16 %v1057
      %v1701 = vunpack.c.l.b16 %v1058
      %v1702 = vunpack.c.l.b16 %v1059
      %v1703 = vpack.c.b16 %v1672, %v1671
      %v1704 = vpack.c.b16 %v1674, %v1673
      %v1705 = vpack.c.b16 %v1676, %v1675
      %v1706 = vpack.c.b16 %v1678, %v1677
      %v1707 = vpack.c.b16 %v1680, %v1679
      %v1708 = vpack.c.b16 %v1682, %v1681
      %v1709 = vpack.c.b16 %v1684, %v1683
      %v1710 = vpack.c.b16 %v1686, %v1685
      %v1711 = vpack.c.b16 %v1688, %v1687
      %v1712 = vpack.c.b16 %v1690, %v1689
      %v1713 = vpack.c.b16 %v1692, %v1691
      %v1714 = vpack.c.b16 %v1694, %v1693
      %v1715 = vpack.c.b16 %v1696, %v1695
      %v1716 = vpack.c.b16 %v1698, %v1697
      %v1717 = vpack.c.b16 %v1700, %v1699
      %v1718 = vpack.c.b16 %v1702, %v1701
      %1719 = vrot.lane.b32.xlu0 %v1703, 12
      %v1720 = vpop.permute.xlu0 %1719
      %1721 = vrot.lane.b32.xlu0 %v1704, 12
      %v1722 = vpop.permute.xlu0 %1721
      %1723 = vrot.lane.b32.xlu0 %v1705, 12
      %v1724 = vpop.permute.xlu0 %1723
      %1725 = vrot.lane.b32.xlu0 %v1706, 12
      %v1726 = vpop.permute.xlu0 %1725
      %1727 = vrot.lane.b32.xlu0 %v1707, 12
      %v1728 = vpop.permute.xlu0 %1727
      %1729 = vrot.lane.b32.xlu0 %v1708, 12
      %v1730 = vpop.permute.xlu0 %1729
      %1731 = vrot.lane.b32.xlu0 %v1709, 12
      %v1732 = vpop.permute.xlu0 %1731
      %1733 = vrot.lane.b32.xlu0 %v1710, 12
      %v1734 = vpop.permute.xlu0 %1733
      %1735 = vrot.lane.b32.xlu0 %v1711, 12
      %v1736 = vpop.permute.xlu0 %1735
      %1737 = vrot.lane.b32.xlu0 %v1712, 12
      %v1738 = vpop.permute.xlu0 %1737
      %1739 = vrot.lane.b32.xlu0 %v1713, 12
      %v1740 = vpop.permute.xlu0 %1739
      %1741 = vrot.lane.b32.xlu0 %v1714, 12
      %v1742 = vpop.permute.xlu0 %1741
      %1743 = vrot.lane.b32.xlu0 %v1715, 12
      %v1744 = vpop.permute.xlu0 %1743
      %1745 = vrot.lane.b32.xlu0 %v1716, 12
      %v1746 = vpop.permute.xlu0 %1745
      %1747 = vrot.lane.b32.xlu0 %v1717, 12
      %v1748 = vpop.permute.xlu0 %1747
      %1749 = vrot.lane.b32.xlu0 %v1718, 12
      %v1750 = vpop.permute.xlu0 %1749
      %v1767 = vunpack.c.l.b16 %v1060
      %v1768 = vunpack.c.l.b16 %v1061
      %v1769 = vunpack.c.l.b16 %v1062
      %v1770 = vunpack.c.l.b16 %v1063
      %v1771 = vunpack.c.l.b16 %v1064
      %v1772 = vunpack.c.l.b16 %v1065
      %v1773 = vunpack.c.l.b16 %v1066
      %v1774 = vunpack.c.l.b16 %v1067
      %v1775 = vunpack.c.l.b16 %v1068
      %v1776 = vunpack.c.l.b16 %v1069
      %v1777 = vunpack.c.l.b16 %v1070
      %v1778 = vunpack.c.l.b16 %v1071
      %v1779 = vunpack.c.l.b16 %v1072
      %v1780 = vunpack.c.l.b16 %v1073
      %v1781 = vunpack.c.l.b16 %v1074
      %v1782 = vunpack.c.l.b16 %v1075
      %v1783 = vpack.c.b16 %v1767, %v1767
      %v1784 = vpack.c.b16 %v1768, %v1768
      %v1785 = vpack.c.b16 %v1769, %v1769
      %v1786 = vpack.c.b16 %v1770, %v1770
      %v1787 = vpack.c.b16 %v1771, %v1771
      %v1788 = vpack.c.b16 %v1772, %v1772
      %v1789 = vpack.c.b16 %v1773, %v1773
      %v1790 = vpack.c.b16 %v1774, %v1774
      %v1791 = vpack.c.b16 %v1775, %v1775
      %v1792 = vpack.c.b16 %v1776, %v1776
      %v1793 = vpack.c.b16 %v1777, %v1777
      %v1794 = vpack.c.b16 %v1778, %v1778
      %v1795 = vpack.c.b16 %v1779, %v1779
      %v1796 = vpack.c.b16 %v1780, %v1780
      %v1797 = vpack.c.b16 %v1781, %v1781
      %v1798 = vpack.c.b16 %v1782, %v1782
      %v1800 = vshrl.u32 %v1703, 16
      %v1802 = vshll.u32 %v1703, 16
      %v1804 = vrot.slane %v1802, 1
      %v1805 = vor.u32 %v1800, %v1804
      %v1807 = vshll.u32 %v1783, 16
      %v1809 = vrot.slane %v1807, 1
      %v1810 = vsel %vm1285, %v1805, %v1809
      %v1812 = vshrl.u32 %v1704, 16
      %v1814 = vshll.u32 %v1704, 16
      %v1816 = vrot.slane %v1814, 1
      %v1817 = vor.u32 %v1812, %v1816
      %v1819 = vshll.u32 %v1784, 16
      %v1821 = vrot.slane %v1819, 1
      %v1822 = vsel %vm1285, %v1817, %v1821
      %v1824 = vshrl.u32 %v1705, 16
      %v1826 = vshll.u32 %v1705, 16
      %v1828 = vrot.slane %v1826, 1
      %v1829 = vor.u32 %v1824, %v1828
      %v1831 = vshll.u32 %v1785, 16
      %v1833 = vrot.slane %v1831, 1
      %v1834 = vsel %vm1285, %v1829, %v1833
      %v1836 = vshrl.u32 %v1706, 16
      %v1838 = vshll.u32 %v1706, 16
      %v1840 = vrot.slane %v1838, 1
      %v1841 = vor.u32 %v1836, %v1840
      %v1843 = vshll.u32 %v1786, 16
      %v1845 = vrot.slane %v1843, 1
      %v1846 = vsel %vm1285, %v1841, %v1845
      %v1848 = vshrl.u32 %v1707, 16
      %v1850 = vshll.u32 %v1707, 16
      %v1852 = vrot.slane %v1850, 1
      %v1853 = vor.u32 %v1848, %v1852
      %v1855 = vshll.u32 %v1787, 16
      %v1857 = vrot.slane %v1855, 1
      %v1858 = vsel %vm1285, %v1853, %v1857
      %v1860 = vshrl.u32 %v1708, 16
      %v1862 = vshll.u32 %v1708, 16
      %v1864 = vrot.slane %v1862, 1
      %v1865 = vor.u32 %v1860, %v1864
      %v1867 = vshll.u32 %v1788, 16
      %v1869 = vrot.slane %v1867, 1
      %v1870 = vsel %vm1285, %v1865, %v1869
      %v1872 = vshrl.u32 %v1709, 16
      %v1874 = vshll.u32 %v1709, 16
      %v1876 = vrot.slane %v1874, 1
      %v1877 = vor.u32 %v1872, %v1876
      %v1879 = vshll.u32 %v1789, 16
      %v1881 = vrot.slane %v1879, 1
      %v1882 = vsel %vm1285, %v1877, %v1881
      %v1884 = vshrl.u32 %v1710, 16
      %v1886 = vshll.u32 %v1710, 16
      %v1888 = vrot.slane %v1886, 1
      %v1889 = vor.u32 %v1884, %v1888
      %v1891 = vshll.u32 %v1790, 16
      %v1893 = vrot.slane %v1891, 1
      %v1894 = vsel %vm1285, %v1889, %v1893
      %v1896 = vshrl.u32 %v1711, 16
      %v1898 = vshll.u32 %v1711, 16
      %v1900 = vrot.slane %v1898, 1
      %v1901 = vor.u32 %v1896, %v1900
      %v1903 = vshll.u32 %v1791, 16
      %v1905 = vrot.slane %v1903, 1
      %v1906 = vsel %vm1285, %v1901, %v1905
      %v1908 = vshrl.u32 %v1712, 16
      %v1910 = vshll.u32 %v1712, 16
      %v1912 = vrot.slane %v1910, 1
      %v1913 = vor.u32 %v1908, %v1912
      %v1915 = vshll.u32 %v1792, 16
      %v1917 = vrot.slane %v1915, 1
      %v1918 = vsel %vm1285, %v1913, %v1917
      %v1920 = vshrl.u32 %v1713, 16
      %v1922 = vshll.u32 %v1713, 16
      %v1924 = vrot.slane %v1922, 1
      %v1925 = vor.u32 %v1920, %v1924
      %v1927 = vshll.u32 %v1793, 16
      %v1929 = vrot.slane %v1927, 1
      %v1930 = vsel %vm1285, %v1925, %v1929
      %v1932 = vshrl.u32 %v1714, 16
      %v1934 = vshll.u32 %v1714, 16
      %v1936 = vrot.slane %v1934, 1
      %v1937 = vor.u32 %v1932, %v1936
      %v1939 = vshll.u32 %v1794, 16
      %v1941 = vrot.slane %v1939, 1
      %v1942 = vsel %vm1285, %v1937, %v1941
      %v1944 = vshrl.u32 %v1715, 16
      %v1946 = vshll.u32 %v1715, 16
      %v1948 = vrot.slane %v1946, 1
      %v1949 = vor.u32 %v1944, %v1948
      %v1951 = vshll.u32 %v1795, 16
      %v1953 = vrot.slane %v1951, 1
      %v1954 = vsel %vm1285, %v1949, %v1953
      %v1956 = vshrl.u32 %v1716, 16
      %v1958 = vshll.u32 %v1716, 16
      %v1960 = vrot.slane %v1958, 1
      %v1961 = vor.u32 %v1956, %v1960
      %v1963 = vshll.u32 %v1796, 16
      %v1965 = vrot.slane %v1963, 1
      %v1966 = vsel %vm1285, %v1961, %v1965
      %v1968 = vshrl.u32 %v1717, 16
      %v1970 = vshll.u32 %v1717, 16
      %v1972 = vrot.slane %v1970, 1
      %v1973 = vor.u32 %v1968, %v1972
      %v1975 = vshll.u32 %v1797, 16
      %v1977 = vrot.slane %v1975, 1
      %v1978 = vsel %vm1285, %v1973, %v1977
      %v1980 = vshrl.u32 %v1718, 16
      %v1982 = vshll.u32 %v1718, 16
      %v1984 = vrot.slane %v1982, 1
      %v1985 = vor.u32 %v1980, %v1984
      %v1987 = vshll.u32 %v1798, 16
      %v1989 = vrot.slane %v1987, 1
      %v1990 = vsel %vm1285, %v1985, %v1989
      %1991 = vrot.lane.b32.xlu0 %v1810, 16
      %v1992 = vpop.permute.xlu0 %1991
      %1993 = vrot.lane.b32.xlu0 %v1822, 16
      %v1994 = vpop.permute.xlu0 %1993
      %1995 = vrot.lane.b32.xlu0 %v1834, 16
      %v1996 = vpop.permute.xlu0 %1995
      %1997 = vrot.lane.b32.xlu0 %v1846, 16
      %v1998 = vpop.permute.xlu0 %1997
      %1999 = vrot.lane.b32.xlu0 %v1858, 16
      %v2000 = vpop.permute.xlu0 %1999
      %2001 = vrot.lane.b32.xlu0 %v1870, 16
      %v2002 = vpop.permute.xlu0 %2001
      %2003 = vrot.lane.b32.xlu0 %v1882, 16
      %v2004 = vpop.permute.xlu0 %2003
      %2005 = vrot.lane.b32.xlu0 %v1894, 16
      %v2006 = vpop.permute.xlu0 %2005
      %2007 = vrot.lane.b32.xlu0 %v1906, 16
      %v2008 = vpop.permute.xlu0 %2007
      %2009 = vrot.lane.b32.xlu0 %v1918, 16
      %v2010 = vpop.permute.xlu0 %2009
      %2011 = vrot.lane.b32.xlu0 %v1930, 16
      %v2012 = vpop.permute.xlu0 %2011
      %2013 = vrot.lane.b32.xlu0 %v1942, 16
      %v2014 = vpop.permute.xlu0 %2013
      %2015 = vrot.lane.b32.xlu0 %v1954, 16
      %v2016 = vpop.permute.xlu0 %2015
      %2017 = vrot.lane.b32.xlu0 %v1966, 16
      %v2018 = vpop.permute.xlu0 %2017
      %2019 = vrot.lane.b32.xlu0 %v1978, 16
      %v2020 = vpop.permute.xlu0 %2019
      %2021 = vrot.lane.b32.xlu0 %v1990, 16
      %v2022 = vpop.permute.xlu0 %2021
      %v2039 = vunpack.c.l.b16 %v1076
      %v2040 = vunpack.c.l.b16 %v1077
      %v2041 = vunpack.c.l.b16 %v1078
      %v2042 = vunpack.c.l.b16 %v1079
      %v2043 = vunpack.c.l.b16 %v1080
      %v2044 = vunpack.c.l.b16 %v1081
      %v2045 = vunpack.c.l.b16 %v1082
      %v2046 = vunpack.c.l.b16 %v1083
      %v2047 = vunpack.c.l.b16 %v1084
      %v2048 = vunpack.c.l.b16 %v1085
      %v2049 = vunpack.c.l.b16 %v1086
      %v2050 = vunpack.c.l.b16 %v1087
      %v2051 = vunpack.c.l.b16 %v1088
      %v2052 = vunpack.c.l.b16 %v1089
      %v2053 = vunpack.c.l.b16 %v1090
      %v2054 = vunpack.c.l.b16 %v1091
      %v2055 = vpack.c.b16 %v1672, %v2039
      %v2056 = vpack.c.b16 %v1674, %v2040
      %v2057 = vpack.c.b16 %v1676, %v2041
      %v2058 = vpack.c.b16 %v1678, %v2042
      %v2059 = vpack.c.b16 %v1680, %v2043
      %v2060 = vpack.c.b16 %v1682, %v2044
      %v2061 = vpack.c.b16 %v1684, %v2045
      %v2062 = vpack.c.b16 %v1686, %v2046
      %v2063 = vpack.c.b16 %v1688, %v2047
      %v2064 = vpack.c.b16 %v1690, %v2048
      %v2065 = vpack.c.b16 %v1692, %v2049
      %v2066 = vpack.c.b16 %v1694, %v2050
      %v2067 = vpack.c.b16 %v1696, %v2051
      %v2068 = vpack.c.b16 %v1698, %v2052
      %v2069 = vpack.c.b16 %v1700, %v2053
      %v2070 = vpack.c.b16 %v1702, %v2054
      %v2071 = vrot.slane %v2055, 1
      %v2072 = vrot.slane %v1783, 1
      %v2073 = vsel %vm1558, %v2071, %v2072
      %v2074 = vrot.slane %v2056, 1
      %v2075 = vrot.slane %v1784, 1
      %v2076 = vsel %vm1558, %v2074, %v2075
      %v2077 = vrot.slane %v2057, 1
      %v2078 = vrot.slane %v1785, 1
      %v2079 = vsel %vm1558, %v2077, %v2078
      %v2080 = vrot.slane %v2058, 1
      %v2081 = vrot.slane %v1786, 1
      %v2082 = vsel %vm1558, %v2080, %v2081
      %v2083 = vrot.slane %v2059, 1
      %v2084 = vrot.slane %v1787, 1
      %v2085 = vsel %vm1558, %v2083, %v2084
      %v2086 = vrot.slane %v2060, 1
      %v2087 = vrot.slane %v1788, 1
      %v2088 = vsel %vm1558, %v2086, %v2087
      %v2089 = vrot.slane %v2061, 1
      %v2090 = vrot.slane %v1789, 1
      %v2091 = vsel %vm1558, %v2089, %v2090
      %v2092 = vrot.slane %v2062, 1
      %v2093 = vrot.slane %v1790, 1
      %v2094 = vsel %vm1558, %v2092, %v2093
      %v2095 = vrot.slane %v2063, 1
      %v2096 = vrot.slane %v1791, 1
      %v2097 = vsel %vm1558, %v2095, %v2096
      %v2098 = vrot.slane %v2064, 1
      %v2099 = vrot.slane %v1792, 1
      %v2100 = vsel %vm1558, %v2098, %v2099
      %v2101 = vrot.slane %v2065, 1
      %v2102 = vrot.slane %v1793, 1
      %v2103 = vsel %vm1558, %v2101, %v2102
      %v2104 = vrot.slane %v2066, 1
      %v2105 = vrot.slane %v1794, 1
      %v2106 = vsel %vm1558, %v2104, %v2105
      %v2107 = vrot.slane %v2067, 1
      %v2108 = vrot.slane %v1795, 1
      %v2109 = vsel %vm1558, %v2107, %v2108
      %v2110 = vrot.slane %v2068, 1
      %v2111 = vrot.slane %v1796, 1
      %v2112 = vsel %vm1558, %v2110, %v2111
      %v2113 = vrot.slane %v2069, 1
      %v2114 = vrot.slane %v1797, 1
      %v2115 = vsel %vm1558, %v2113, %v2114
      %v2116 = vrot.slane %v2070, 1
      %v2117 = vrot.slane %v1798, 1
      %v2118 = vsel %vm1558, %v2116, %v2117
      %2119 = vrot.lane.b32.xlu0 %v2073, 20
      %v2120 = vpop.permute.xlu0 %2119
      %2121 = vrot.lane.b32.xlu0 %v2076, 20
      %v2122 = vpop.permute.xlu0 %2121
      %2123 = vrot.lane.b32.xlu0 %v2079, 20
      %v2124 = vpop.permute.xlu0 %2123
      %2125 = vrot.lane.b32.xlu0 %v2082, 20
      %v2126 = vpop.permute.xlu0 %2125
      %2127 = vrot.lane.b32.xlu0 %v2085, 20
      %v2128 = vpop.permute.xlu0 %2127
      %2129 = vrot.lane.b32.xlu0 %v2088, 20
      %v2130 = vpop.permute.xlu0 %2129
      %2131 = vrot.lane.b32.xlu0 %v2091, 20
      %v2132 = vpop.permute.xlu0 %2131
      %2133 = vrot.lane.b32.xlu0 %v2094, 20
      %v2134 = vpop.permute.xlu0 %2133
      %2135 = vrot.lane.b32.xlu0 %v2097, 20
      %v2136 = vpop.permute.xlu0 %2135
      %2137 = vrot.lane.b32.xlu0 %v2100, 20
      %v2138 = vpop.permute.xlu0 %2137
      %2139 = vrot.lane.b32.xlu0 %v2103, 20
      %v2140 = vpop.permute.xlu0 %2139
      %2141 = vrot.lane.b32.xlu0 %v2106, 20
      %v2142 = vpop.permute.xlu0 %2141
      %2143 = vrot.lane.b32.xlu0 %v2109, 20
      %v2144 = vpop.permute.xlu0 %2143
      %2145 = vrot.lane.b32.xlu0 %v2112, 20
      %v2146 = vpop.permute.xlu0 %2145
      %2147 = vrot.lane.b32.xlu0 %v2115, 20
      %v2148 = vpop.permute.xlu0 %2147
      %2149 = vrot.lane.b32.xlu0 %v2118, 20
      %v2150 = vpop.permute.xlu0 %2149
      %v2183 = vunpack.c.l.b16 %v1093
      %v2184 = vunpack.c.l.b16 %v1094
      %v2185 = vunpack.c.l.b16 %v1095
      %v2186 = vunpack.c.l.b16 %v1096
      %v2187 = vunpack.c.l.b16 %v1097
      %v2188 = vunpack.c.l.b16 %v1098
      %v2189 = vunpack.c.l.b16 %v1099
      %v2190 = vunpack.c.l.b16 %v1100
      %v2191 = vunpack.c.l.b16 %v1101
      %v2192 = vunpack.c.l.b16 %v1102
      %v2193 = vunpack.c.l.b16 %v1103
      %v2194 = vunpack.c.l.b16 %v1104
      %v2195 = vunpack.c.l.b16 %v1105
      %v2196 = vunpack.c.l.b16 %v1106
      %v2197 = vunpack.c.l.b16 %v1107
      %v2198 = vunpack.c.l.b16 %v1108
      %v2199 = vunpack.c.l.b16 %v1109
      %v2200 = vunpack.c.l.b16 %v1110
      %v2201 = vunpack.c.l.b16 %v1111
      %v2202 = vunpack.c.l.b16 %v1112
      %v2203 = vunpack.c.l.b16 %v1113
      %v2204 = vunpack.c.l.b16 %v1114
      %v2205 = vunpack.c.l.b16 %v1115
      %v2206 = vunpack.c.l.b16 %v1116
      %v2207 = vunpack.c.l.b16 %v1117
      %v2208 = vunpack.c.l.b16 %v1118
      %v2209 = vunpack.c.l.b16 %v1119
      %v2210 = vunpack.c.l.b16 %v1120
      %v2211 = vunpack.c.l.b16 %v1121
      %v2212 = vunpack.c.l.b16 %v1122
      %v2213 = vunpack.c.l.b16 %v1123
      %v2214 = vunpack.c.l.b16 %v1124
      %v2215 = vpack.c.b16 %v2184, %v2183
      %v2216 = vpack.c.b16 %v2186, %v2185
      %v2217 = vpack.c.b16 %v2188, %v2187
      %v2218 = vpack.c.b16 %v2190, %v2189
      %v2219 = vpack.c.b16 %v2192, %v2191
      %v2220 = vpack.c.b16 %v2194, %v2193
      %v2221 = vpack.c.b16 %v2196, %v2195
      %v2222 = vpack.c.b16 %v2198, %v2197
      %v2223 = vpack.c.b16 %v2200, %v2199
      %v2224 = vpack.c.b16 %v2202, %v2201
      %v2225 = vpack.c.b16 %v2204, %v2203
      %v2226 = vpack.c.b16 %v2206, %v2205
      %v2227 = vpack.c.b16 %v2208, %v2207
      %v2228 = vpack.c.b16 %v2210, %v2209
      %v2229 = vpack.c.b16 %v2212, %v2211
      %v2230 = vpack.c.b16 %v2214, %v2213
      %2231 = vrot.lane.b32.xlu0 %v2215, 24
      %v2232 = vpop.permute.xlu0 %2231
      %2233 = vrot.lane.b32.xlu0 %v2216, 24
      %v2234 = vpop.permute.xlu0 %2233
      %2235 = vrot.lane.b32.xlu0 %v2217, 24
      %v2236 = vpop.permute.xlu0 %2235
      %2237 = vrot.lane.b32.xlu0 %v2218, 24
      %v2238 = vpop.permute.xlu0 %2237
      %2239 = vrot.lane.b32.xlu0 %v2219, 24
      %v2240 = vpop.permute.xlu0 %2239
      %2241 = vrot.lane.b32.xlu0 %v2220, 24
      %v2242 = vpop.permute.xlu0 %2241
      %2243 = vrot.lane.b32.xlu0 %v2221, 24
      %v2244 = vpop.permute.xlu0 %2243
      %2245 = vrot.lane.b32.xlu0 %v2222, 24
      %v2246 = vpop.permute.xlu0 %2245
      %2247 = vrot.lane.b32.xlu0 %v2223, 24
      %v2248 = vpop.permute.xlu0 %2247
      %2249 = vrot.lane.b32.xlu0 %v2224, 24
      %v2250 = vpop.permute.xlu0 %2249
      %2251 = vrot.lane.b32.xlu0 %v2225, 24
      %v2252 = vpop.permute.xlu0 %2251
      %2253 = vrot.lane.b32.xlu0 %v2226, 24
      %v2254 = vpop.permute.xlu0 %2253
      %2255 = vrot.lane.b32.xlu0 %v2227, 24
      %v2256 = vpop.permute.xlu0 %2255
      %2257 = vrot.lane.b32.xlu0 %v2228, 24
      %v2258 = vpop.permute.xlu0 %2257
      %2259 = vrot.lane.b32.xlu0 %v2229, 24
      %v2260 = vpop.permute.xlu0 %2259
      %2261 = vrot.lane.b32.xlu0 %v2230, 24
      %v2262 = vpop.permute.xlu0 %2261
      %v2279 = vunpack.c.l.b16 %v1125
      %v2280 = vunpack.c.l.b16 %v1126
      %v2281 = vunpack.c.l.b16 %v1127
      %v2282 = vunpack.c.l.b16 %v1128
      %v2283 = vunpack.c.l.b16 %v1129
      %v2284 = vunpack.c.l.b16 %v1130
      %v2285 = vunpack.c.l.b16 %v1131
      %v2286 = vunpack.c.l.b16 %v1132
      %v2287 = vunpack.c.l.b16 %v1133
      %v2288 = vunpack.c.l.b16 %v1134
      %v2289 = vunpack.c.l.b16 %v1135
      %v2290 = vunpack.c.l.b16 %v1136
      %v2291 = vunpack.c.l.b16 %v1137
      %v2292 = vunpack.c.l.b16 %v1138
      %v2293 = vunpack.c.l.b16 %v1139
      %v2294 = vunpack.c.l.b16 %v1140
      %v2295 = vpack.c.b16 %v2279, %v2279
      %v2296 = vpack.c.b16 %v2280, %v2280
      %v2297 = vpack.c.b16 %v2281, %v2281
      %v2298 = vpack.c.b16 %v2282, %v2282
      %v2299 = vpack.c.b16 %v2283, %v2283
      %v2300 = vpack.c.b16 %v2284, %v2284
      %v2301 = vpack.c.b16 %v2285, %v2285
      %v2302 = vpack.c.b16 %v2286, %v2286
      %v2303 = vpack.c.b16 %v2287, %v2287
      %v2304 = vpack.c.b16 %v2288, %v2288
      %v2305 = vpack.c.b16 %v2289, %v2289
      %v2306 = vpack.c.b16 %v2290, %v2290
      %v2307 = vpack.c.b16 %v2291, %v2291
      %v2308 = vpack.c.b16 %v2292, %v2292
      %v2309 = vpack.c.b16 %v2293, %v2293
      %v2310 = vpack.c.b16 %v2294, %v2294
      %v2312 = vshrl.u32 %v2215, 16
      %v2314 = vshll.u32 %v2215, 16
      %v2316 = vrot.slane %v2314, 1
      %v2317 = vor.u32 %v2312, %v2316
      %v2319 = vshll.u32 %v2295, 16
      %v2321 = vrot.slane %v2319, 1
      %v2322 = vsel %vm1285, %v2317, %v2321
      %v2324 = vshrl.u32 %v2216, 16
      %v2326 = vshll.u32 %v2216, 16
      %v2328 = vrot.slane %v2326, 1
      %v2329 = vor.u32 %v2324, %v2328
      %v2331 = vshll.u32 %v2296, 16
      %v2333 = vrot.slane %v2331, 1
      %v2334 = vsel %vm1285, %v2329, %v2333
      %v2336 = vshrl.u32 %v2217, 16
      %v2338 = vshll.u32 %v2217, 16
      %v2340 = vrot.slane %v2338, 1
      %v2341 = vor.u32 %v2336, %v2340
      %v2343 = vshll.u32 %v2297, 16
      %v2345 = vrot.slane %v2343, 1
      %v2346 = vsel %vm1285, %v2341, %v2345
      %v2348 = vshrl.u32 %v2218, 16
      %v2350 = vshll.u32 %v2218, 16
      %v2352 = vrot.slane %v2350, 1
      %v2353 = vor.u32 %v2348, %v2352
      %v2355 = vshll.u32 %v2298, 16
      %v2357 = vrot.slane %v2355, 1
      %v2358 = vsel %vm1285, %v2353, %v2357
      %v2360 = vshrl.u32 %v2219, 16
      %v2362 = vshll.u32 %v2219, 16
      %v2364 = vrot.slane %v2362, 1
      %v2365 = vor.u32 %v2360, %v2364
      %v2367 = vshll.u32 %v2299, 16
      %v2369 = vrot.slane %v2367, 1
      %v2370 = vsel %vm1285, %v2365, %v2369
      %v2372 = vshrl.u32 %v2220, 16
      %v2374 = vshll.u32 %v2220, 16
      %v2376 = vrot.slane %v2374, 1
      %v2377 = vor.u32 %v2372, %v2376
      %v2379 = vshll.u32 %v2300, 16
      %v2381 = vrot.slane %v2379, 1
      %v2382 = vsel %vm1285, %v2377, %v2381
      %v2384 = vshrl.u32 %v2221, 16
      %v2386 = vshll.u32 %v2221, 16
      %v2388 = vrot.slane %v2386, 1
      %v2389 = vor.u32 %v2384, %v2388
      %v2391 = vshll.u32 %v2301, 16
      %v2393 = vrot.slane %v2391, 1
      %v2394 = vsel %vm1285, %v2389, %v2393
      %v2396 = vshrl.u32 %v2222, 16
      %v2398 = vshll.u32 %v2222, 16
      %v2400 = vrot.slane %v2398, 1
      %v2401 = vor.u32 %v2396, %v2400
      %v2403 = vshll.u32 %v2302, 16
      %v2405 = vrot.slane %v2403, 1
      %v2406 = vsel %vm1285, %v2401, %v2405
      %v2408 = vshrl.u32 %v2223, 16
      %v2410 = vshll.u32 %v2223, 16
      %v2412 = vrot.slane %v2410, 1
      %v2413 = vor.u32 %v2408, %v2412
      %v2415 = vshll.u32 %v2303, 16
      %v2417 = vrot.slane %v2415, 1
      %v2418 = vsel %vm1285, %v2413, %v2417
      %v2420 = vshrl.u32 %v2224, 16
      %v2422 = vshll.u32 %v2224, 16
      %v2424 = vrot.slane %v2422, 1
      %v2425 = vor.u32 %v2420, %v2424
      %v2427 = vshll.u32 %v2304, 16
      %v2429 = vrot.slane %v2427, 1
      %v2430 = vsel %vm1285, %v2425, %v2429
      %v2432 = vshrl.u32 %v2225, 16
      %v2434 = vshll.u32 %v2225, 16
      %v2436 = vrot.slane %v2434, 1
      %v2437 = vor.u32 %v2432, %v2436
      %v2439 = vshll.u32 %v2305, 16
      %v2441 = vrot.slane %v2439, 1
      %v2442 = vsel %vm1285, %v2437, %v2441
      %v2444 = vshrl.u32 %v2226, 16
      %v2446 = vshll.u32 %v2226, 16
      %v2448 = vrot.slane %v2446, 1
      %v2449 = vor.u32 %v2444, %v2448
      %v2451 = vshll.u32 %v2306, 16
      %v2453 = vrot.slane %v2451, 1
      %v2454 = vsel %vm1285, %v2449, %v2453
      %v2456 = vshrl.u32 %v2227, 16
      %v2458 = vshll.u32 %v2227, 16
      %v2460 = vrot.slane %v2458, 1
      %v2461 = vor.u32 %v2456, %v2460
      %v2463 = vshll.u32 %v2307, 16
      %v2465 = vrot.slane %v2463, 1
      %v2466 = vsel %vm1285, %v2461, %v2465
      %v2468 = vshrl.u32 %v2228, 16
      %v2470 = vshll.u32 %v2228, 16
      %v2472 = vrot.slane %v2470, 1
      %v2473 = vor.u32 %v2468, %v2472
      %v2475 = vshll.u32 %v2308, 16
      %v2477 = vrot.slane %v2475, 1
      %v2478 = vsel %vm1285, %v2473, %v2477
      %v2480 = vshrl.u32 %v2229, 16
      %v2482 = vshll.u32 %v2229, 16
      %v2484 = vrot.slane %v2482, 1
      %v2485 = vor.u32 %v2480, %v2484
      %v2487 = vshll.u32 %v2309, 16
      %v2489 = vrot.slane %v2487, 1
      %v2490 = vsel %vm1285, %v2485, %v2489
      %v2492 = vshrl.u32 %v2230, 16
      %v2494 = vshll.u32 %v2230, 16
      %v2496 = vrot.slane %v2494, 1
      %v2497 = vor.u32 %v2492, %v2496
      %v2499 = vshll.u32 %v2310, 16
      %v2501 = vrot.slane %v2499, 1
      %v2502 = vsel %vm1285, %v2497, %v2501
      %2503 = vrot.lane.b32.xlu0 %v2322, 28
      %v2504 = vpop.permute.xlu0 %2503
      %2505 = vrot.lane.b32.xlu0 %v2334, 28
      %v2506 = vpop.permute.xlu0 %2505
      %2507 = vrot.lane.b32.xlu0 %v2346, 28
      %v2508 = vpop.permute.xlu0 %2507
      %2509 = vrot.lane.b32.xlu0 %v2358, 28
      %v2510 = vpop.permute.xlu0 %2509
      %2511 = vrot.lane.b32.xlu0 %v2370, 28
      %v2512 = vpop.permute.xlu0 %2511
      %2513 = vrot.lane.b32.xlu0 %v2382, 28
      %v2514 = vpop.permute.xlu0 %2513
      %2515 = vrot.lane.b32.xlu0 %v2394, 28
      %v2516 = vpop.permute.xlu0 %2515
      %2517 = vrot.lane.b32.xlu0 %v2406, 28
      %v2518 = vpop.permute.xlu0 %2517
      %2519 = vrot.lane.b32.xlu0 %v2418, 28
      %v2520 = vpop.permute.xlu0 %2519
      %2521 = vrot.lane.b32.xlu0 %v2430, 28
      %v2522 = vpop.permute.xlu0 %2521
      %2523 = vrot.lane.b32.xlu0 %v2442, 28
      %v2524 = vpop.permute.xlu0 %2523
      %2525 = vrot.lane.b32.xlu0 %v2454, 28
      %v2526 = vpop.permute.xlu0 %2525
      %2527 = vrot.lane.b32.xlu0 %v2466, 28
      %v2528 = vpop.permute.xlu0 %2527
      %2529 = vrot.lane.b32.xlu0 %v2478, 28
      %v2530 = vpop.permute.xlu0 %2529
      %2531 = vrot.lane.b32.xlu0 %v2490, 28
      %v2532 = vpop.permute.xlu0 %2531
      %2533 = vrot.lane.b32.xlu0 %v2502, 28
      %v2534 = vpop.permute.xlu0 %2533
      %v2551 = vunpack.c.l.b16 %v1141
      %v2552 = vunpack.c.l.b16 %v1142
      %v2553 = vunpack.c.l.b16 %v1143
      %v2554 = vunpack.c.l.b16 %v1144
      %v2555 = vunpack.c.l.b16 %v1145
      %v2556 = vunpack.c.l.b16 %v1146
      %v2557 = vunpack.c.l.b16 %v1147
      %v2558 = vunpack.c.l.b16 %v1148
      %v2559 = vunpack.c.l.b16 %v1149
      %v2560 = vunpack.c.l.b16 %v1150
      %v2561 = vunpack.c.l.b16 %v1151
      %v2562 = vunpack.c.l.b16 %v1152
      %v2563 = vunpack.c.l.b16 %v1153
      %v2564 = vunpack.c.l.b16 %v1154
      %v2565 = vunpack.c.l.b16 %v1155
      %v2566 = vunpack.c.l.b16 %v1156
      %v2567 = vpack.c.b16 %v2184, %v2551
      %v2568 = vpack.c.b16 %v2186, %v2552
      %v2569 = vpack.c.b16 %v2188, %v2553
      %v2570 = vpack.c.b16 %v2190, %v2554
      %v2571 = vpack.c.b16 %v2192, %v2555
      %v2572 = vpack.c.b16 %v2194, %v2556
      %v2573 = vpack.c.b16 %v2196, %v2557
      %v2574 = vpack.c.b16 %v2198, %v2558
      %v2575 = vpack.c.b16 %v2200, %v2559
      %v2576 = vpack.c.b16 %v2202, %v2560
      %v2577 = vpack.c.b16 %v2204, %v2561
      %v2578 = vpack.c.b16 %v2206, %v2562
      %v2579 = vpack.c.b16 %v2208, %v2563
      %v2580 = vpack.c.b16 %v2210, %v2564
      %v2581 = vpack.c.b16 %v2212, %v2565
      %v2582 = vpack.c.b16 %v2214, %v2566
      %v2583 = vrot.slane %v2567, 1
      %v2584 = vrot.slane %v2295, 1
      %v2585 = vsel %vm1558, %v2583, %v2584
      %v2586 = vrot.slane %v2568, 1
      %v2587 = vrot.slane %v2296, 1
      %v2588 = vsel %vm1558, %v2586, %v2587
      %v2589 = vrot.slane %v2569, 1
      %v2590 = vrot.slane %v2297, 1
      %v2591 = vsel %vm1558, %v2589, %v2590
      %v2592 = vrot.slane %v2570, 1
      %v2593 = vrot.slane %v2298, 1
      %v2594 = vsel %vm1558, %v2592, %v2593
      %v2595 = vrot.slane %v2571, 1
      %v2596 = vrot.slane %v2299, 1
      %v2597 = vsel %vm1558, %v2595, %v2596
      %v2598 = vrot.slane %v2572, 1
      %v2599 = vrot.slane %v2300, 1
      %v2600 = vsel %vm1558, %v2598, %v2599
      %v2601 = vrot.slane %v2573, 1
      %v2602 = vrot.slane %v2301, 1
      %v2603 = vsel %vm1558, %v2601, %v2602
      %v2604 = vrot.slane %v2574, 1
      %v2605 = vrot.slane %v2302, 1
      %v2606 = vsel %vm1558, %v2604, %v2605
      %v2607 = vrot.slane %v2575, 1
      %v2608 = vrot.slane %v2303, 1
      %v2609 = vsel %vm1558, %v2607, %v2608
      %v2610 = vrot.slane %v2576, 1
      %v2611 = vrot.slane %v2304, 1
      %v2612 = vsel %vm1558, %v2610, %v2611
      %v2613 = vrot.slane %v2577, 1
      %v2614 = vrot.slane %v2305, 1
      %v2615 = vsel %vm1558, %v2613, %v2614
      %v2616 = vrot.slane %v2578, 1
      %v2617 = vrot.slane %v2306, 1
      %v2618 = vsel %vm1558, %v2616, %v2617
      %v2619 = vrot.slane %v2579, 1
      %v2620 = vrot.slane %v2307, 1
      %v2621 = vsel %vm1558, %v2619, %v2620
      %v2622 = vrot.slane %v2580, 1
      %v2623 = vrot.slane %v2308, 1
      %v2624 = vsel %vm1558, %v2622, %v2623
      %v2625 = vrot.slane %v2581, 1
      %v2626 = vrot.slane %v2309, 1
      %v2627 = vsel %vm1558, %v2625, %v2626
      %v2628 = vrot.slane %v2582, 1
      %v2629 = vrot.slane %v2310, 1
      %v2630 = vsel %vm1558, %v2628, %v2629
      %2631 = vrot.lane.b32.xlu0 %v2585, 32
      %v2632 = vpop.permute.xlu0 %2631
      %2633 = vrot.lane.b32.xlu0 %v2588, 32
      %v2634 = vpop.permute.xlu0 %2633
      %2635 = vrot.lane.b32.xlu0 %v2591, 32
      %v2636 = vpop.permute.xlu0 %2635
      %2637 = vrot.lane.b32.xlu0 %v2594, 32
      %v2638 = vpop.permute.xlu0 %2637
      %2639 = vrot.lane.b32.xlu0 %v2597, 32
      %v2640 = vpop.permute.xlu0 %2639
      %2641 = vrot.lane.b32.xlu0 %v2600, 32
      %v2642 = vpop.permute.xlu0 %2641
      %2643 = vrot.lane.b32.xlu0 %v2603, 32
      %v2644 = vpop.permute.xlu0 %2643
      %2645 = vrot.lane.b32.xlu0 %v2606, 32
      %v2646 = vpop.permute.xlu0 %2645
      %2647 = vrot.lane.b32.xlu0 %v2609, 32
      %v2648 = vpop.permute.xlu0 %2647
      %2649 = vrot.lane.b32.xlu0 %v2612, 32
      %v2650 = vpop.permute.xlu0 %2649
      %2651 = vrot.lane.b32.xlu0 %v2615, 32
      %v2652 = vpop.permute.xlu0 %2651
      %2653 = vrot.lane.b32.xlu0 %v2618, 32
      %v2654 = vpop.permute.xlu0 %2653
      %2655 = vrot.lane.b32.xlu0 %v2621, 32
      %v2656 = vpop.permute.xlu0 %2655
      %2657 = vrot.lane.b32.xlu0 %v2624, 32
      %v2658 = vpop.permute.xlu0 %2657
      %2659 = vrot.lane.b32.xlu0 %v2627, 32
      %v2660 = vpop.permute.xlu0 %2659
      %2661 = vrot.lane.b32.xlu0 %v2630, 32
      %v2662 = vpop.permute.xlu0 %2661
      %vm2663 = vcmask 31744
      %v2665 = vsel %vm2663, %v1221, %v1479
      %v2667 = vsel %vm2663, %v1222, %v1481
      %v2669 = vsel %vm2663, %v1223, %v1483
      %v2671 = vsel %vm2663, %v1224, %v1485
      %v2673 = vsel %vm2663, %v1225, %v1487
      %v2675 = vsel %vm2663, %v1226, %v1489
      %v2677 = vsel %vm2663, %v1227, %v1491
      %v2679 = vsel %vm2663, %v1228, %v1493
      %v2681 = vsel %vm2663, %v1229, %v1495
      %v2683 = vsel %vm2663, %v1230, %v1497
      %v2685 = vsel %vm2663, %v1231, %v1499
      %v2687 = vsel %vm2663, %v1232, %v1501
      %v2689 = vsel %vm2663, %v1233, %v1503
      %v2691 = vsel %vm2663, %v1234, %v1505
      %v2693 = vsel %vm2663, %v1235, %v1507
      %v2695 = vsel %vm2663, %v1236, %v1509
      %vm2696 = vcmask 64512
      %v2698 = vsel %vm2696, %v2665, %v1608
      %v2700 = vsel %vm2696, %v2667, %v1610
      %v2702 = vsel %vm2696, %v2669, %v1612
      %v2704 = vsel %vm2696, %v2671, %v1614
      %v2706 = vsel %vm2696, %v2673, %v1616
      %v2708 = vsel %vm2696, %v2675, %v1618
      %v2710 = vsel %vm2696, %v2677, %v1620
      %v2712 = vsel %vm2696, %v2679, %v1622
      %v2714 = vsel %vm2696, %v2681, %v1624
      %v2716 = vsel %vm2696, %v2683, %v1626
      %v2718 = vsel %vm2696, %v2685, %v1628
      %v2720 = vsel %vm2696, %v2687, %v1630
      %v2722 = vsel %vm2696, %v2689, %v1632
      %v2724 = vsel %vm2696, %v2691, %v1634
      %v2726 = vsel %vm2696, %v2693, %v1636
      %v2728 = vsel %vm2696, %v2695, %v1638
      %vm2729 = vcmask 97280
      %v2731 = vsel %vm2729, %v2698, %v1720
      %v2733 = vsel %vm2729, %v2700, %v1722
      %v2735 = vsel %vm2729, %v2702, %v1724
      %v2737 = vsel %vm2729, %v2704, %v1726
      %v2739 = vsel %vm2729, %v2706, %v1728
      %v2741 = vsel %vm2729, %v2708, %v1730
      %v2743 = vsel %vm2729, %v2710, %v1732
      %v2745 = vsel %vm2729, %v2712, %v1734
      %v2747 = vsel %vm2729, %v2714, %v1736
      %v2749 = vsel %vm2729, %v2716, %v1738
      %v2751 = vsel %vm2729, %v2718, %v1740
      %v2753 = vsel %vm2729, %v2720, %v1742
      %v2755 = vsel %vm2729, %v2722, %v1744
      %v2757 = vsel %vm2729, %v2724, %v1746
      %v2759 = vsel %vm2729, %v2726, %v1748
      %v2761 = vsel %vm2729, %v2728, %v1750
      %vm2762 = vcmask 130048
      %v2764 = vsel %vm2762, %v2731, %v1992
      %v2766 = vsel %vm2762, %v2733, %v1994
      %v2768 = vsel %vm2762, %v2735, %v1996
      %v2770 = vsel %vm2762, %v2737, %v1998
      %v2772 = vsel %vm2762, %v2739, %v2000
      %v2774 = vsel %vm2762, %v2741, %v2002
      %v2776 = vsel %vm2762, %v2743, %v2004
      %v2778 = vsel %vm2762, %v2745, %v2006
      %v2780 = vsel %vm2762, %v2747, %v2008
      %v2782 = vsel %vm2762, %v2749, %v2010
      %v2784 = vsel %vm2762, %v2751, %v2012
      %v2786 = vsel %vm2762, %v2753, %v2014
      %v2788 = vsel %vm2762, %v2755, %v2016
      %v2790 = vsel %vm2762, %v2757, %v2018
      %v2792 = vsel %vm2762, %v2759, %v2020
      %v2794 = vsel %vm2762, %v2761, %v2022
      %vm2795 = vcmask 162816
      %v2797 = vsel %vm2795, %v2764, %v2120
      %v2799 = vsel %vm2795, %v2766, %v2122
      %v2801 = vsel %vm2795, %v2768, %v2124
      %v2803 = vsel %vm2795, %v2770, %v2126
      %v2805 = vsel %vm2795, %v2772, %v2128
      %v2807 = vsel %vm2795, %v2774, %v2130
      %v2809 = vsel %vm2795, %v2776, %v2132
      %v2811 = vsel %vm2795, %v2778, %v2134
      %v2813 = vsel %vm2795, %v2780, %v2136
      %v2815 = vsel %vm2795, %v2782, %v2138
      %v2817 = vsel %vm2795, %v2784, %v2140
      %v2819 = vsel %vm2795, %v2786, %v2142
      %v2821 = vsel %vm2795, %v2788, %v2144
      %v2823 = vsel %vm2795, %v2790, %v2146
      %v2825 = vsel %vm2795, %v2792, %v2148
      %v2827 = vsel %vm2795, %v2794, %v2150
      %vm2828 = vcmask 195584
      %v2830 = vsel %vm2828, %v2797, %v2232
      %v2832 = vsel %vm2828, %v2799, %v2234
      %v2834 = vsel %vm2828, %v2801, %v2236
      %v2836 = vsel %vm2828, %v2803, %v2238
      %v2838 = vsel %vm2828, %v2805, %v2240
      %v2840 = vsel %vm2828, %v2807, %v2242
      %v2842 = vsel %vm2828, %v2809, %v2244
      %v2844 = vsel %vm2828, %v2811, %v2246
      %v2846 = vsel %vm2828, %v2813, %v2248
      %v2848 = vsel %vm2828, %v2815, %v2250
      %v2850 = vsel %vm2828, %v2817, %v2252
      %v2852 = vsel %vm2828, %v2819, %v2254
      %v2854 = vsel %vm2828, %v2821, %v2256
      %v2856 = vsel %vm2828, %v2823, %v2258
      %v2858 = vsel %vm2828, %v2825, %v2260
      %v2860 = vsel %vm2828, %v2827, %v2262
      %vm2861 = vcmask 228352
      %v2863 = vsel %vm2861, %v2830, %v2504
      %v2865 = vsel %vm2861, %v2832, %v2506
      %v2867 = vsel %vm2861, %v2834, %v2508
      %v2869 = vsel %vm2861, %v2836, %v2510
      %v2871 = vsel %vm2861, %v2838, %v2512
      %v2873 = vsel %vm2861, %v2840, %v2514
      %v2875 = vsel %vm2861, %v2842, %v2516
      %v2877 = vsel %vm2861, %v2844, %v2518
      %v2879 = vsel %vm2861, %v2846, %v2520
      %v2881 = vsel %vm2861, %v2848, %v2522
      %v2883 = vsel %vm2861, %v2850, %v2524
      %v2885 = vsel %vm2861, %v2852, %v2526
      %v2887 = vsel %vm2861, %v2854, %v2528
      %v2889 = vsel %vm2861, %v2856, %v2530
      %v2891 = vsel %vm2861, %v2858, %v2532
      %v2893 = vsel %vm2861, %v2860, %v2534
      %vm2894 = vcmask 261120
      %v2896 = vsel %vm2894, %v2863, %v2632
      %v2898 = vsel %vm2894, %v2865, %v2634
      %v2900 = vsel %vm2894, %v2867, %v2636
      %v2902 = vsel %vm2894, %v2869, %v2638
      %v2904 = vsel %vm2894, %v2871, %v2640
      %v2906 = vsel %vm2894, %v2873, %v2642
      %v2908 = vsel %vm2894, %v2875, %v2644
      %v2910 = vsel %vm2894, %v2877, %v2646
      %v2912 = vsel %vm2894, %v2879, %v2648
      %v2914 = vsel %vm2894, %v2881, %v2650
      %v2916 = vsel %vm2894, %v2883, %v2652
      %v2918 = vsel %vm2894, %v2885, %v2654
      %v2920 = vsel %vm2894, %v2887, %v2656
      %v2922 = vsel %vm2894, %v2889, %v2658
      %v2924 = vsel %vm2894, %v2891, %v2660
      %v2926 = vsel %vm2894, %v2893, %v2662
      %v2928 = vperm.slane %v962, 0
      %v2935 = vunpack.c.l.b16 %v957
      %v2936 = vunpack.c.l.b16 %v958
      %v2937 = vunpack.c.l.b16 %v959
      %v2938 = vunpack.c.l.b16 %v960
      %v2939 = vunpack.c.l.b16 %v961
      %v2940 = vpack.c.b16 %v2936, %v2935
      %v2941 = vpack.c.b16 %v2938, %v2937
      %v2942 = vpack.c.b16 %v2939, %v2939
      %vm2945 = vcmask 293888
      %v2946 = vsel %vm2945, %v2896, 0
      %v2948 = vsel %vm2945, %v2898, 0
      %v2950 = vsel %vm2945, %v2900, 0
      %v2952 = vsel %vm2945, %v2902, 0
      %v2954 = vsel %vm2945, %v2904, 0
      %v2956 = vsel %vm2945, %v2906, 0
      %v2958 = vsel %vm2945, %v2908, 0
      %v2960 = vsel %vm2945, %v2910, 0
      %v2962 = vsel %vm2945, %v2912, 0
      %v2964 = vsel %vm2945, %v2914, 0
      %v2966 = vsel %vm2945, %v2916, 0
      %v2968 = vsel %vm2945, %v2918, 0
      %v2970 = vsel %vm2945, %v2920, 0
      %v2972 = vsel %vm2945, %v2922, 0
      %v2974 = vsel %vm2945, %v2924, 0
      %v2976 = vsel %vm2945, %v2926, 0
      %vm2978 = vcmask 1041408
      %v2980 = vsel %vm2978, %v2942, 0
      %2982 = vmatpush.bf16.msra.mxu0 0
      %2983 = vmatpush.bf16.msra.mxu0 0
      %2984 = vmatpush.bf16.msra.mxu0 0
      %2985 = vmatpush.bf16.msra.mxu0 0
      %2986 = vmatpush.bf16.msra.mxu0 0
      %2987 = vmatpush.bf16.msra.mxu0 %v2980
      %2988 = vmatpush.bf16.msra.mxu0 %v2941
      %2989 = vmatpush.bf16.msra.mxu0 %v2940
      %2990 = vmatmul.bf16.gmra.mxu0 %v2946
      %v2991 = vpop.f32.mrf.mxu0
      %v2992 = vadd.f32 %v2928, %v2991
      %v2993 = vpop.f32.mrf.mxu0
      %v2994 = vadd.f32 %v2928, %v2993
      %2995 = vmatmul.bf16.gmra.mxu0 %v2948
      %v2996 = vpop.f32.mrf.mxu0
      %v2997 = vadd.f32 %v2928, %v2996
      %v2998 = vpop.f32.mrf.mxu0
      %v2999 = vadd.f32 %v2928, %v2998
      %3000 = vmatmul.bf16.gmra.mxu0 %v2950
      %v3001 = vpop.f32.mrf.mxu0
      %v3002 = vadd.f32 %v2928, %v3001
      %v3003 = vpop.f32.mrf.mxu0
      %v3004 = vadd.f32 %v2928, %v3003
      %3005 = vmatmul.bf16.gmra.mxu0 %v2952
      %v3006 = vpop.f32.mrf.mxu0
      %v3007 = vadd.f32 %v2928, %v3006
      %v3008 = vpop.f32.mrf.mxu0
      %v3009 = vadd.f32 %v2928, %v3008
      %3010 = vmatmul.bf16.gmra.mxu0 %v2954
      %v3011 = vpop.f32.mrf.mxu0
      %v3012 = vadd.f32 %v2928, %v3011
      %v3013 = vpop.f32.mrf.mxu0
      %v3014 = vadd.f32 %v2928, %v3013
      %3015 = vmatmul.bf16.gmra.mxu0 %v2956
      %v3016 = vpop.f32.mrf.mxu0
      %v3017 = vadd.f32 %v2928, %v3016
      %v3018 = vpop.f32.mrf.mxu0
      %v3019 = vadd.f32 %v2928, %v3018
      %3020 = vmatmul.bf16.gmra.mxu0 %v2958
      %v3021 = vpop.f32.mrf.mxu0
      %v3022 = vadd.f32 %v2928, %v3021
      %v3023 = vpop.f32.mrf.mxu0
      %v3024 = vadd.f32 %v2928, %v3023
      %3025 = vmatmul.bf16.gmra.mxu0 %v2960
      %v3026 = vpop.f32.mrf.mxu0
      %v3027 = vadd.f32 %v2928, %v3026
      %v3028 = vpop.f32.mrf.mxu0
      %v3029 = vadd.f32 %v2928, %v3028
      %3030 = vmatmul.bf16.gmra.mxu0 %v2962
      %v3031 = vpop.f32.mrf.mxu0
      %v3032 = vadd.f32 %v2928, %v3031
      %v3033 = vpop.f32.mrf.mxu0
      %v3034 = vadd.f32 %v2928, %v3033
      %3035 = vmatmul.bf16.gmra.mxu0 %v2964
      %v3036 = vpop.f32.mrf.mxu0
      %v3037 = vadd.f32 %v2928, %v3036
      %v3038 = vpop.f32.mrf.mxu0
      %v3039 = vadd.f32 %v2928, %v3038
      %3040 = vmatmul.bf16.gmra.mxu0 %v2966
      %v3041 = vpop.f32.mrf.mxu0
      %v3042 = vadd.f32 %v2928, %v3041
      %v3043 = vpop.f32.mrf.mxu0
      %v3044 = vadd.f32 %v2928, %v3043
      %3045 = vmatmul.bf16.gmra.mxu0 %v2968
      %v3046 = vpop.f32.mrf.mxu0
      %v3047 = vadd.f32 %v2928, %v3046
      %v3048 = vpop.f32.mrf.mxu0
      %v3049 = vadd.f32 %v2928, %v3048
      %3050 = vmatmul.bf16.gmra.mxu0 %v2970
      %v3051 = vpop.f32.mrf.mxu0
      %v3052 = vadd.f32 %v2928, %v3051
      %v3053 = vpop.f32.mrf.mxu0
      %v3054 = vadd.f32 %v2928, %v3053
      %3055 = vmatmul.bf16.gmra.mxu0 %v2972
      %v3056 = vpop.f32.mrf.mxu0
      %v3057 = vadd.f32 %v2928, %v3056
      %v3058 = vpop.f32.mrf.mxu0
      %v3059 = vadd.f32 %v2928, %v3058
      %3060 = vmatmul.bf16.gmra.mxu0 %v2974
      %v3061 = vpop.f32.mrf.mxu0
      %v3062 = vadd.f32 %v2928, %v3061
      %v3063 = vpop.f32.mrf.mxu0
      %v3064 = vadd.f32 %v2928, %v3063
      %3065 = vmatmul.bf16.gmra.mxu0 %v2976
      %v3066 = vpop.f32.mrf.mxu0
      %v3067 = vadd.f32 %v2928, %v3066
      %v3068 = vpop.f32.mrf.mxu0
      %v3069 = vadd.f32 %v2928, %v3068
      %3070 = vdwg.mxu0
      %v3071 = vsel %vm2663, %v2992, 0.0
      %v3072 = vsel %vm2663, %v2994, 0.0
      %v3073 = vadd.f32 %v3071, %v3072
      %v3074 = vsel %vm2663, %v2997, 0.0
      %v3075 = vadd.f32 %v3073, %v3074
      %v3076 = vsel %vm2663, %v2999, 0.0
      %v3077 = vadd.f32 %v3075, %v3076
      %v3078 = vsel %vm2663, %v3002, 0.0
      %v3079 = vadd.f32 %v3077, %v3078
      %v3080 = vsel %vm2663, %v3004, 0.0
      %v3081 = vadd.f32 %v3079, %v3080
      %v3082 = vsel %vm2663, %v3007, 0.0
      %v3083 = vadd.f32 %v3081, %v3082
      %v3084 = vsel %vm2663, %v3009, 0.0
      %v3085 = vadd.f32 %v3083, %v3084
      %v3086 = vsel %vm2663, %v3012, 0.0
      %v3087 = vadd.f32 %v3085, %v3086
      %v3088 = vsel %vm2663, %v3014, 0.0
      %v3089 = vadd.f32 %v3087, %v3088
      %v3090 = vsel %vm2663, %v3017, 0.0
      %v3091 = vadd.f32 %v3089, %v3090
      %v3092 = vsel %vm2663, %v3019, 0.0
      %v3093 = vadd.f32 %v3091, %v3092
      %v3094 = vsel %vm2663, %v3022, 0.0
      %v3095 = vadd.f32 %v3093, %v3094
      %v3096 = vsel %vm2663, %v3024, 0.0
      %v3097 = vadd.f32 %v3095, %v3096
      %v3098 = vsel %vm2663, %v3027, 0.0
      %v3099 = vadd.f32 %v3097, %v3098
      %v3100 = vsel %vm2663, %v3029, 0.0
      %v3101 = vadd.f32 %v3099, %v3100
      %v3102 = vsel %vm2663, %v3032, 0.0
      %v3103 = vadd.f32 %v3101, %v3102
      %v3104 = vsel %vm2663, %v3034, 0.0
      %v3105 = vadd.f32 %v3103, %v3104
      %v3106 = vsel %vm2663, %v3037, 0.0
      %v3107 = vadd.f32 %v3105, %v3106
      %v3108 = vsel %vm2663, %v3039, 0.0
      %v3109 = vadd.f32 %v3107, %v3108
      %v3110 = vsel %vm2663, %v3042, 0.0
      %v3111 = vadd.f32 %v3109, %v3110
      %v3112 = vsel %vm2663, %v3044, 0.0
      %v3113 = vadd.f32 %v3111, %v3112
      %v3114 = vsel %vm2663, %v3047, 0.0
      %v3115 = vadd.f32 %v3113, %v3114
      %v3116 = vsel %vm2663, %v3049, 0.0
      %v3117 = vadd.f32 %v3115, %v3116
      %v3118 = vsel %vm2663, %v3052, 0.0
      %v3119 = vadd.f32 %v3117, %v3118
      %v3120 = vsel %vm2663, %v3054, 0.0
      %v3121 = vadd.f32 %v3119, %v3120
      %v3122 = vsel %vm2663, %v3057, 0.0
      %v3123 = vadd.f32 %v3121, %v3122
      %v3124 = vsel %vm2663, %v3059, 0.0
      %v3125 = vadd.f32 %v3123, %v3124
      %v3126 = vsel %vm2663, %v3062, 0.0
      %v3127 = vadd.f32 %v3125, %v3126
      %v3128 = vsel %vm2663, %v3064, 0.0
      %v3129 = vadd.f32 %v3127, %v3128
      %v3130 = vsel %vm2663, %v3067, 0.0
      %v3131 = vadd.f32 %v3129, %v3130
      %v3132 = vsel %vm2663, %v3069, 0.0
      %v3133 = vadd.f32 %v3131, %v3132
      %v3134 = vrot.slane %v3133, 4
      %v3135 = vadd.f32 %v3133, %v3134
      %v3136 = vrot.slane %v3135, 2
      %v3137 = vadd.f32 %v3135, %v3136
      %v3138 = vrot.slane %v3137, 1
      %v3139 = vadd.f32 %v3137, %v3138
      %v3140 = vmul.f32 %v3139, 0.00390625
      %v3141 = vmul.f32 %v2992, %v2992
      %v3142 = vmul.f32 %v2994, %v2994
      %v3143 = vmul.f32 %v2997, %v2997
      %v3144 = vmul.f32 %v2999, %v2999
      %v3145 = vmul.f32 %v3002, %v3002
      %v3146 = vmul.f32 %v3004, %v3004
      %v3147 = vmul.f32 %v3007, %v3007
      %v3148 = vmul.f32 %v3009, %v3009
      %v3149 = vmul.f32 %v3012, %v3012
      %v3150 = vmul.f32 %v3014, %v3014
      %v3151 = vmul.f32 %v3017, %v3017
      %v3152 = vmul.f32 %v3019, %v3019
      %v3153 = vmul.f32 %v3022, %v3022
      %v3154 = vmul.f32 %v3024, %v3024
      %v3155 = vmul.f32 %v3027, %v3027
      %v3156 = vmul.f32 %v3029, %v3029
      %v3157 = vmul.f32 %v3032, %v3032
      %v3158 = vmul.f32 %v3034, %v3034
      %v3159 = vmul.f32 %v3037, %v3037
      %v3160 = vmul.f32 %v3039, %v3039
      %v3161 = vmul.f32 %v3042, %v3042
      %v3162 = vmul.f32 %v3044, %v3044
      %v3163 = vmul.f32 %v3047, %v3047
      %v3164 = vmul.f32 %v3049, %v3049
      %v3165 = vmul.f32 %v3052, %v3052
      %v3166 = vmul.f32 %v3054, %v3054
      %v3167 = vmul.f32 %v3057, %v3057
      %v3168 = vmul.f32 %v3059, %v3059
      %v3169 = vmul.f32 %v3062, %v3062
      %v3170 = vmul.f32 %v3064, %v3064
      %v3171 = vmul.f32 %v3067, %v3067
      %v3172 = vmul.f32 %v3069, %v3069
      %v3173 = vsel %vm2663, %v3141, 0.0
      %v3174 = vsel %vm2663, %v3142, 0.0
      %v3175 = vadd.f32 %v3173, %v3174
      %v3176 = vsel %vm2663, %v3143, 0.0
      %v3177 = vadd.f32 %v3175, %v3176
      %v3178 = vsel %vm2663, %v3144, 0.0
      %v3179 = vadd.f32 %v3177, %v3178
      %v3180 = vsel %vm2663, %v3145, 0.0
      %v3181 = vadd.f32 %v3179, %v3180
      %v3182 = vsel %vm2663, %v3146, 0.0
      %v3183 = vadd.f32 %v3181, %v3182
      %v3184 = vsel %vm2663, %v3147, 0.0
      %v3185 = vadd.f32 %v3183, %v3184
      %v3186 = vsel %vm2663, %v3148, 0.0
      %v3187 = vadd.f32 %v3185, %v3186
      %v3188 = vsel %vm2663, %v3149, 0.0
      %v3189 = vadd.f32 %v3187, %v3188
      %v3190 = vsel %vm2663, %v3150, 0.0
      %v3191 = vadd.f32 %v3189, %v3190
      %v3192 = vsel %vm2663, %v3151, 0.0
      %v3193 = vadd.f32 %v3191, %v3192
      %v3194 = vsel %vm2663, %v3152, 0.0
      %v3195 = vadd.f32 %v3193, %v3194
      %v3196 = vsel %vm2663, %v3153, 0.0
      %v3197 = vadd.f32 %v3195, %v3196
      %v3198 = vsel %vm2663, %v3154, 0.0
      %v3199 = vadd.f32 %v3197, %v3198
      %v3200 = vsel %vm2663, %v3155, 0.0
      %v3201 = vadd.f32 %v3199, %v3200
      %v3202 = vsel %vm2663, %v3156, 0.0
      %v3203 = vadd.f32 %v3201, %v3202
      %v3204 = vsel %vm2663, %v3157, 0.0
      %v3205 = vadd.f32 %v3203, %v3204
      %v3206 = vsel %vm2663, %v3158, 0.0
      %v3207 = vadd.f32 %v3205, %v3206
      %v3208 = vsel %vm2663, %v3159, 0.0
      %v3209 = vadd.f32 %v3207, %v3208
      %v3210 = vsel %vm2663, %v3160, 0.0
      %v3211 = vadd.f32 %v3209, %v3210
      %v3212 = vsel %vm2663, %v3161, 0.0
      %v3213 = vadd.f32 %v3211, %v3212
      %v3214 = vsel %vm2663, %v3162, 0.0
      %v3215 = vadd.f32 %v3213, %v3214
      %v3216 = vsel %vm2663, %v3163, 0.0
      %v3217 = vadd.f32 %v3215, %v3216
      %v3218 = vsel %vm2663, %v3164, 0.0
      %v3219 = vadd.f32 %v3217, %v3218
      %v3220 = vsel %vm2663, %v3165, 0.0
      %v3221 = vadd.f32 %v3219, %v3220
      %v3222 = vsel %vm2663, %v3166, 0.0
      %v3223 = vadd.f32 %v3221, %v3222
      %v3224 = vsel %vm2663, %v3167, 0.0
      %v3225 = vadd.f32 %v3223, %v3224
      %v3226 = vsel %vm2663, %v3168, 0.0
      %v3227 = vadd.f32 %v3225, %v3226
      %v3228 = vsel %vm2663, %v3169, 0.0
      %v3229 = vadd.f32 %v3227, %v3228
      %v3230 = vsel %vm2663, %v3170, 0.0
      %v3231 = vadd.f32 %v3229, %v3230
      %v3232 = vsel %vm2663, %v3171, 0.0
      %v3233 = vadd.f32 %v3231, %v3232
      %v3234 = vsel %vm2663, %v3172, 0.0
      %v3235 = vadd.f32 %v3233, %v3234
      %v3236 = vrot.slane %v3235, 4
      %v3237 = vadd.f32 %v3235, %v3236
      %v3238 = vrot.slane %v3237, 2
      %v3239 = vadd.f32 %v3237, %v3238
      %v3240 = vrot.slane %v3239, 1
      %v3241 = vadd.f32 %v3239, %v3240
      %v3242 = vmul.f32 %v3241, 0.00390625
      %v3243 = vmul.f32 %v3140, %v3140
      %v3244 = vsub.f32 %v3242, %v3243
      %v3245 = vsub.f32 %v2992, %v3140
      %v3246 = vsub.f32 %v2994, %v3140
      %v3247 = vsub.f32 %v2997, %v3140
      %v3248 = vsub.f32 %v2999, %v3140
      %v3249 = vsub.f32 %v3002, %v3140
      %v3250 = vsub.f32 %v3004, %v3140
      %v3251 = vsub.f32 %v3007, %v3140
      %v3252 = vsub.f32 %v3009, %v3140
      %v3253 = vsub.f32 %v3012, %v3140
      %v3254 = vsub.f32 %v3014, %v3140
      %v3255 = vsub.f32 %v3017, %v3140
      %v3256 = vsub.f32 %v3019, %v3140
      %v3257 = vsub.f32 %v3022, %v3140
      %v3258 = vsub.f32 %v3024, %v3140
      %v3259 = vsub.f32 %v3027, %v3140
      %v3260 = vsub.f32 %v3029, %v3140
      %v3261 = vsub.f32 %v3032, %v3140
      %v3262 = vsub.f32 %v3034, %v3140
      %v3263 = vsub.f32 %v3037, %v3140
      %v3264 = vsub.f32 %v3039, %v3140
      %v3265 = vsub.f32 %v3042, %v3140
      %v3266 = vsub.f32 %v3044, %v3140
      %v3267 = vsub.f32 %v3047, %v3140
      %v3268 = vsub.f32 %v3049, %v3140
      %v3269 = vsub.f32 %v3052, %v3140
      %v3270 = vsub.f32 %v3054, %v3140
      %v3271 = vsub.f32 %v3057, %v3140
      %v3272 = vsub.f32 %v3059, %v3140
      %v3273 = vsub.f32 %v3062, %v3140
      %v3274 = vsub.f32 %v3064, %v3140
      %v3275 = vsub.f32 %v3067, %v3140
      %v3276 = vsub.f32 %v3069, %v3140
      %v3277 = vadd.f32 %v3244, 1e-05
      %v3278 = vrsqrt.pop %v3277
      %v3279 = vmul.f32 %v3278, %v3277
      %v3280 = vmul.f32 %v3279, %v3278
      %v3281 = vmul.f32 0.5, %v3280
      %v3282 = vsub.f32 1.5, %v3281
      %v3283 = vmul.f32 %v3278, %v3282
      %vm3284 = vweird.f32 %v3277
      %vm3285 = vweird.f32 %v3278
      %vm3286 = vmor %vm3284, %vm3285
      %v3287 = vsel %vm3286, %v3278, %v3283
      %v3288 = vmul.f32 %v3245, %v3287
      %v3289 = vmul.f32 %v3246, %v3287
      %v3290 = vmul.f32 %v3247, %v3287
      %v3291 = vmul.f32 %v3248, %v3287
      %v3292 = vmul.f32 %v3249, %v3287
      %v3293 = vmul.f32 %v3250, %v3287
      %v3294 = vmul.f32 %v3251, %v3287
      %v3295 = vmul.f32 %v3252, %v3287
      %v3296 = vmul.f32 %v3253, %v3287
      %v3297 = vmul.f32 %v3254, %v3287
      %v3298 = vmul.f32 %v3255, %v3287
      %v3299 = vmul.f32 %v3256, %v3287
      %v3300 = vmul.f32 %v3257, %v3287
      %v3301 = vmul.f32 %v3258, %v3287
      %v3302 = vmul.f32 %v3259, %v3287
      %v3303 = vmul.f32 %v3260, %v3287
      %v3304 = vmul.f32 %v3261, %v3287
      %v3305 = vmul.f32 %v3262, %v3287
      %v3306 = vmul.f32 %v3263, %v3287
      %v3307 = vmul.f32 %v3264, %v3287
      %v3308 = vmul.f32 %v3265, %v3287
      %v3309 = vmul.f32 %v3266, %v3287
      %v3310 = vmul.f32 %v3267, %v3287
      %v3311 = vmul.f32 %v3268, %v3287
      %v3312 = vmul.f32 %v3269, %v3287
      %v3313 = vmul.f32 %v3270, %v3287
      %v3314 = vmul.f32 %v3271, %v3287
      %v3315 = vmul.f32 %v3272, %v3287
      %v3316 = vmul.f32 %v3273, %v3287
      %v3317 = vmul.f32 %v3274, %v3287
      %v3318 = vmul.f32 %v3275, %v3287
      %v3319 = vmul.f32 %v3276, %v3287
      %v3320 = vmax.f32 %v3288, 0.0
      %v3321 = vmax.f32 %v3289, 0.0
      %v3322 = vmax.f32 %v3290, 0.0
      %v3323 = vmax.f32 %v3291, 0.0
      %v3324 = vmax.f32 %v3292, 0.0
      %v3325 = vmax.f32 %v3293, 0.0
      %v3326 = vmax.f32 %v3294, 0.0
      %v3327 = vmax.f32 %v3295, 0.0
      %v3328 = vmax.f32 %v3296, 0.0
      %v3329 = vmax.f32 %v3297, 0.0
      %v3330 = vmax.f32 %v3298, 0.0
      %v3331 = vmax.f32 %v3299, 0.0
      %v3332 = vmax.f32 %v3300, 0.0
      %v3333 = vmax.f32 %v3301, 0.0
      %v3334 = vmax.f32 %v3302, 0.0
      %v3335 = vmax.f32 %v3303, 0.0
      %v3336 = vmax.f32 %v3304, 0.0
      %v3337 = vmax.f32 %v3305, 0.0
      %v3338 = vmax.f32 %v3306, 0.0
      %v3339 = vmax.f32 %v3307, 0.0
      %v3340 = vmax.f32 %v3308, 0.0
      %v3341 = vmax.f32 %v3309, 0.0
      %v3342 = vmax.f32 %v3310, 0.0
      %v3343 = vmax.f32 %v3311, 0.0
      %v3344 = vmax.f32 %v3312, 0.0
      %v3345 = vmax.f32 %v3313, 0.0
      %v3346 = vmax.f32 %v3314, 0.0
      %v3347 = vmax.f32 %v3315, 0.0
      %v3348 = vmax.f32 %v3316, 0.0
      %v3349 = vmax.f32 %v3317, 0.0
      %v3350 = vmax.f32 %v3318, 0.0
      %v3351 = vmax.f32 %v3319, 0.0
      %v3352 = vpack.c.bf16 %v3320, %v3320
      %v3353 = vpack.c.bf16 %v3321, %v3321
      %v3354 = vpack.c.bf16 %v3322, %v3322
      %v3355 = vpack.c.bf16 %v3323, %v3323
      %v3356 = vpack.c.bf16 %v3324, %v3324
      %v3357 = vpack.c.bf16 %v3325, %v3325
      %v3358 = vpack.c.bf16 %v3326, %v3326
      %v3359 = vpack.c.bf16 %v3327, %v3327
      %v3360 = vpack.c.bf16 %v3328, %v3328
      %v3361 = vpack.c.bf16 %v3329, %v3329
      %v3362 = vpack.c.bf16 %v3330, %v3330
      %v3363 = vpack.c.bf16 %v3331, %v3331
      %v3364 = vpack.c.bf16 %v3332, %v3332
      %v3365 = vpack.c.bf16 %v3333, %v3333
      %v3366 = vpack.c.bf16 %v3334, %v3334
      %v3367 = vpack.c.bf16 %v3335, %v3335
      %v3368 = vpack.c.bf16 %v3336, %v3336
      %v3369 = vpack.c.bf16 %v3337, %v3337
      %v3370 = vpack.c.bf16 %v3338, %v3338
      %v3371 = vpack.c.bf16 %v3339, %v3339
      %v3372 = vpack.c.bf16 %v3340, %v3340
      %v3373 = vpack.c.bf16 %v3341, %v3341
      %v3374 = vpack.c.bf16 %v3342, %v3342
      %v3375 = vpack.c.bf16 %v3343, %v3343
      %v3376 = vpack.c.bf16 %v3344, %v3344
      %v3377 = vpack.c.bf16 %v3345, %v3345
      %v3378 = vpack.c.bf16 %v3346, %v3346
      %v3379 = vpack.c.bf16 %v3347, %v3347
      %v3380 = vpack.c.bf16 %v3348, %v3348
      %v3381 = vpack.c.bf16 %v3349, %v3349
      %v3382 = vpack.c.bf16 %v3350, %v3350
      %v3383 = vpack.c.bf16 %v3351, %v3351
      %v3400 = vunpack.c.l.b16 %v3354
      %v3401 = vunpack.c.l.b16 %v3352
      %v3402 = vunpack.c.l.b16 %v3356
      %v3403 = vunpack.c.l.b16 %v3358
      %v3404 = vunpack.c.l.b16 %v3360
      %v3405 = vunpack.c.l.b16 %v3362
      %v3406 = vunpack.c.l.b16 %v3364
      %v3407 = vunpack.c.l.b16 %v3366
      %v3408 = vunpack.c.l.b16 %v3368
      %v3409 = vunpack.c.l.b16 %v3370
      %v3410 = vunpack.c.l.b16 %v3372
      %v3411 = vunpack.c.l.b16 %v3374
      %v3412 = vunpack.c.l.b16 %v3376
      %v3413 = vunpack.c.l.b16 %v3378
      %v3414 = vunpack.c.l.b16 %v3380
      %v3415 = vunpack.c.l.b16 %v3382
      %v3416 = vpack.c.b16 %v3400, %v3400
      %v3417 = vpack.c.b16 %v3401, %v3401
      %v3418 = vpack.c.b16 %v3402, %v3402
      %v3419 = vpack.c.b16 %v3403, %v3403
      %v3420 = vpack.c.b16 %v3404, %v3404
      %v3421 = vpack.c.b16 %v3405, %v3405
      %v3422 = vpack.c.b16 %v3406, %v3406
      %v3423 = vpack.c.b16 %v3407, %v3407
      %v3424 = vpack.c.b16 %v3408, %v3408
      %v3425 = vpack.c.b16 %v3409, %v3409
      %v3426 = vpack.c.b16 %v3410, %v3410
      %v3427 = vpack.c.b16 %v3411, %v3411
      %v3428 = vpack.c.b16 %v3412, %v3412
      %v3429 = vpack.c.b16 %v3413, %v3413
      %v3430 = vpack.c.b16 %v3414, %v3414
      %v3431 = vpack.c.b16 %v3415, %v3415
      %v3433 = vshrl.u32 %v3416, 16
      %v3436 = vshrl.u32 %v3417, 16
      %v3439 = vshrl.u32 %v3418, 16
      %v3442 = vshrl.u32 %v3419, 16
      %v3445 = vshrl.u32 %v3420, 16
      %v3448 = vshrl.u32 %v3421, 16
      %v3451 = vshrl.u32 %v3422, 16
      %v3454 = vshrl.u32 %v3423, 16
      %v3457 = vshrl.u32 %v3424, 16
      %v3460 = vshrl.u32 %v3425, 16
      %v3463 = vshrl.u32 %v3426, 16
      %v3466 = vshrl.u32 %v3427, 16
      %v3469 = vshrl.u32 %v3428, 16
      %v3472 = vshrl.u32 %v3429, 16
      %v3475 = vshrl.u32 %v3430, 16
      %v3478 = vshrl.u32 %v3431, 16
      %v3512 = vunpack.c.l.b16 %v3355
      %v3513 = vunpack.c.l.b16 %v3353
      %v3514 = vunpack.c.l.b16 %v3357
      %v3515 = vunpack.c.l.b16 %v3359
      %v3516 = vunpack.c.l.b16 %v3361
      %v3517 = vunpack.c.l.b16 %v3363
      %v3518 = vunpack.c.l.b16 %v3365
      %v3519 = vunpack.c.l.b16 %v3367
      %v3520 = vunpack.c.l.b16 %v3369
      %v3521 = vunpack.c.l.b16 %v3371
      %v3522 = vunpack.c.l.b16 %v3373
      %v3523 = vunpack.c.l.b16 %v3375
      %v3524 = vunpack.c.l.b16 %v3377
      %v3525 = vunpack.c.l.b16 %v3379
      %v3526 = vunpack.c.l.b16 %v3381
      %v3527 = vunpack.c.l.b16 %v3383
      %v3528 = vpack.c.b16 %v3512, %v3400
      %v3529 = vpack.c.b16 %v3513, %v3401
      %v3530 = vpack.c.b16 %v3514, %v3402
      %v3531 = vpack.c.b16 %v3515, %v3403
      %v3532 = vpack.c.b16 %v3516, %v3404
      %v3533 = vpack.c.b16 %v3517, %v3405
      %v3534 = vpack.c.b16 %v3518, %v3406
      %v3535 = vpack.c.b16 %v3519, %v3407
      %v3536 = vpack.c.b16 %v3520, %v3408
      %v3537 = vpack.c.b16 %v3521, %v3409
      %v3538 = vpack.c.b16 %v3522, %v3410
      %v3539 = vpack.c.b16 %v3523, %v3411
      %v3540 = vpack.c.b16 %v3524, %v3412
      %v3541 = vpack.c.b16 %v3525, %v3413
      %v3542 = vpack.c.b16 %v3526, %v3414
      %v3543 = vpack.c.b16 %v3527, %v3415
      %v3545 = vshrl.u32 %v3528, 16
      %v3547 = vrot.slane %v3545, 7
      %v3548 = vshll.u32 %v3528, 16
      %v3550 = vor.u32 %v3547, %v3548
      %v3552 = vshrl.u32 %v3529, 16
      %v3554 = vrot.slane %v3552, 7
      %v3555 = vshll.u32 %v3529, 16
      %v3557 = vor.u32 %v3554, %v3555
      %v3559 = vshrl.u32 %v3530, 16
      %v3561 = vrot.slane %v3559, 7
      %v3562 = vshll.u32 %v3530, 16
      %v3564 = vor.u32 %v3561, %v3562
      %v3566 = vshrl.u32 %v3531, 16
      %v3568 = vrot.slane %v3566, 7
      %v3569 = vshll.u32 %v3531, 16
      %v3571 = vor.u32 %v3568, %v3569
      %v3573 = vshrl.u32 %v3532, 16
      %v3575 = vrot.slane %v3573, 7
      %v3576 = vshll.u32 %v3532, 16
      %v3578 = vor.u32 %v3575, %v3576
      %v3580 = vshrl.u32 %v3533, 16
      %v3582 = vrot.slane %v3580, 7
      %v3583 = vshll.u32 %v3533, 16
      %v3585 = vor.u32 %v3582, %v3583
      %v3587 = vshrl.u32 %v3534, 16
      %v3589 = vrot.slane %v3587, 7
      %v3590 = vshll.u32 %v3534, 16
      %v3592 = vor.u32 %v3589, %v3590
      %v3594 = vshrl.u32 %v3535, 16
      %v3596 = vrot.slane %v3594, 7
      %v3597 = vshll.u32 %v3535, 16
      %v3599 = vor.u32 %v3596, %v3597
      %v3601 = vshrl.u32 %v3536, 16
      %v3603 = vrot.slane %v3601, 7
      %v3604 = vshll.u32 %v3536, 16
      %v3606 = vor.u32 %v3603, %v3604
      %v3608 = vshrl.u32 %v3537, 16
      %v3610 = vrot.slane %v3608, 7
      %v3611 = vshll.u32 %v3537, 16
      %v3613 = vor.u32 %v3610, %v3611
      %v3615 = vshrl.u32 %v3538, 16
      %v3617 = vrot.slane %v3615, 7
      %v3618 = vshll.u32 %v3538, 16
      %v3620 = vor.u32 %v3617, %v3618
      %v3622 = vshrl.u32 %v3539, 16
      %v3624 = vrot.slane %v3622, 7
      %v3625 = vshll.u32 %v3539, 16
      %v3627 = vor.u32 %v3624, %v3625
      %v3629 = vshrl.u32 %v3540, 16
      %v3631 = vrot.slane %v3629, 7
      %v3632 = vshll.u32 %v3540, 16
      %v3634 = vor.u32 %v3631, %v3632
      %v3636 = vshrl.u32 %v3541, 16
      %v3638 = vrot.slane %v3636, 7
      %v3639 = vshll.u32 %v3541, 16
      %v3641 = vor.u32 %v3638, %v3639
      %v3643 = vshrl.u32 %v3542, 16
      %v3645 = vrot.slane %v3643, 7
      %v3646 = vshll.u32 %v3542, 16
      %v3648 = vor.u32 %v3645, %v3646
      %v3650 = vshrl.u32 %v3543, 16
      %v3652 = vrot.slane %v3650, 7
      %v3653 = vshll.u32 %v3543, 16
      %v3655 = vor.u32 %v3652, %v3653
      %v3688 = vpack.c.b16 %v3512, %v3512
      %v3689 = vpack.c.b16 %v3513, %v3513
      %v3690 = vpack.c.b16 %v3514, %v3514
      %v3691 = vpack.c.b16 %v3515, %v3515
      %v3692 = vpack.c.b16 %v3516, %v3516
      %v3693 = vpack.c.b16 %v3517, %v3517
      %v3694 = vpack.c.b16 %v3518, %v3518
      %v3695 = vpack.c.b16 %v3519, %v3519
      %v3696 = vpack.c.b16 %v3520, %v3520
      %v3697 = vpack.c.b16 %v3521, %v3521
      %v3698 = vpack.c.b16 %v3522, %v3522
      %v3699 = vpack.c.b16 %v3523, %v3523
      %v3700 = vpack.c.b16 %v3524, %v3524
      %v3701 = vpack.c.b16 %v3525, %v3525
      %v3702 = vpack.c.b16 %v3526, %v3526
      %v3703 = vpack.c.b16 %v3527, %v3527
      %v3705 = vshll.u32 %v3688, 16
      %v3707 = vrot.slane %v3705, 3
      %v3709 = vshll.u32 %v3689, 16
      %v3711 = vrot.slane %v3709, 3
      %v3713 = vshll.u32 %v3690, 16
      %v3715 = vrot.slane %v3713, 3
      %v3717 = vshll.u32 %v3691, 16
      %v3719 = vrot.slane %v3717, 3
      %v3721 = vshll.u32 %v3692, 16
      %v3723 = vrot.slane %v3721, 3
      %v3725 = vshll.u32 %v3693, 16
      %v3727 = vrot.slane %v3725, 3
      %v3729 = vshll.u32 %v3694, 16
      %v3731 = vrot.slane %v3729, 3
      %v3733 = vshll.u32 %v3695, 16
      %v3735 = vrot.slane %v3733, 3
      %v3737 = vshll.u32 %v3696, 16
      %v3739 = vrot.slane %v3737, 3
      %v3741 = vshll.u32 %v3697, 16
      %v3743 = vrot.slane %v3741, 3
      %v3745 = vshll.u32 %v3698, 16
      %v3747 = vrot.slane %v3745, 3
      %v3749 = vshll.u32 %v3699, 16
      %v3751 = vrot.slane %v3749, 3
      %v3753 = vshll.u32 %v3700, 16
      %v3755 = vrot.slane %v3753, 3
      %v3757 = vshll.u32 %v3701, 16
      %v3759 = vrot.slane %v3757, 3
      %v3761 = vshll.u32 %v3702, 16
      %v3763 = vrot.slane %v3761, 3
      %v3765 = vshll.u32 %v3703, 16
      %v3767 = vrot.slane %v3765, 3
      %v3784 = vsel %vm692, %v3433, %v3550
      %v3785 = vsel %vm692, %v3436, %v3557
      %v3786 = vsel %vm692, %v3439, %v3564
      %v3787 = vsel %vm692, %v3442, %v3571
      %v3788 = vsel %vm692, %v3445, %v3578
      %v3789 = vsel %vm692, %v3448, %v3585
      %v3790 = vsel %vm692, %v3451, %v3592
      %v3791 = vsel %vm692, %v3454, %v3599
      %v3792 = vsel %vm692, %v3457, %v3606
      %v3793 = vsel %vm692, %v3460, %v3613
      %v3794 = vsel %vm692, %v3463, %v3620
      %v3795 = vsel %vm692, %v3466, %v3627
      %v3796 = vsel %vm692, %v3469, %v3634
      %v3797 = vsel %vm692, %v3472, %v3641
      %v3798 = vsel %vm692, %v3475, %v3648
      %v3799 = vsel %vm692, %v3478, %v3655
      %v3800 = vsel %vm692, %v3547, %v3707
      %v3801 = vsel %vm692, %v3554, %v3711
      %v3802 = vsel %vm692, %v3561, %v3715
      %v3803 = vsel %vm692, %v3568, %v3719
      %v3804 = vsel %vm692, %v3575, %v3723
      %v3805 = vsel %vm692, %v3582, %v3727
      %v3806 = vsel %vm692, %v3589, %v3731
      %v3807 = vsel %vm692, %v3596, %v3735
      %v3808 = vsel %vm692, %v3603, %v3739
      %v3809 = vsel %vm692, %v3610, %v3743
      %v3810 = vsel %vm692, %v3617, %v3747
      %v3811 = vsel %vm692, %v3624, %v3751
      %v3812 = vsel %vm692, %v3631, %v3755
      %v3813 = vsel %vm692, %v3638, %v3759
      %v3814 = vsel %vm692, %v3645, %v3763
      %v3815 = vsel %vm692, %v3652, %v3767
      %v3848 = vunpack.c.l.b16 %v3784
      %v3849 = vunpack.c.h.b16 %v3784
      %v3850 = vunpack.c.l.b16 %v3800
      %v3851 = vunpack.c.l.b16 %v3785
      %v3852 = vunpack.c.h.b16 %v3785
      %v3853 = vunpack.c.l.b16 %v3801
      %v3854 = vunpack.c.l.b16 %v3786
      %v3855 = vunpack.c.h.b16 %v3786
      %v3856 = vunpack.c.l.b16 %v3802
      %v3857 = vunpack.c.l.b16 %v3787
      %v3858 = vunpack.c.h.b16 %v3787
      %v3859 = vunpack.c.l.b16 %v3803
      %v3860 = vunpack.c.l.b16 %v3788
      %v3861 = vunpack.c.h.b16 %v3788
      %v3862 = vunpack.c.l.b16 %v3804
      %v3863 = vunpack.c.l.b16 %v3789
      %v3864 = vunpack.c.h.b16 %v3789
      %v3865 = vunpack.c.l.b16 %v3805
      %v3866 = vunpack.c.l.b16 %v3790
      %v3867 = vunpack.c.h.b16 %v3790
      %v3868 = vunpack.c.l.b16 %v3806
      %v3869 = vunpack.c.l.b16 %v3791
      %v3870 = vunpack.c.h.b16 %v3791
      %v3871 = vunpack.c.l.b16 %v3807
      %v3872 = vunpack.c.l.b16 %v3792
      %v3873 = vunpack.c.h.b16 %v3792
      %v3874 = vunpack.c.l.b16 %v3808
      %v3875 = vunpack.c.l.b16 %v3793
      %v3876 = vunpack.c.h.b16 %v3793
      %v3877 = vunpack.c.l.b16 %v3809
      %v3878 = vunpack.c.l.b16 %v3794
      %v3879 = vunpack.c.h.b16 %v3794
      %v3880 = vunpack.c.l.b16 %v3810
      %v3881 = vunpack.c.l.b16 %v3795
      %v3882 = vunpack.c.h.b16 %v3795
      %v3883 = vunpack.c.l.b16 %v3811
      %v3884 = vunpack.c.l.b16 %v3796
      %v3885 = vunpack.c.h.b16 %v3796
      %v3886 = vunpack.c.l.b16 %v3812
      %v3887 = vunpack.c.l.b16 %v3797
      %v3888 = vunpack.c.h.b16 %v3797
      %v3889 = vunpack.c.l.b16 %v3813
      %v3890 = vunpack.c.l.b16 %v3798
      %v3891 = vunpack.c.h.b16 %v3798
      %v3892 = vunpack.c.l.b16 %v3814
      %v3893 = vunpack.c.l.b16 %v3799
      %v3894 = vunpack.c.h.b16 %v3799
      %v3895 = vunpack.c.l.b16 %v3815
      %v3896 = vpack.c.b16 %v3848, %v3848
      %v3897 = vpack.c.b16 %v3849, %v3849
      %v3898 = vpack.c.b16 %v3850, %v3850
      %v3899 = vpack.c.b16 %v3851, %v3851
      %v3900 = vpack.c.b16 %v3852, %v3852
      %v3901 = vpack.c.b16 %v3853, %v3853
      %v3902 = vpack.c.b16 %v3854, %v3854
      %v3903 = vpack.c.b16 %v3855, %v3855
      %v3904 = vpack.c.b16 %v3856, %v3856
      %v3905 = vpack.c.b16 %v3857, %v3857
      %v3906 = vpack.c.b16 %v3858, %v3858
      %v3907 = vpack.c.b16 %v3859, %v3859
      %v3908 = vpack.c.b16 %v3860, %v3860
      %v3909 = vpack.c.b16 %v3861, %v3861
      %v3910 = vpack.c.b16 %v3862, %v3862
      %v3911 = vpack.c.b16 %v3863, %v3863
      %v3912 = vpack.c.b16 %v3864, %v3864
      %v3913 = vpack.c.b16 %v3865, %v3865
      %v3914 = vpack.c.b16 %v3866, %v3866
      %v3915 = vpack.c.b16 %v3867, %v3867
      %v3916 = vpack.c.b16 %v3868, %v3868
      %v3917 = vpack.c.b16 %v3869, %v3869
      %v3918 = vpack.c.b16 %v3870, %v3870
      %v3919 = vpack.c.b16 %v3871, %v3871
      %v3920 = vpack.c.b16 %v3872, %v3872
      %v3921 = vpack.c.b16 %v3873, %v3873
      %v3922 = vpack.c.b16 %v3874, %v3874
      %v3923 = vpack.c.b16 %v3875, %v3875
      %v3924 = vpack.c.b16 %v3876, %v3876
      %v3925 = vpack.c.b16 %v3877, %v3877
      %v3926 = vpack.c.b16 %v3878, %v3878
      %v3927 = vpack.c.b16 %v3879, %v3879
      %v3928 = vpack.c.b16 %v3880, %v3880
      %v3929 = vpack.c.b16 %v3881, %v3881
      %v3930 = vpack.c.b16 %v3882, %v3882
      %v3931 = vpack.c.b16 %v3883, %v3883
      %v3932 = vpack.c.b16 %v3884, %v3884
      %v3933 = vpack.c.b16 %v3885, %v3885
      %v3934 = vpack.c.b16 %v3886, %v3886
      %v3935 = vpack.c.b16 %v3887, %v3887
      %v3936 = vpack.c.b16 %v3888, %v3888
      %v3937 = vpack.c.b16 %v3889, %v3889
      %v3938 = vpack.c.b16 %v3890, %v3890
      %v3939 = vpack.c.b16 %v3891, %v3891
      %v3940 = vpack.c.b16 %v3892, %v3892
      %v3941 = vpack.c.b16 %v3893, %v3893
      %v3942 = vpack.c.b16 %v3894, %v3894
      %v3943 = vpack.c.b16 %v3895, %v3895
      %3992 = vst.msk [vmem:[#allocation2] sm:$0xf] %vm901, %v3896
      %3993 = vst.msk [vmem:[#allocation2 + $0x4] sm:$0xf] %vm901, %v3897
      %3994 = vst.msk [vmem:[#allocation2 + $0x8] sm:$0x1] %vm904, %v3898
      %3995 = vst.msk [vmem:[#allocation2 + $0xc] sm:$0xf] %vm901, %v3899
      %3996 = vst.msk [vmem:[#allocation2 + $0x10] sm:$0xf] %vm901, %v3900
      %3997 = vst.msk [vmem:[#allocation2 + $0x14] sm:$0x1] %vm904, %v3901
      %3998 = vst.msk [vmem:[#allocation2 + $0x18] sm:$0xf] %vm901, %v3896
      %3999 = vst.msk [vmem:[#allocation2 + $0x1c] sm:$0xf] %vm901, %v3897
      %4000 = vst.msk [vmem:[#allocation2 + $0x20] sm:$0x1] %vm904, %v3898
      %4001 = vst.msk [vmem:[#allocation2 + $0x24] sm:$0xf] %vm901, %v3902
      %4002 = vst.msk [vmem:[#allocation2 + $0x28] sm:$0xf] %vm901, %v3903
      %4003 = vst.msk [vmem:[#allocation2 + $0x2c] sm:$0x1] %vm904, %v3904
      %4004 = vst.msk [vmem:[#allocation2 + $0x30] sm:$0xf] %vm901, %v3905
      %4005 = vst.msk [vmem:[#allocation2 + $0x34] sm:$0xf] %vm901, %v3906
      %4006 = vst.msk [vmem:[#allocation2 + $0x38] sm:$0x1] %vm904, %v3907
      %4007 = vst.msk [vmem:[#allocation2 + $0x3c] sm:$0xf] %vm901, %v3908
      %4008 = vst.msk [vmem:[#allocation2 + $0x40] sm:$0xf] %vm901, %v3909
      %4009 = vst.msk [vmem:[#allocation2 + $0x44] sm:$0x1] %vm904, %v3910
      %4010 = vst.msk [vmem:[#allocation2 + $0x48] sm:$0xf] %vm901, %v3911
      %4011 = vst.msk [vmem:[#allocation2 + $0x4c] sm:$0xf] %vm901, %v3912
      %4012 = vst.msk [vmem:[#allocation2 + $0x50] sm:$0x1] %vm904, %v3913
      %4013 = vst.msk [vmem:[#allocation2 + $0x54] sm:$0xf] %vm901, %v3914
      %4014 = vst.msk [vmem:[#allocation2 + $0x58] sm:$0xf] %vm901, %v3915
      %4015 = vst.msk [vmem:[#allocation2 + $0x5c] sm:$0x1] %vm904, %v3916
      %4016 = vst.msk [vmem:[#allocation2 + $0x60] sm:$0xf] %vm901, %v3917
      %4017 = vst.msk [vmem:[#allocation2 + $0x64] sm:$0xf] %vm901, %v3918
      %4018 = vst.msk [vmem:[#allocation2 + $0x68] sm:$0x1] %vm904, %v3919
      %4019 = vst.msk [vmem:[#allocation2 + $0x6c] sm:$0xf] %vm901, %v3920
      %4020 = vst.msk [vmem:[#allocation2 + $0x70] sm:$0xf] %vm901, %v3921
      %4021 = vst.msk [vmem:[#allocation2 + $0x74] sm:$0x1] %vm904, %v3922
      %4022 = vst.msk [vmem:[#allocation2 + $0x78] sm:$0xf] %vm901, %v3923
      %4023 = vst.msk [vmem:[#allocation2 + $0x7c] sm:$0xf] %vm901, %v3924
      %4024 = vst.msk [vmem:[#allocation2 + $0x80] sm:$0x1] %vm904, %v3925
      %4025 = vst.msk [vmem:[#allocation2 + $0x84] sm:$0xf] %vm901, %v3926
      %4026 = vst.msk [vmem:[#allocation2 + $0x88] sm:$0xf] %vm901, %v3927
      %4027 = vst.msk [vmem:[#allocation2 + $0x8c] sm:$0x1] %vm904, %v3928
      %4028 = vst.msk [vmem:[#allocation2 + $0x90] sm:$0xf] %vm901, %v3929
      %4029 = vst.msk [vmem:[#allocation2 + $0x94] sm:$0xf] %vm901, %v3930
      %4030 = vst.msk [vmem:[#allocation2 + $0x98] sm:$0x1] %vm904, %v3931
      %4031 = vst.msk [vmem:[#allocation2 + $0x9c] sm:$0xf] %vm901, %v3932
      %4032 = vst.msk [vmem:[#allocation2 + $0xa0] sm:$0xf] %vm901, %v3933
      %4033 = vst.msk [vmem:[#allocation2 + $0xa4] sm:$0x1] %vm904, %v3934
      %4034 = vst.msk [vmem:[#allocation2 + $0xa8] sm:$0xf] %vm901, %v3935
      %4035 = vst.msk [vmem:[#allocation2 + $0xac] sm:$0xf] %vm901, %v3936
      %4036 = vst.msk [vmem:[#allocation2 + $0xb0] sm:$0x1] %vm904, %v3937
      %4037 = vst.msk [vmem:[#allocation2 + $0xb4] sm:$0xf] %vm901, %v3938
      %4038 = vst.msk [vmem:[#allocation2 + $0xb8] sm:$0xf] %vm901, %v3939
      %4039 = vst.msk [vmem:[#allocation2 + $0xbc] sm:$0x1] %vm904, %v3940
      %4040 = vst.msk [vmem:[#allocation2 + $0xc0] sm:$0xf] %vm901, %v3941
      %4041 = vst.msk [vmem:[#allocation2 + $0xc4] sm:$0xf] %vm901, %v3942
      %4042 = vst.msk [vmem:[#allocation2 + $0xc8] sm:$0x1] %vm904, %v3943
      %4043 = vst.msk [vmem:[#allocation2 + $0xcc] sm:$0xf] %vm901, %v3938
      %4044 = vst.msk [vmem:[#allocation2 + $0xd0] sm:$0xf] %vm901, %v3939
      %4045 = vst.msk [vmem:[#allocation2 + $0xd4] sm:$0x1] %vm904, %v3940
      %v4046 = vld [vmem:[%s3] sm:$0xf]
      %v4047 = vld [vmem:[%s3 + $0x4] sm:$0xf]
      %v4048 = vld [vmem:[%s3 + $0x8] sm:$0xf]
      %v4049 = vld [vmem:[%s3 + $0xc] sm:$0xf]
      %v4050 = vld [vmem:[%s3 + $0x10] sm:$0x3]
      %v4051 = vld [vmem:[%s4] sm:$0x1]
      %v4052 = vld [vmem:[#allocation2] sm:$0xf]
      %v4053 = vld [vmem:[#allocation2 + $0x4] sm:$0xf]
      %v4054 = vld [vmem:[#allocation2 + $0xc] sm:$0xf]
      %v4055 = vld [vmem:[#allocation2 + $0x10] sm:$0xf]
      %v4056 = vld [vmem:[#allocation2 + $0x18] sm:$0xf]
      %v4057 = vld [vmem:[#allocation2 + $0x1c] sm:$0xf]
      %v4058 = vld [vmem:[#allocation2 + $0x24] sm:$0xf]
      %v4059 = vld [vmem:[#allocation2 + $0x28] sm:$0xf]
      %v4060 = vld [vmem:[#allocation2 + $0x30] sm:$0xf]
      %v4061 = vld [vmem:[#allocation2 + $0x34] sm:$0xf]
      %v4062 = vld [vmem:[#allocation2 + $0x3c] sm:$0xf]
      %v4063 = vld [vmem:[#allocation2 + $0x40] sm:$0xf]
      %v4064 = vld [vmem:[#allocation2 + $0x48] sm:$0xf]
      %v4065 = vld [vmem:[#allocation2 + $0x4c] sm:$0xf]
      %v4066 = vld [vmem:[#allocation2 + $0x54] sm:$0xf]
      %v4067 = vld [vmem:[#allocation2 + $0x58] sm:$0xf]
      %v4068 = vld [vmem:[#allocation2 + $0x60] sm:$0xf]
      %v4069 = vld [vmem:[#allocation2 + $0x64] sm:$0xf]
      %v4070 = vld [vmem:[#allocation2 + $0x6c] sm:$0xf]
      %v4071 = vld [vmem:[#allocation2 + $0x70] sm:$0xf]
      %v4072 = vld [vmem:[#allocation2 + $0x78] sm:$0xf]
      %v4073 = vld [vmem:[#allocation2 + $0x7c] sm:$0xf]
      %v4074 = vld [vmem:[#allocation2 + $0x84] sm:$0xf]
      %v4075 = vld [vmem:[#allocation2 + $0x88] sm:$0xf]
      %v4076 = vld [vmem:[#allocation2 + $0x90] sm:$0xf]
      %v4077 = vld [vmem:[#allocation2 + $0x94] sm:$0xf]
      %v4078 = vld [vmem:[#allocation2 + $0x9c] sm:$0xf]
      %v4079 = vld [vmem:[#allocation2 + $0xa0] sm:$0xf]
      %v4080 = vld [vmem:[#allocation2 + $0xa8] sm:$0xf]
      %v4081 = vld [vmem:[#allocation2 + $0xac] sm:$0xf]
      %v4082 = vld [vmem:[#allocation2 + $0xb4] sm:$0xf]
      %v4083 = vld [vmem:[#allocation2 + $0xb8] sm:$0xf]
      %v4084 = vld [vmem:[#allocation2 + $0x8] sm:$0x1]
      %v4085 = vld [vmem:[#allocation2 + $0x14] sm:$0x1]
      %v4086 = vld [vmem:[#allocation2 + $0x20] sm:$0x1]
      %v4087 = vld [vmem:[#allocation2 + $0x2c] sm:$0x1]
      %v4088 = vld [vmem:[#allocation2 + $0x38] sm:$0x1]
      %v4089 = vld [vmem:[#allocation2 + $0x44] sm:$0x1]
      %v4090 = vld [vmem:[#allocation2 + $0x50] sm:$0x1]
      %v4091 = vld [vmem:[#allocation2 + $0x5c] sm:$0x1]
      %v4092 = vld [vmem:[#allocation2 + $0x68] sm:$0x1]
      %v4093 = vld [vmem:[#allocation2 + $0x74] sm:$0x1]
      %v4094 = vld [vmem:[#allocation2 + $0x80] sm:$0x1]
      %v4095 = vld [vmem:[#allocation2 + $0x8c] sm:$0x1]
      %v4096 = vld [vmem:[#allocation2 + $0x98] sm:$0x1]
      %v4097 = vld [vmem:[#allocation2 + $0xa4] sm:$0x1]
      %v4098 = vld [vmem:[#allocation2 + $0xb0] sm:$0x1]
      %v4099 = vld [vmem:[#allocation2 + $0xbc] sm:$0x1]
      %v4100 = vld [vmem:[#allocation2] sm:$0xe]
      %v4101 = vld [vmem:[#allocation2 + $0xc] sm:$0xe]
      %v4102 = vld [vmem:[#allocation2 + $0x18] sm:$0xe]
      %v4103 = vld [vmem:[#allocation2 + $0x24] sm:$0xe]
      %v4104 = vld [vmem:[#allocation2 + $0x30] sm:$0xe]
      %v4105 = vld [vmem:[#allocation2 + $0x3c] sm:$0xe]
      %v4106 = vld [vmem:[#allocation2 + $0x48] sm:$0xe]
      %v4107 = vld [vmem:[#allocation2 + $0x54] sm:$0xe]
      %v4108 = vld [vmem:[#allocation2 + $0x60] sm:$0xe]
      %v4109 = vld [vmem:[#allocation2 + $0x6c] sm:$0xe]
      %v4110 = vld [vmem:[#allocation2 + $0x78] sm:$0xe]
      %v4111 = vld [vmem:[#allocation2 + $0x84] sm:$0xe]
      %v4112 = vld [vmem:[#allocation2 + $0x90] sm:$0xe]
      %v4113 = vld [vmem:[#allocation2 + $0x9c] sm:$0xe]
      %v4114 = vld [vmem:[#allocation2 + $0xa8] sm:$0xe]
      %v4115 = vld [vmem:[#allocation2 + $0xb4] sm:$0xe]
      %v4116 = vld [vmem:[%s1027] sm:$0xf]
      %v4117 = vld [vmem:[%s1027 + $0x4] sm:$0xf]
      %v4118 = vld [vmem:[%s1027 + $0xc] sm:$0xf]
      %v4119 = vld [vmem:[%s1027 + $0x10] sm:$0xf]
      %v4120 = vld [vmem:[%s1027 + $0x18] sm:$0xf]
      %v4121 = vld [vmem:[%s1027 + $0x1c] sm:$0xf]
      %v4122 = vld [vmem:[%s1027 + $0x24] sm:$0xf]
      %v4123 = vld [vmem:[%s1027 + $0x28] sm:$0xf]
      %v4124 = vld [vmem:[%s1027 + $0x30] sm:$0xf]
      %v4125 = vld [vmem:[%s1027 + $0x34] sm:$0xf]
      %v4126 = vld [vmem:[%s1027 + $0x3c] sm:$0xf]
      %v4127 = vld [vmem:[%s1027 + $0x40] sm:$0xf]
      %v4128 = vld [vmem:[%s1027 + $0x48] sm:$0xf]
      %v4129 = vld [vmem:[%s1027 + $0x4c] sm:$0xf]
      %v4130 = vld [vmem:[%s1027 + $0x54] sm:$0xf]
      %v4131 = vld [vmem:[%s1027 + $0x58] sm:$0xf]
      %v4132 = vld [vmem:[%s1027 + $0x60] sm:$0xf]
      %v4133 = vld [vmem:[%s1027 + $0x64] sm:$0xf]
      %v4134 = vld [vmem:[%s1027 + $0x6c] sm:$0xf]
      %v4135 = vld [vmem:[%s1027 + $0x70] sm:$0xf]
      %v4136 = vld [vmem:[%s1027 + $0x78] sm:$0xf]
      %v4137 = vld [vmem:[%s1027 + $0x7c] sm:$0xf]
      %v4138 = vld [vmem:[%s1027 + $0x84] sm:$0xf]
      %v4139 = vld [vmem:[%s1027 + $0x88] sm:$0xf]
      %v4140 = vld [vmem:[%s1027 + $0x90] sm:$0xf]
      %v4141 = vld [vmem:[%s1027 + $0x94] sm:$0xf]
      %v4142 = vld [vmem:[%s1027 + $0x9c] sm:$0xf]
      %v4143 = vld [vmem:[%s1027 + $0xa0] sm:$0xf]
      %v4144 = vld [vmem:[%s1027 + $0xa8] sm:$0xf]
      %v4145 = vld [vmem:[%s1027 + $0xac] sm:$0xf]
      %v4146 = vld [vmem:[%s1027 + $0xb4] sm:$0xf]
      %v4147 = vld [vmem:[%s1027 + $0xb8] sm:$0xf]
      %v4148 = vld [vmem:[%s1027 + $0x8] sm:$0x1]
      %v4149 = vld [vmem:[%s1027 + $0x14] sm:$0x1]
      %v4150 = vld [vmem:[%s1027 + $0x20] sm:$0x1]
      %v4151 = vld [vmem:[%s1027 + $0x2c] sm:$0x1]
      %v4152 = vld [vmem:[%s1027 + $0x38] sm:$0x1]
      %v4153 = vld [vmem:[%s1027 + $0x44] sm:$0x1]
      %v4154 = vld [vmem:[%s1027 + $0x50] sm:$0x1]
      %v4155 = vld [vmem:[%s1027 + $0x5c] sm:$0x1]
      %v4156 = vld [vmem:[%s1027 + $0x68] sm:$0x1]
      %v4157 = vld [vmem:[%s1027 + $0x74] sm:$0x1]
      %v4158 = vld [vmem:[%s1027 + $0x80] sm:$0x1]
      %v4159 = vld [vmem:[%s1027 + $0x8c] sm:$0x1]
      %v4160 = vld [vmem:[%s1027 + $0x98] sm:$0x1]
      %v4161 = vld [vmem:[%s1027 + $0xa4] sm:$0x1]
      %v4162 = vld [vmem:[%s1027 + $0xb0] sm:$0x1]
      %v4163 = vld [vmem:[%s1027 + $0xbc] sm:$0x1]
      %v4164 = vld [vmem:[%s1027] sm:$0xe]
      %v4165 = vld [vmem:[%s1027 + $0xc] sm:$0xe]
      %v4166 = vld [vmem:[%s1027 + $0x18] sm:$0xe]
      %v4167 = vld [vmem:[%s1027 + $0x24] sm:$0xe]
      %v4168 = vld [vmem:[%s1027 + $0x30] sm:$0xe]
      %v4169 = vld [vmem:[%s1027 + $0x3c] sm:$0xe]
      %v4170 = vld [vmem:[%s1027 + $0x48] sm:$0xe]
      %v4171 = vld [vmem:[%s1027 + $0x54] sm:$0xe]
      %v4172 = vld [vmem:[%s1027 + $0x60] sm:$0xe]
      %v4173 = vld [vmem:[%s1027 + $0x6c] sm:$0xe]
      %v4174 = vld [vmem:[%s1027 + $0x78] sm:$0xe]
      %v4175 = vld [vmem:[%s1027 + $0x84] sm:$0xe]
      %v4176 = vld [vmem:[%s1027 + $0x90] sm:$0xe]
      %v4177 = vld [vmem:[%s1027 + $0x9c] sm:$0xe]
      %v4178 = vld [vmem:[%s1027 + $0xa8] sm:$0xe]
      %v4179 = vld [vmem:[%s1027 + $0xb4] sm:$0xe]
      %v4180 = vld [vmem:[%s1092] sm:$0xf]
      %v4181 = vld [vmem:[%s1092 + $0x4] sm:$0xf]
      %v4182 = vld [vmem:[%s1092 + $0xc] sm:$0xf]
      %v4183 = vld [vmem:[%s1092 + $0x10] sm:$0xf]
      %v4184 = vld [vmem:[%s1092 + $0x18] sm:$0xf]
      %v4185 = vld [vmem:[%s1092 + $0x1c] sm:$0xf]
      %v4186 = vld [vmem:[%s1092 + $0x24] sm:$0xf]
      %v4187 = vld [vmem:[%s1092 + $0x28] sm:$0xf]
      %v4188 = vld [vmem:[%s1092 + $0x30] sm:$0xf]
      %v4189 = vld [vmem:[%s1092 + $0x34] sm:$0xf]
      %v4190 = vld [vmem:[%s1092 + $0x3c] sm:$0xf]
      %v4191 = vld [vmem:[%s1092 + $0x40] sm:$0xf]
      %v4192 = vld [vmem:[%s1092 + $0x48] sm:$0xf]
      %v4193 = vld [vmem:[%s1092 + $0x4c] sm:$0xf]
      %v4194 = vld [vmem:[%s1092 + $0x54] sm:$0xf]
      %v4195 = vld [vmem:[%s1092 + $0x58] sm:$0xf]
      %v4196 = vld [vmem:[%s1092 + $0x60] sm:$0xf]
      %v4197 = vld [vmem:[%s1092 + $0x64] sm:$0xf]
      %v4198 = vld [vmem:[%s1092 + $0x6c] sm:$0xf]
      %v4199 = vld [vmem:[%s1092 + $0x70] sm:$0xf]
      %v4200 = vld [vmem:[%s1092 + $0x78] sm:$0xf]
      %v4201 = vld [vmem:[%s1092 + $0x7c] sm:$0xf]
      %v4202 = vld [vmem:[%s1092 + $0x84] sm:$0xf]
      %v4203 = vld [vmem:[%s1092 + $0x88] sm:$0xf]
      %v4204 = vld [vmem:[%s1092 + $0x90] sm:$0xf]
      %v4205 = vld [vmem:[%s1092 + $0x94] sm:$0xf]
      %v4206 = vld [vmem:[%s1092 + $0x9c] sm:$0xf]
      %v4207 = vld [vmem:[%s1092 + $0xa0] sm:$0xf]
      %v4208 = vld [vmem:[%s1092 + $0xa8] sm:$0xf]
      %v4209 = vld [vmem:[%s1092 + $0xac] sm:$0xf]
      %v4210 = vld [vmem:[%s1092 + $0xb4] sm:$0xf]
      %v4211 = vld [vmem:[%s1092 + $0xb8] sm:$0xf]
      %v4212 = vld [vmem:[%s1092 + $0x8] sm:$0x1]
      %v4213 = vld [vmem:[%s1092 + $0x14] sm:$0x1]
      %v4214 = vld [vmem:[%s1092 + $0x20] sm:$0x1]
      %v4215 = vld [vmem:[%s1092 + $0x2c] sm:$0x1]
      %v4216 = vld [vmem:[%s1092 + $0x38] sm:$0x1]
      %v4217 = vld [vmem:[%s1092 + $0x44] sm:$0x1]
      %v4218 = vld [vmem:[%s1092 + $0x50] sm:$0x1]
      %v4219 = vld [vmem:[%s1092 + $0x5c] sm:$0x1]
      %v4220 = vld [vmem:[%s1092 + $0x68] sm:$0x1]
      %v4221 = vld [vmem:[%s1092 + $0x74] sm:$0x1]
      %v4222 = vld [vmem:[%s1092 + $0x80] sm:$0x1]
      %v4223 = vld [vmem:[%s1092 + $0x8c] sm:$0x1]
      %v4224 = vld [vmem:[%s1092 + $0x98] sm:$0x1]
      %v4225 = vld [vmem:[%s1092 + $0xa4] sm:$0x1]
      %v4226 = vld [vmem:[%s1092 + $0xb0] sm:$0x1]
      %v4227 = vld [vmem:[%s1092 + $0xbc] sm:$0x1]
      %v4228 = vld [vmem:[%s1092] sm:$0xe]
      %v4229 = vld [vmem:[%s1092 + $0xc] sm:$0xe]
      %v4230 = vld [vmem:[%s1092 + $0x18] sm:$0xe]
      %v4231 = vld [vmem:[%s1092 + $0x24] sm:$0xe]
      %v4232 = vld [vmem:[%s1092 + $0x30] sm:$0xe]
      %v4233 = vld [vmem:[%s1092 + $0x3c] sm:$0xe]
      %v4234 = vld [vmem:[%s1092 + $0x48] sm:$0xe]
      %v4235 = vld [vmem:[%s1092 + $0x54] sm:$0xe]
      %v4236 = vld [vmem:[%s1092 + $0x60] sm:$0xe]
      %v4237 = vld [vmem:[%s1092 + $0x6c] sm:$0xe]
      %v4238 = vld [vmem:[%s1092 + $0x78] sm:$0xe]
      %v4239 = vld [vmem:[%s1092 + $0x84] sm:$0xe]
      %v4240 = vld [vmem:[%s1092 + $0x90] sm:$0xe]
      %v4241 = vld [vmem:[%s1092 + $0x9c] sm:$0xe]
      %v4242 = vld [vmem:[%s1092 + $0xa8] sm:$0xe]
      %v4243 = vld [vmem:[%s1092 + $0xb4] sm:$0xe]
      %v4276 = vunpack.c.l.b16 %v4052
      %v4277 = vunpack.c.l.b16 %v4053
      %v4278 = vunpack.c.l.b16 %v4054
      %v4279 = vunpack.c.l.b16 %v4055
      %v4280 = vunpack.c.l.b16 %v4056
      %v4281 = vunpack.c.l.b16 %v4057
      %v4282 = vunpack.c.l.b16 %v4058
      %v4283 = vunpack.c.l.b16 %v4059
      %v4284 = vunpack.c.l.b16 %v4060
      %v4285 = vunpack.c.l.b16 %v4061
      %v4286 = vunpack.c.l.b16 %v4062
      %v4287 = vunpack.c.l.b16 %v4063
      %v4288 = vunpack.c.l.b16 %v4064
      %v4289 = vunpack.c.l.b16 %v4065
      %v4290 = vunpack.c.l.b16 %v4066
      %v4291 = vunpack.c.l.b16 %v4067
      %v4292 = vunpack.c.l.b16 %v4068
      %v4293 = vunpack.c.l.b16 %v4069
      %v4294 = vunpack.c.l.b16 %v4070
      %v4295 = vunpack.c.l.b16 %v4071
      %v4296 = vunpack.c.l.b16 %v4072
      %v4297 = vunpack.c.l.b16 %v4073
      %v4298 = vunpack.c.l.b16 %v4074
      %v4299 = vunpack.c.l.b16 %v4075
      %v4300 = vunpack.c.l.b16 %v4076
      %v4301 = vunpack.c.l.b16 %v4077
      %v4302 = vunpack.c.l.b16 %v4078
      %v4303 = vunpack.c.l.b16 %v4079
      %v4304 = vunpack.c.l.b16 %v4080
      %v4305 = vunpack.c.l.b16 %v4081
      %v4306 = vunpack.c.l.b16 %v4082
      %v4307 = vunpack.c.l.b16 %v4083
      %v4308 = vpack.c.b16 %v4277, %v4276
      %v4309 = vpack.c.b16 %v4279, %v4278
      %v4310 = vpack.c.b16 %v4281, %v4280
      %v4311 = vpack.c.b16 %v4283, %v4282
      %v4312 = vpack.c.b16 %v4285, %v4284
      %v4313 = vpack.c.b16 %v4287, %v4286
      %v4314 = vpack.c.b16 %v4289, %v4288
      %v4315 = vpack.c.b16 %v4291, %v4290
      %v4316 = vpack.c.b16 %v4293, %v4292
      %v4317 = vpack.c.b16 %v4295, %v4294
      %v4318 = vpack.c.b16 %v4297, %v4296
      %v4319 = vpack.c.b16 %v4299, %v4298
      %v4320 = vpack.c.b16 %v4301, %v4300
      %v4321 = vpack.c.b16 %v4303, %v4302
      %v4322 = vpack.c.b16 %v4305, %v4304
      %v4323 = vpack.c.b16 %v4307, %v4306
      %v4340 = vunpack.c.l.b16 %v4084
      %v4341 = vunpack.c.l.b16 %v4085
      %v4342 = vunpack.c.l.b16 %v4086
      %v4343 = vunpack.c.l.b16 %v4087
      %v4344 = vunpack.c.l.b16 %v4088
      %v4345 = vunpack.c.l.b16 %v4089
      %v4346 = vunpack.c.l.b16 %v4090
      %v4347 = vunpack.c.l.b16 %v4091
      %v4348 = vunpack.c.l.b16 %v4092
      %v4349 = vunpack.c.l.b16 %v4093
      %v4350 = vunpack.c.l.b16 %v4094
      %v4351 = vunpack.c.l.b16 %v4095
      %v4352 = vunpack.c.l.b16 %v4096
      %v4353 = vunpack.c.l.b16 %v4097
      %v4354 = vunpack.c.l.b16 %v4098
      %v4355 = vunpack.c.l.b16 %v4099
      %v4356 = vpack.c.b16 %v4340, %v4340
      %v4357 = vpack.c.b16 %v4341, %v4341
      %v4358 = vpack.c.b16 %v4342, %v4342
      %v4359 = vpack.c.b16 %v4343, %v4343
      %v4360 = vpack.c.b16 %v4344, %v4344
      %v4361 = vpack.c.b16 %v4345, %v4345
      %v4362 = vpack.c.b16 %v4346, %v4346
      %v4363 = vpack.c.b16 %v4347, %v4347
      %v4364 = vpack.c.b16 %v4348, %v4348
      %v4365 = vpack.c.b16 %v4349, %v4349
      %v4366 = vpack.c.b16 %v4350, %v4350
      %v4367 = vpack.c.b16 %v4351, %v4351
      %v4368 = vpack.c.b16 %v4352, %v4352
      %v4369 = vpack.c.b16 %v4353, %v4353
      %v4370 = vpack.c.b16 %v4354, %v4354
      %v4371 = vpack.c.b16 %v4355, %v4355
      %v4373 = vshrl.u32 %v4308, 16
      %v4375 = vshll.u32 %v4308, 16
      %v4377 = vrot.slane %v4375, 1
      %v4378 = vor.u32 %v4373, %v4377
      %v4380 = vshll.u32 %v4356, 16
      %v4382 = vrot.slane %v4380, 1
      %v4383 = vsel %vm1285, %v4378, %v4382
      %v4385 = vshrl.u32 %v4309, 16
      %v4387 = vshll.u32 %v4309, 16
      %v4389 = vrot.slane %v4387, 1
      %v4390 = vor.u32 %v4385, %v4389
      %v4392 = vshll.u32 %v4357, 16
      %v4394 = vrot.slane %v4392, 1
      %v4395 = vsel %vm1285, %v4390, %v4394
      %v4397 = vshrl.u32 %v4310, 16
      %v4399 = vshll.u32 %v4310, 16
      %v4401 = vrot.slane %v4399, 1
      %v4402 = vor.u32 %v4397, %v4401
      %v4404 = vshll.u32 %v4358, 16
      %v4406 = vrot.slane %v4404, 1
      %v4407 = vsel %vm1285, %v4402, %v4406
      %v4409 = vshrl.u32 %v4311, 16
      %v4411 = vshll.u32 %v4311, 16
      %v4413 = vrot.slane %v4411, 1
      %v4414 = vor.u32 %v4409, %v4413
      %v4416 = vshll.u32 %v4359, 16
      %v4418 = vrot.slane %v4416, 1
      %v4419 = vsel %vm1285, %v4414, %v4418
      %v4421 = vshrl.u32 %v4312, 16
      %v4423 = vshll.u32 %v4312, 16
      %v4425 = vrot.slane %v4423, 1
      %v4426 = vor.u32 %v4421, %v4425
      %v4428 = vshll.u32 %v4360, 16
      %v4430 = vrot.slane %v4428, 1
      %v4431 = vsel %vm1285, %v4426, %v4430
      %v4433 = vshrl.u32 %v4313, 16
      %v4435 = vshll.u32 %v4313, 16
      %v4437 = vrot.slane %v4435, 1
      %v4438 = vor.u32 %v4433, %v4437
      %v4440 = vshll.u32 %v4361, 16
      %v4442 = vrot.slane %v4440, 1
      %v4443 = vsel %vm1285, %v4438, %v4442
      %v4445 = vshrl.u32 %v4314, 16
      %v4447 = vshll.u32 %v4314, 16
      %v4449 = vrot.slane %v4447, 1
      %v4450 = vor.u32 %v4445, %v4449
      %v4452 = vshll.u32 %v4362, 16
      %v4454 = vrot.slane %v4452, 1
      %v4455 = vsel %vm1285, %v4450, %v4454
      %v4457 = vshrl.u32 %v4315, 16
      %v4459 = vshll.u32 %v4315, 16
      %v4461 = vrot.slane %v4459, 1
      %v4462 = vor.u32 %v4457, %v4461
      %v4464 = vshll.u32 %v4363, 16
      %v4466 = vrot.slane %v4464, 1
      %v4467 = vsel %vm1285, %v4462, %v4466
      %v4469 = vshrl.u32 %v4316, 16
      %v4471 = vshll.u32 %v4316, 16
      %v4473 = vrot.slane %v4471, 1
      %v4474 = vor.u32 %v4469, %v4473
      %v4476 = vshll.u32 %v4364, 16
      %v4478 = vrot.slane %v4476, 1
      %v4479 = vsel %vm1285, %v4474, %v4478
      %v4481 = vshrl.u32 %v4317, 16
      %v4483 = vshll.u32 %v4317, 16
      %v4485 = vrot.slane %v4483, 1
      %v4486 = vor.u32 %v4481, %v4485
      %v4488 = vshll.u32 %v4365, 16
      %v4490 = vrot.slane %v4488, 1
      %v4491 = vsel %vm1285, %v4486, %v4490
      %v4493 = vshrl.u32 %v4318, 16
      %v4495 = vshll.u32 %v4318, 16
      %v4497 = vrot.slane %v4495, 1
      %v4498 = vor.u32 %v4493, %v4497
      %v4500 = vshll.u32 %v4366, 16
      %v4502 = vrot.slane %v4500, 1
      %v4503 = vsel %vm1285, %v4498, %v4502
      %v4505 = vshrl.u32 %v4319, 16
      %v4507 = vshll.u32 %v4319, 16
      %v4509 = vrot.slane %v4507, 1
      %v4510 = vor.u32 %v4505, %v4509
      %v4512 = vshll.u32 %v4367, 16
      %v4514 = vrot.slane %v4512, 1
      %v4515 = vsel %vm1285, %v4510, %v4514
      %v4517 = vshrl.u32 %v4320, 16
      %v4519 = vshll.u32 %v4320, 16
      %v4521 = vrot.slane %v4519, 1
      %v4522 = vor.u32 %v4517, %v4521
      %v4524 = vshll.u32 %v4368, 16
      %v4526 = vrot.slane %v4524, 1
      %v4527 = vsel %vm1285, %v4522, %v4526
      %v4529 = vshrl.u32 %v4321, 16
      %v4531 = vshll.u32 %v4321, 16
      %v4533 = vrot.slane %v4531, 1
      %v4534 = vor.u32 %v4529, %v4533
      %v4536 = vshll.u32 %v4369, 16
      %v4538 = vrot.slane %v4536, 1
      %v4539 = vsel %vm1285, %v4534, %v4538
      %v4541 = vshrl.u32 %v4322, 16
      %v4543 = vshll.u32 %v4322, 16
      %v4545 = vrot.slane %v4543, 1
      %v4546 = vor.u32 %v4541, %v4545
      %v4548 = vshll.u32 %v4370, 16
      %v4550 = vrot.slane %v4548, 1
      %v4551 = vsel %vm1285, %v4546, %v4550
      %v4553 = vshrl.u32 %v4323, 16
      %v4555 = vshll.u32 %v4323, 16
      %v4557 = vrot.slane %v4555, 1
      %v4558 = vor.u32 %v4553, %v4557
      %v4560 = vshll.u32 %v4371, 16
      %v4562 = vrot.slane %v4560, 1
      %v4563 = vsel %vm1285, %v4558, %v4562
      %4564 = vrot.lane.b32.xlu0 %v4383, 4
      %v4565 = vpop.permute.xlu0 %4564
      %4566 = vrot.lane.b32.xlu0 %v4395, 4
      %v4567 = vpop.permute.xlu0 %4566
      %4568 = vrot.lane.b32.xlu0 %v4407, 4
      %v4569 = vpop.permute.xlu0 %4568
      %4570 = vrot.lane.b32.xlu0 %v4419, 4
      %v4571 = vpop.permute.xlu0 %4570
      %4572 = vrot.lane.b32.xlu0 %v4431, 4
      %v4573 = vpop.permute.xlu0 %4572
      %4574 = vrot.lane.b32.xlu0 %v4443, 4
      %v4575 = vpop.permute.xlu0 %4574
      %4576 = vrot.lane.b32.xlu0 %v4455, 4
      %v4577 = vpop.permute.xlu0 %4576
      %4578 = vrot.lane.b32.xlu0 %v4467, 4
      %v4579 = vpop.permute.xlu0 %4578
      %4580 = vrot.lane.b32.xlu0 %v4479, 4
      %v4581 = vpop.permute.xlu0 %4580
      %4582 = vrot.lane.b32.xlu0 %v4491, 4
      %v4583 = vpop.permute.xlu0 %4582
      %4584 = vrot.lane.b32.xlu0 %v4503, 4
      %v4585 = vpop.permute.xlu0 %4584
      %4586 = vrot.lane.b32.xlu0 %v4515, 4
      %v4587 = vpop.permute.xlu0 %4586
      %4588 = vrot.lane.b32.xlu0 %v4527, 4
      %v4589 = vpop.permute.xlu0 %4588
      %4590 = vrot.lane.b32.xlu0 %v4539, 4
      %v4591 = vpop.permute.xlu0 %4590
      %4592 = vrot.lane.b32.xlu0 %v4551, 4
      %v4593 = vpop.permute.xlu0 %4592
      %4594 = vrot.lane.b32.xlu0 %v4563, 4
      %v4595 = vpop.permute.xlu0 %4594
      %v4612 = vunpack.c.l.b16 %v4100
      %v4613 = vunpack.c.l.b16 %v4101
      %v4614 = vunpack.c.l.b16 %v4102
      %v4615 = vunpack.c.l.b16 %v4103
      %v4616 = vunpack.c.l.b16 %v4104
      %v4617 = vunpack.c.l.b16 %v4105
      %v4618 = vunpack.c.l.b16 %v4106
      %v4619 = vunpack.c.l.b16 %v4107
      %v4620 = vunpack.c.l.b16 %v4108
      %v4621 = vunpack.c.l.b16 %v4109
      %v4622 = vunpack.c.l.b16 %v4110
      %v4623 = vunpack.c.l.b16 %v4111
      %v4624 = vunpack.c.l.b16 %v4112
      %v4625 = vunpack.c.l.b16 %v4113
      %v4626 = vunpack.c.l.b16 %v4114
      %v4627 = vunpack.c.l.b16 %v4115
      %v4628 = vpack.c.b16 %v4277, %v4612
      %v4629 = vpack.c.b16 %v4279, %v4613
      %v4630 = vpack.c.b16 %v4281, %v4614
      %v4631 = vpack.c.b16 %v4283, %v4615
      %v4632 = vpack.c.b16 %v4285, %v4616
      %v4633 = vpack.c.b16 %v4287, %v4617
      %v4634 = vpack.c.b16 %v4289, %v4618
      %v4635 = vpack.c.b16 %v4291, %v4619
      %v4636 = vpack.c.b16 %v4293, %v4620
      %v4637 = vpack.c.b16 %v4295, %v4621
      %v4638 = vpack.c.b16 %v4297, %v4622
      %v4639 = vpack.c.b16 %v4299, %v4623
      %v4640 = vpack.c.b16 %v4301, %v4624
      %v4641 = vpack.c.b16 %v4303, %v4625
      %v4642 = vpack.c.b16 %v4305, %v4626
      %v4643 = vpack.c.b16 %v4307, %v4627
      %v4644 = vrot.slane %v4628, 1
      %v4645 = vrot.slane %v4356, 1
      %v4646 = vsel %vm1558, %v4644, %v4645
      %v4647 = vrot.slane %v4629, 1
      %v4648 = vrot.slane %v4357, 1
      %v4649 = vsel %vm1558, %v4647, %v4648
      %v4650 = vrot.slane %v4630, 1
      %v4651 = vrot.slane %v4358, 1
      %v4652 = vsel %vm1558, %v4650, %v4651
      %v4653 = vrot.slane %v4631, 1
      %v4654 = vrot.slane %v4359, 1
      %v4655 = vsel %vm1558, %v4653, %v4654
      %v4656 = vrot.slane %v4632, 1
      %v4657 = vrot.slane %v4360, 1
      %v4658 = vsel %vm1558, %v4656, %v4657
      %v4659 = vrot.slane %v4633, 1
      %v4660 = vrot.slane %v4361, 1
      %v4661 = vsel %vm1558, %v4659, %v4660
      %v4662 = vrot.slane %v4634, 1
      %v4663 = vrot.slane %v4362, 1
      %v4664 = vsel %vm1558, %v4662, %v4663
      %v4665 = vrot.slane %v4635, 1
      %v4666 = vrot.slane %v4363, 1
      %v4667 = vsel %vm1558, %v4665, %v4666
      %v4668 = vrot.slane %v4636, 1
      %v4669 = vrot.slane %v4364, 1
      %v4670 = vsel %vm1558, %v4668, %v4669
      %v4671 = vrot.slane %v4637, 1
      %v4672 = vrot.slane %v4365, 1
      %v4673 = vsel %vm1558, %v4671, %v4672
      %v4674 = vrot.slane %v4638, 1
      %v4675 = vrot.slane %v4366, 1
      %v4676 = vsel %vm1558, %v4674, %v4675
      %v4677 = vrot.slane %v4639, 1
      %v4678 = vrot.slane %v4367, 1
      %v4679 = vsel %vm1558, %v4677, %v4678
      %v4680 = vrot.slane %v4640, 1
      %v4681 = vrot.slane %v4368, 1
      %v4682 = vsel %vm1558, %v4680, %v4681
      %v4683 = vrot.slane %v4641, 1
      %v4684 = vrot.slane %v4369, 1
      %v4685 = vsel %vm1558, %v4683, %v4684
      %v4686 = vrot.slane %v4642, 1
      %v4687 = vrot.slane %v4370, 1
      %v4688 = vsel %vm1558, %v4686, %v4687
      %v4689 = vrot.slane %v4643, 1
      %v4690 = vrot.slane %v4371, 1
      %v4691 = vsel %vm1558, %v4689, %v4690
      %4692 = vrot.lane.b32.xlu0 %v4646, 8
      %v4693 = vpop.permute.xlu0 %4692
      %4694 = vrot.lane.b32.xlu0 %v4649, 8
      %v4695 = vpop.permute.xlu0 %4694
      %4696 = vrot.lane.b32.xlu0 %v4652, 8
      %v4697 = vpop.permute.xlu0 %4696
      %4698 = vrot.lane.b32.xlu0 %v4655, 8
      %v4699 = vpop.permute.xlu0 %4698
      %4700 = vrot.lane.b32.xlu0 %v4658, 8
      %v4701 = vpop.permute.xlu0 %4700
      %4702 = vrot.lane.b32.xlu0 %v4661, 8
      %v4703 = vpop.permute.xlu0 %4702
      %4704 = vrot.lane.b32.xlu0 %v4664, 8
      %v4705 = vpop.permute.xlu0 %4704
      %4706 = vrot.lane.b32.xlu0 %v4667, 8
      %v4707 = vpop.permute.xlu0 %4706
      %4708 = vrot.lane.b32.xlu0 %v4670, 8
      %v4709 = vpop.permute.xlu0 %4708
      %4710 = vrot.lane.b32.xlu0 %v4673, 8
      %v4711 = vpop.permute.xlu0 %4710
      %4712 = vrot.lane.b32.xlu0 %v4676, 8
      %v4713 = vpop.permute.xlu0 %4712
      %4714 = vrot.lane.b32.xlu0 %v4679, 8
      %v4715 = vpop.permute.xlu0 %4714
      %4716 = vrot.lane.b32.xlu0 %v4682, 8
      %v4717 = vpop.permute.xlu0 %4716
      %4718 = vrot.lane.b32.xlu0 %v4685, 8
      %v4719 = vpop.permute.xlu0 %4718
      %4720 = vrot.lane.b32.xlu0 %v4688, 8
      %v4721 = vpop.permute.xlu0 %4720
      %4722 = vrot.lane.b32.xlu0 %v4691, 8
      %v4723 = vpop.permute.xlu0 %4722
      %v4756 = vunpack.c.l.b16 %v4116
      %v4757 = vunpack.c.l.b16 %v4117
      %v4758 = vunpack.c.l.b16 %v4118
      %v4759 = vunpack.c.l.b16 %v4119
      %v4760 = vunpack.c.l.b16 %v4120
      %v4761 = vunpack.c.l.b16 %v4121
      %v4762 = vunpack.c.l.b16 %v4122
      %v4763 = vunpack.c.l.b16 %v4123
      %v4764 = vunpack.c.l.b16 %v4124
      %v4765 = vunpack.c.l.b16 %v4125
      %v4766 = vunpack.c.l.b16 %v4126
      %v4767 = vunpack.c.l.b16 %v4127
      %v4768 = vunpack.c.l.b16 %v4128
      %v4769 = vunpack.c.l.b16 %v4129
      %v4770 = vunpack.c.l.b16 %v4130
      %v4771 = vunpack.c.l.b16 %v4131
      %v4772 = vunpack.c.l.b16 %v4132
      %v4773 = vunpack.c.l.b16 %v4133
      %v4774 = vunpack.c.l.b16 %v4134
      %v4775 = vunpack.c.l.b16 %v4135
      %v4776 = vunpack.c.l.b16 %v4136
      %v4777 = vunpack.c.l.b16 %v4137
      %v4778 = vunpack.c.l.b16 %v4138
      %v4779 = vunpack.c.l.b16 %v4139
      %v4780 = vunpack.c.l.b16 %v4140
      %v4781 = vunpack.c.l.b16 %v4141
      %v4782 = vunpack.c.l.b16 %v4142
      %v4783 = vunpack.c.l.b16 %v4143
      %v4784 = vunpack.c.l.b16 %v4144
      %v4785 = vunpack.c.l.b16 %v4145
      %v4786 = vunpack.c.l.b16 %v4146
      %v4787 = vunpack.c.l.b16 %v4147
      %v4788 = vpack.c.b16 %v4757, %v4756
      %v4789 = vpack.c.b16 %v4759, %v4758
      %v4790 = vpack.c.b16 %v4761, %v4760
      %v4791 = vpack.c.b16 %v4763, %v4762
      %v4792 = vpack.c.b16 %v4765, %v4764
      %v4793 = vpack.c.b16 %v4767, %v4766
      %v4794 = vpack.c.b16 %v4769, %v4768
      %v4795 = vpack.c.b16 %v4771, %v4770
      %v4796 = vpack.c.b16 %v4773, %v4772
      %v4797 = vpack.c.b16 %v4775, %v4774
      %v4798 = vpack.c.b16 %v4777, %v4776
      %v4799 = vpack.c.b16 %v4779, %v4778
      %v4800 = vpack.c.b16 %v4781, %v4780
      %v4801 = vpack.c.b16 %v4783, %v4782
      %v4802 = vpack.c.b16 %v4785, %v4784
      %v4803 = vpack.c.b16 %v4787, %v4786
      %4804 = vrot.lane.b32.xlu0 %v4788, 12
      %v4805 = vpop.permute.xlu0 %4804
      %4806 = vrot.lane.b32.xlu0 %v4789, 12
      %v4807 = vpop.permute.xlu0 %4806
      %4808 = vrot.lane.b32.xlu0 %v4790, 12
      %v4809 = vpop.permute.xlu0 %4808
      %4810 = vrot.lane.b32.xlu0 %v4791, 12
      %v4811 = vpop.permute.xlu0 %4810
      %4812 = vrot.lane.b32.xlu0 %v4792, 12
      %v4813 = vpop.permute.xlu0 %4812
      %4814 = vrot.lane.b32.xlu0 %v4793, 12
      %v4815 = vpop.permute.xlu0 %4814
      %4816 = vrot.lane.b32.xlu0 %v4794, 12
      %v4817 = vpop.permute.xlu0 %4816
      %4818 = vrot.lane.b32.xlu0 %v4795, 12
      %v4819 = vpop.permute.xlu0 %4818
      %4820 = vrot.lane.b32.xlu0 %v4796, 12
      %v4821 = vpop.permute.xlu0 %4820
      %4822 = vrot.lane.b32.xlu0 %v4797, 12
      %v4823 = vpop.permute.xlu0 %4822
      %4824 = vrot.lane.b32.xlu0 %v4798, 12
      %v4825 = vpop.permute.xlu0 %4824
      %4826 = vrot.lane.b32.xlu0 %v4799, 12
      %v4827 = vpop.permute.xlu0 %4826
      %4828 = vrot.lane.b32.xlu0 %v4800, 12
      %v4829 = vpop.permute.xlu0 %4828
      %4830 = vrot.lane.b32.xlu0 %v4801, 12
      %v4831 = vpop.permute.xlu0 %4830
      %4832 = vrot.lane.b32.xlu0 %v4802, 12
      %v4833 = vpop.permute.xlu0 %4832
      %4834 = vrot.lane.b32.xlu0 %v4803, 12
      %v4835 = vpop.permute.xlu0 %4834
      %v4852 = vunpack.c.l.b16 %v4148
      %v4853 = vunpack.c.l.b16 %v4149
      %v4854 = vunpack.c.l.b16 %v4150
      %v4855 = vunpack.c.l.b16 %v4151
      %v4856 = vunpack.c.l.b16 %v4152
      %v4857 = vunpack.c.l.b16 %v4153
      %v4858 = vunpack.c.l.b16 %v4154
      %v4859 = vunpack.c.l.b16 %v4155
      %v4860 = vunpack.c.l.b16 %v4156
      %v4861 = vunpack.c.l.b16 %v4157
      %v4862 = vunpack.c.l.b16 %v4158
      %v4863 = vunpack.c.l.b16 %v4159
      %v4864 = vunpack.c.l.b16 %v4160
      %v4865 = vunpack.c.l.b16 %v4161
      %v4866 = vunpack.c.l.b16 %v4162
      %v4867 = vunpack.c.l.b16 %v4163
      %v4868 = vpack.c.b16 %v4852, %v4852
      %v4869 = vpack.c.b16 %v4853, %v4853
      %v4870 = vpack.c.b16 %v4854, %v4854
      %v4871 = vpack.c.b16 %v4855, %v4855
      %v4872 = vpack.c.b16 %v4856, %v4856
      %v4873 = vpack.c.b16 %v4857, %v4857
      %v4874 = vpack.c.b16 %v4858, %v4858
      %v4875 = vpack.c.b16 %v4859, %v4859
      %v4876 = vpack.c.b16 %v4860, %v4860
      %v4877 = vpack.c.b16 %v4861, %v4861
      %v4878 = vpack.c.b16 %v4862, %v4862
      %v4879 = vpack.c.b16 %v4863, %v4863
      %v4880 = vpack.c.b16 %v4864, %v4864
      %v4881 = vpack.c.b16 %v4865, %v4865
      %v4882 = vpack.c.b16 %v4866, %v4866
      %v4883 = vpack.c.b16 %v4867, %v4867
      %v4885 = vshrl.u32 %v4788, 16
      %v4887 = vshll.u32 %v4788, 16
      %v4889 = vrot.slane %v4887, 1
      %v4890 = vor.u32 %v4885, %v4889
      %v4892 = vshll.u32 %v4868, 16
      %v4894 = vrot.slane %v4892, 1
      %v4895 = vsel %vm1285, %v4890, %v4894
      %v4897 = vshrl.u32 %v4789, 16
      %v4899 = vshll.u32 %v4789, 16
      %v4901 = vrot.slane %v4899, 1
      %v4902 = vor.u32 %v4897, %v4901
      %v4904 = vshll.u32 %v4869, 16
      %v4906 = vrot.slane %v4904, 1
      %v4907 = vsel %vm1285, %v4902, %v4906
      %v4909 = vshrl.u32 %v4790, 16
      %v4911 = vshll.u32 %v4790, 16
      %v4913 = vrot.slane %v4911, 1
      %v4914 = vor.u32 %v4909, %v4913
      %v4916 = vshll.u32 %v4870, 16
      %v4918 = vrot.slane %v4916, 1
      %v4919 = vsel %vm1285, %v4914, %v4918
      %v4921 = vshrl.u32 %v4791, 16
      %v4923 = vshll.u32 %v4791, 16
      %v4925 = vrot.slane %v4923, 1
      %v4926 = vor.u32 %v4921, %v4925
      %v4928 = vshll.u32 %v4871, 16
      %v4930 = vrot.slane %v4928, 1
      %v4931 = vsel %vm1285, %v4926, %v4930
      %v4933 = vshrl.u32 %v4792, 16
      %v4935 = vshll.u32 %v4792, 16
      %v4937 = vrot.slane %v4935, 1
      %v4938 = vor.u32 %v4933, %v4937
      %v4940 = vshll.u32 %v4872, 16
      %v4942 = vrot.slane %v4940, 1
      %v4943 = vsel %vm1285, %v4938, %v4942
      %v4945 = vshrl.u32 %v4793, 16
      %v4947 = vshll.u32 %v4793, 16
      %v4949 = vrot.slane %v4947, 1
      %v4950 = vor.u32 %v4945, %v4949
      %v4952 = vshll.u32 %v4873, 16
      %v4954 = vrot.slane %v4952, 1
      %v4955 = vsel %vm1285, %v4950, %v4954
      %v4957 = vshrl.u32 %v4794, 16
      %v4959 = vshll.u32 %v4794, 16
      %v4961 = vrot.slane %v4959, 1
      %v4962 = vor.u32 %v4957, %v4961
      %v4964 = vshll.u32 %v4874, 16
      %v4966 = vrot.slane %v4964, 1
      %v4967 = vsel %vm1285, %v4962, %v4966
      %v4969 = vshrl.u32 %v4795, 16
      %v4971 = vshll.u32 %v4795, 16
      %v4973 = vrot.slane %v4971, 1
      %v4974 = vor.u32 %v4969, %v4973
      %v4976 = vshll.u32 %v4875, 16
      %v4978 = vrot.slane %v4976, 1
      %v4979 = vsel %vm1285, %v4974, %v4978
      %v4981 = vshrl.u32 %v4796, 16
      %v4983 = vshll.u32 %v4796, 16
      %v4985 = vrot.slane %v4983, 1
      %v4986 = vor.u32 %v4981, %v4985
      %v4988 = vshll.u32 %v4876, 16
      %v4990 = vrot.slane %v4988, 1
      %v4991 = vsel %vm1285, %v4986, %v4990
      %v4993 = vshrl.u32 %v4797, 16
      %v4995 = vshll.u32 %v4797, 16
      %v4997 = vrot.slane %v4995, 1
      %v4998 = vor.u32 %v4993, %v4997
      %v5000 = vshll.u32 %v4877, 16
      %v5002 = vrot.slane %v5000, 1
      %v5003 = vsel %vm1285, %v4998, %v5002
      %v5005 = vshrl.u32 %v4798, 16
      %v5007 = vshll.u32 %v4798, 16
      %v5009 = vrot.slane %v5007, 1
      %v5010 = vor.u32 %v5005, %v5009
      %v5012 = vshll.u32 %v4878, 16
      %v5014 = vrot.slane %v5012, 1
      %v5015 = vsel %vm1285, %v5010, %v5014
      %v5017 = vshrl.u32 %v4799, 16
      %v5019 = vshll.u32 %v4799, 16
      %v5021 = vrot.slane %v5019, 1
      %v5022 = vor.u32 %v5017, %v5021
      %v5024 = vshll.u32 %v4879, 16
      %v5026 = vrot.slane %v5024, 1
      %v5027 = vsel %vm1285, %v5022, %v5026
      %v5029 = vshrl.u32 %v4800, 16
      %v5031 = vshll.u32 %v4800, 16
      %v5033 = vrot.slane %v5031, 1
      %v5034 = vor.u32 %v5029, %v5033
      %v5036 = vshll.u32 %v4880, 16
      %v5038 = vrot.slane %v5036, 1
      %v5039 = vsel %vm1285, %v5034, %v5038
      %v5041 = vshrl.u32 %v4801, 16
      %v5043 = vshll.u32 %v4801, 16
      %v5045 = vrot.slane %v5043, 1
      %v5046 = vor.u32 %v5041, %v5045
      %v5048 = vshll.u32 %v4881, 16
      %v5050 = vrot.slane %v5048, 1
      %v5051 = vsel %vm1285, %v5046, %v5050
      %v5053 = vshrl.u32 %v4802, 16
      %v5055 = vshll.u32 %v4802, 16
      %v5057 = vrot.slane %v5055, 1
      %v5058 = vor.u32 %v5053, %v5057
      %v5060 = vshll.u32 %v4882, 16
      %v5062 = vrot.slane %v5060, 1
      %v5063 = vsel %vm1285, %v5058, %v5062
      %v5065 = vshrl.u32 %v4803, 16
      %v5067 = vshll.u32 %v4803, 16
      %v5069 = vrot.slane %v5067, 1
      %v5070 = vor.u32 %v5065, %v5069
      %v5072 = vshll.u32 %v4883, 16
      %v5074 = vrot.slane %v5072, 1
      %v5075 = vsel %vm1285, %v5070, %v5074
      %5076 = vrot.lane.b32.xlu0 %v4895, 16
      %v5077 = vpop.permute.xlu0 %5076
      %5078 = vrot.lane.b32.xlu0 %v4907, 16
      %v5079 = vpop.permute.xlu0 %5078
      %5080 = vrot.lane.b32.xlu0 %v4919, 16
      %v5081 = vpop.permute.xlu0 %5080
      %5082 = vrot.lane.b32.xlu0 %v4931, 16
      %v5083 = vpop.permute.xlu0 %5082
      %5084 = vrot.lane.b32.xlu0 %v4943, 16
      %v5085 = vpop.permute.xlu0 %5084
      %5086 = vrot.lane.b32.xlu0 %v4955, 16
      %v5087 = vpop.permute.xlu0 %5086
      %5088 = vrot.lane.b32.xlu0 %v4967, 16
      %v5089 = vpop.permute.xlu0 %5088
      %5090 = vrot.lane.b32.xlu0 %v4979, 16
      %v5091 = vpop.permute.xlu0 %5090
      %5092 = vrot.lane.b32.xlu0 %v4991, 16
      %v5093 = vpop.permute.xlu0 %5092
      %5094 = vrot.lane.b32.xlu0 %v5003, 16
      %v5095 = vpop.permute.xlu0 %5094
      %5096 = vrot.lane.b32.xlu0 %v5015, 16
      %v5097 = vpop.permute.xlu0 %5096
      %5098 = vrot.lane.b32.xlu0 %v5027, 16
      %v5099 = vpop.permute.xlu0 %5098
      %5100 = vrot.lane.b32.xlu0 %v5039, 16
      %v5101 = vpop.permute.xlu0 %5100
      %5102 = vrot.lane.b32.xlu0 %v5051, 16
      %v5103 = vpop.permute.xlu0 %5102
      %5104 = vrot.lane.b32.xlu0 %v5063, 16
      %v5105 = vpop.permute.xlu0 %5104
      %5106 = vrot.lane.b32.xlu0 %v5075, 16
      %v5107 = vpop.permute.xlu0 %5106
      %v5124 = vunpack.c.l.b16 %v4164
      %v5125 = vunpack.c.l.b16 %v4165
      %v5126 = vunpack.c.l.b16 %v4166
      %v5127 = vunpack.c.l.b16 %v4167
      %v5128 = vunpack.c.l.b16 %v4168
      %v5129 = vunpack.c.l.b16 %v4169
      %v5130 = vunpack.c.l.b16 %v4170
      %v5131 = vunpack.c.l.b16 %v4171
      %v5132 = vunpack.c.l.b16 %v4172
      %v5133 = vunpack.c.l.b16 %v4173
      %v5134 = vunpack.c.l.b16 %v4174
      %v5135 = vunpack.c.l.b16 %v4175
      %v5136 = vunpack.c.l.b16 %v4176
      %v5137 = vunpack.c.l.b16 %v4177
      %v5138 = vunpack.c.l.b16 %v4178
      %v5139 = vunpack.c.l.b16 %v4179
      %v5140 = vpack.c.b16 %v4757, %v5124
      %v5141 = vpack.c.b16 %v4759, %v5125
      %v5142 = vpack.c.b16 %v4761, %v5126
      %v5143 = vpack.c.b16 %v4763, %v5127
      %v5144 = vpack.c.b16 %v4765, %v5128
      %v5145 = vpack.c.b16 %v4767, %v5129
      %v5146 = vpack.c.b16 %v4769, %v5130
      %v5147 = vpack.c.b16 %v4771, %v5131
      %v5148 = vpack.c.b16 %v4773, %v5132
      %v5149 = vpack.c.b16 %v4775, %v5133
      %v5150 = vpack.c.b16 %v4777, %v5134
      %v5151 = vpack.c.b16 %v4779, %v5135
      %v5152 = vpack.c.b16 %v4781, %v5136
      %v5153 = vpack.c.b16 %v4783, %v5137
      %v5154 = vpack.c.b16 %v4785, %v5138
      %v5155 = vpack.c.b16 %v4787, %v5139
      %v5156 = vrot.slane %v5140, 1
      %v5157 = vrot.slane %v4868, 1
      %v5158 = vsel %vm1558, %v5156, %v5157
      %v5159 = vrot.slane %v5141, 1
      %v5160 = vrot.slane %v4869, 1
      %v5161 = vsel %vm1558, %v5159, %v5160
      %v5162 = vrot.slane %v5142, 1
      %v5163 = vrot.slane %v4870, 1
      %v5164 = vsel %vm1558, %v5162, %v5163
      %v5165 = vrot.slane %v5143, 1
      %v5166 = vrot.slane %v4871, 1
      %v5167 = vsel %vm1558, %v5165, %v5166
      %v5168 = vrot.slane %v5144, 1
      %v5169 = vrot.slane %v4872, 1
      %v5170 = vsel %vm1558, %v5168, %v5169
      %v5171 = vrot.slane %v5145, 1
      %v5172 = vrot.slane %v4873, 1
      %v5173 = vsel %vm1558, %v5171, %v5172
      %v5174 = vrot.slane %v5146, 1
      %v5175 = vrot.slane %v4874, 1
      %v5176 = vsel %vm1558, %v5174, %v5175
      %v5177 = vrot.slane %v5147, 1
      %v5178 = vrot.slane %v4875, 1
      %v5179 = vsel %vm1558, %v5177, %v5178
      %v5180 = vrot.slane %v5148, 1
      %v5181 = vrot.slane %v4876, 1
      %v5182 = vsel %vm1558, %v5180, %v5181
      %v5183 = vrot.slane %v5149, 1
      %v5184 = vrot.slane %v4877, 1
      %v5185 = vsel %vm1558, %v5183, %v5184
      %v5186 = vrot.slane %v5150, 1
      %v5187 = vrot.slane %v4878, 1
      %v5188 = vsel %vm1558, %v5186, %v5187
      %v5189 = vrot.slane %v5151, 1
      %v5190 = vrot.slane %v4879, 1
      %v5191 = vsel %vm1558, %v5189, %v5190
      %v5192 = vrot.slane %v5152, 1
      %v5193 = vrot.slane %v4880, 1
      %v5194 = vsel %vm1558, %v5192, %v5193
      %v5195 = vrot.slane %v5153, 1
      %v5196 = vrot.slane %v4881, 1
      %v5197 = vsel %vm1558, %v5195, %v5196
      %v5198 = vrot.slane %v5154, 1
      %v5199 = vrot.slane %v4882, 1
      %v5200 = vsel %vm1558, %v5198, %v5199
      %v5201 = vrot.slane %v5155, 1
      %v5202 = vrot.slane %v4883, 1
      %v5203 = vsel %vm1558, %v5201, %v5202
      %5204 = vrot.lane.b32.xlu0 %v5158, 20
      %v5205 = vpop.permute.xlu0 %5204
      %5206 = vrot.lane.b32.xlu0 %v5161, 20
      %v5207 = vpop.permute.xlu0 %5206
      %5208 = vrot.lane.b32.xlu0 %v5164, 20
      %v5209 = vpop.permute.xlu0 %5208
      %5210 = vrot.lane.b32.xlu0 %v5167, 20
      %v5211 = vpop.permute.xlu0 %5210
      %5212 = vrot.lane.b32.xlu0 %v5170, 20
      %v5213 = vpop.permute.xlu0 %5212
      %5214 = vrot.lane.b32.xlu0 %v5173, 20
      %v5215 = vpop.permute.xlu0 %5214
      %5216 = vrot.lane.b32.xlu0 %v5176, 20
      %v5217 = vpop.permute.xlu0 %5216
      %5218 = vrot.lane.b32.xlu0 %v5179, 20
      %v5219 = vpop.permute.xlu0 %5218
      %5220 = vrot.lane.b32.xlu0 %v5182, 20
      %v5221 = vpop.permute.xlu0 %5220
      %5222 = vrot.lane.b32.xlu0 %v5185, 20
      %v5223 = vpop.permute.xlu0 %5222
      %5224 = vrot.lane.b32.xlu0 %v5188, 20
      %v5225 = vpop.permute.xlu0 %5224
      %5226 = vrot.lane.b32.xlu0 %v5191, 20
      %v5227 = vpop.permute.xlu0 %5226
      %5228 = vrot.lane.b32.xlu0 %v5194, 20
      %v5229 = vpop.permute.xlu0 %5228
      %5230 = vrot.lane.b32.xlu0 %v5197, 20
      %v5231 = vpop.permute.xlu0 %5230
      %5232 = vrot.lane.b32.xlu0 %v5200, 20
      %v5233 = vpop.permute.xlu0 %5232
      %5234 = vrot.lane.b32.xlu0 %v5203, 20
      %v5235 = vpop.permute.xlu0 %5234
      %v5268 = vunpack.c.l.b16 %v4180
      %v5269 = vunpack.c.l.b16 %v4181
      %v5270 = vunpack.c.l.b16 %v4182
      %v5271 = vunpack.c.l.b16 %v4183
      %v5272 = vunpack.c.l.b16 %v4184
      %v5273 = vunpack.c.l.b16 %v4185
      %v5274 = vunpack.c.l.b16 %v4186
      %v5275 = vunpack.c.l.b16 %v4187
      %v5276 = vunpack.c.l.b16 %v4188
      %v5277 = vunpack.c.l.b16 %v4189
      %v5278 = vunpack.c.l.b16 %v4190
      %v5279 = vunpack.c.l.b16 %v4191
      %v5280 = vunpack.c.l.b16 %v4192
      %v5281 = vunpack.c.l.b16 %v4193
      %v5282 = vunpack.c.l.b16 %v4194
      %v5283 = vunpack.c.l.b16 %v4195
      %v5284 = vunpack.c.l.b16 %v4196
      %v5285 = vunpack.c.l.b16 %v4197
      %v5286 = vunpack.c.l.b16 %v4198
      %v5287 = vunpack.c.l.b16 %v4199
      %v5288 = vunpack.c.l.b16 %v4200
      %v5289 = vunpack.c.l.b16 %v4201
      %v5290 = vunpack.c.l.b16 %v4202
      %v5291 = vunpack.c.l.b16 %v4203
      %v5292 = vunpack.c.l.b16 %v4204
      %v5293 = vunpack.c.l.b16 %v4205
      %v5294 = vunpack.c.l.b16 %v4206
      %v5295 = vunpack.c.l.b16 %v4207
      %v5296 = vunpack.c.l.b16 %v4208
      %v5297 = vunpack.c.l.b16 %v4209
      %v5298 = vunpack.c.l.b16 %v4210
      %v5299 = vunpack.c.l.b16 %v4211
      %v5300 = vpack.c.b16 %v5269, %v5268
      %v5301 = vpack.c.b16 %v5271, %v5270
      %v5302 = vpack.c.b16 %v5273, %v5272
      %v5303 = vpack.c.b16 %v5275, %v5274
      %v5304 = vpack.c.b16 %v5277, %v5276
      %v5305 = vpack.c.b16 %v5279, %v5278
      %v5306 = vpack.c.b16 %v5281, %v5280
      %v5307 = vpack.c.b16 %v5283, %v5282
      %v5308 = vpack.c.b16 %v5285, %v5284
      %v5309 = vpack.c.b16 %v5287, %v5286
      %v5310 = vpack.c.b16 %v5289, %v5288
      %v5311 = vpack.c.b16 %v5291, %v5290
      %v5312 = vpack.c.b16 %v5293, %v5292
      %v5313 = vpack.c.b16 %v5295, %v5294
      %v5314 = vpack.c.b16 %v5297, %v5296
      %v5315 = vpack.c.b16 %v5299, %v5298
      %5316 = vrot.lane.b32.xlu0 %v5300, 24
      %v5317 = vpop.permute.xlu0 %5316
      %5318 = vrot.lane.b32.xlu0 %v5301, 24
      %v5319 = vpop.permute.xlu0 %5318
      %5320 = vrot.lane.b32.xlu0 %v5302, 24
      %v5321 = vpop.permute.xlu0 %5320
      %5322 = vrot.lane.b32.xlu0 %v5303, 24
      %v5323 = vpop.permute.xlu0 %5322
      %5324 = vrot.lane.b32.xlu0 %v5304, 24
      %v5325 = vpop.permute.xlu0 %5324
      %5326 = vrot.lane.b32.xlu0 %v5305, 24
      %v5327 = vpop.permute.xlu0 %5326
      %5328 = vrot.lane.b32.xlu0 %v5306, 24
      %v5329 = vpop.permute.xlu0 %5328
      %5330 = vrot.lane.b32.xlu0 %v5307, 24
      %v5331 = vpop.permute.xlu0 %5330
      %5332 = vrot.lane.b32.xlu0 %v5308, 24
      %v5333 = vpop.permute.xlu0 %5332
      %5334 = vrot.lane.b32.xlu0 %v5309, 24
      %v5335 = vpop.permute.xlu0 %5334
      %5336 = vrot.lane.b32.xlu0 %v5310, 24
      %v5337 = vpop.permute.xlu0 %5336
      %5338 = vrot.lane.b32.xlu0 %v5311, 24
      %v5339 = vpop.permute.xlu0 %5338
      %5340 = vrot.lane.b32.xlu0 %v5312, 24
      %v5341 = vpop.permute.xlu0 %5340
      %5342 = vrot.lane.b32.xlu0 %v5313, 24
      %v5343 = vpop.permute.xlu0 %5342
      %5344 = vrot.lane.b32.xlu0 %v5314, 24
      %v5345 = vpop.permute.xlu0 %5344
      %5346 = vrot.lane.b32.xlu0 %v5315, 24
      %v5347 = vpop.permute.xlu0 %5346
      %v5364 = vunpack.c.l.b16 %v4212
      %v5365 = vunpack.c.l.b16 %v4213
      %v5366 = vunpack.c.l.b16 %v4214
      %v5367 = vunpack.c.l.b16 %v4215
      %v5368 = vunpack.c.l.b16 %v4216
      %v5369 = vunpack.c.l.b16 %v4217
      %v5370 = vunpack.c.l.b16 %v4218
      %v5371 = vunpack.c.l.b16 %v4219
      %v5372 = vunpack.c.l.b16 %v4220
      %v5373 = vunpack.c.l.b16 %v4221
      %v5374 = vunpack.c.l.b16 %v4222
      %v5375 = vunpack.c.l.b16 %v4223
      %v5376 = vunpack.c.l.b16 %v4224
      %v5377 = vunpack.c.l.b16 %v4225
      %v5378 = vunpack.c.l.b16 %v4226
      %v5379 = vunpack.c.l.b16 %v4227
      %v5380 = vpack.c.b16 %v5364, %v5364
      %v5381 = vpack.c.b16 %v5365, %v5365
      %v5382 = vpack.c.b16 %v5366, %v5366
      %v5383 = vpack.c.b16 %v5367, %v5367
      %v5384 = vpack.c.b16 %v5368, %v5368
      %v5385 = vpack.c.b16 %v5369, %v5369
      %v5386 = vpack.c.b16 %v5370, %v5370
      %v5387 = vpack.c.b16 %v5371, %v5371
      %v5388 = vpack.c.b16 %v5372, %v5372
      %v5389 = vpack.c.b16 %v5373, %v5373
      %v5390 = vpack.c.b16 %v5374, %v5374
      %v5391 = vpack.c.b16 %v5375, %v5375
      %v5392 = vpack.c.b16 %v5376, %v5376
      %v5393 = vpack.c.b16 %v5377, %v5377
      %v5394 = vpack.c.b16 %v5378, %v5378
      %v5395 = vpack.c.b16 %v5379, %v5379
      %v5397 = vshrl.u32 %v5300, 16
      %v5399 = vshll.u32 %v5300, 16
      %v5401 = vrot.slane %v5399, 1
      %v5402 = vor.u32 %v5397, %v5401
      %v5404 = vshll.u32 %v5380, 16
      %v5406 = vrot.slane %v5404, 1
      %v5407 = vsel %vm1285, %v5402, %v5406
      %v5409 = vshrl.u32 %v5301, 16
      %v5411 = vshll.u32 %v5301, 16
      %v5413 = vrot.slane %v5411, 1
      %v5414 = vor.u32 %v5409, %v5413
      %v5416 = vshll.u32 %v5381, 16
      %v5418 = vrot.slane %v5416, 1
      %v5419 = vsel %vm1285, %v5414, %v5418
      %v5421 = vshrl.u32 %v5302, 16
      %v5423 = vshll.u32 %v5302, 16
      %v5425 = vrot.slane %v5423, 1
      %v5426 = vor.u32 %v5421, %v5425
      %v5428 = vshll.u32 %v5382, 16
      %v5430 = vrot.slane %v5428, 1
      %v5431 = vsel %vm1285, %v5426, %v5430
      %v5433 = vshrl.u32 %v5303, 16
      %v5435 = vshll.u32 %v5303, 16
      %v5437 = vrot.slane %v5435, 1
      %v5438 = vor.u32 %v5433, %v5437
      %v5440 = vshll.u32 %v5383, 16
      %v5442 = vrot.slane %v5440, 1
      %v5443 = vsel %vm1285, %v5438, %v5442
      %v5445 = vshrl.u32 %v5304, 16
      %v5447 = vshll.u32 %v5304, 16
      %v5449 = vrot.slane %v5447, 1
      %v5450 = vor.u32 %v5445, %v5449
      %v5452 = vshll.u32 %v5384, 16
      %v5454 = vrot.slane %v5452, 1
      %v5455 = vsel %vm1285, %v5450, %v5454
      %v5457 = vshrl.u32 %v5305, 16
      %v5459 = vshll.u32 %v5305, 16
      %v5461 = vrot.slane %v5459, 1
      %v5462 = vor.u32 %v5457, %v5461
      %v5464 = vshll.u32 %v5385, 16
      %v5466 = vrot.slane %v5464, 1
      %v5467 = vsel %vm1285, %v5462, %v5466
      %v5469 = vshrl.u32 %v5306, 16
      %v5471 = vshll.u32 %v5306, 16
      %v5473 = vrot.slane %v5471, 1
      %v5474 = vor.u32 %v5469, %v5473
      %v5476 = vshll.u32 %v5386, 16
      %v5478 = vrot.slane %v5476, 1
      %v5479 = vsel %vm1285, %v5474, %v5478
      %v5481 = vshrl.u32 %v5307, 16
      %v5483 = vshll.u32 %v5307, 16
      %v5485 = vrot.slane %v5483, 1
      %v5486 = vor.u32 %v5481, %v5485
      %v5488 = vshll.u32 %v5387, 16
      %v5490 = vrot.slane %v5488, 1
      %v5491 = vsel %vm1285, %v5486, %v5490
      %v5493 = vshrl.u32 %v5308, 16
      %v5495 = vshll.u32 %v5308, 16
      %v5497 = vrot.slane %v5495, 1
      %v5498 = vor.u32 %v5493, %v5497
      %v5500 = vshll.u32 %v5388, 16
      %v5502 = vrot.slane %v5500, 1
      %v5503 = vsel %vm1285, %v5498, %v5502
      %v5505 = vshrl.u32 %v5309, 16
      %v5507 = vshll.u32 %v5309, 16
      %v5509 = vrot.slane %v5507, 1
      %v5510 = vor.u32 %v5505, %v5509
      %v5512 = vshll.u32 %v5389, 16
      %v5514 = vrot.slane %v5512, 1
      %v5515 = vsel %vm1285, %v5510, %v5514
      %v5517 = vshrl.u32 %v5310, 16
      %v5519 = vshll.u32 %v5310, 16
      %v5521 = vrot.slane %v5519, 1
      %v5522 = vor.u32 %v5517, %v5521
      %v5524 = vshll.u32 %v5390, 16
      %v5526 = vrot.slane %v5524, 1
      %v5527 = vsel %vm1285, %v5522, %v5526
      %v5529 = vshrl.u32 %v5311, 16
      %v5531 = vshll.u32 %v5311, 16
      %v5533 = vrot.slane %v5531, 1
      %v5534 = vor.u32 %v5529, %v5533
      %v5536 = vshll.u32 %v5391, 16
      %v5538 = vrot.slane %v5536, 1
      %v5539 = vsel %vm1285, %v5534, %v5538
      %v5541 = vshrl.u32 %v5312, 16
      %v5543 = vshll.u32 %v5312, 16
      %v5545 = vrot.slane %v5543, 1
      %v5546 = vor.u32 %v5541, %v5545
      %v5548 = vshll.u32 %v5392, 16
      %v5550 = vrot.slane %v5548, 1
      %v5551 = vsel %vm1285, %v5546, %v5550
      %v5553 = vshrl.u32 %v5313, 16
      %v5555 = vshll.u32 %v5313, 16
      %v5557 = vrot.slane %v5555, 1
      %v5558 = vor.u32 %v5553, %v5557
      %v5560 = vshll.u32 %v5393, 16
      %v5562 = vrot.slane %v5560, 1
      %v5563 = vsel %vm1285, %v5558, %v5562
      %v5565 = vshrl.u32 %v5314, 16
      %v5567 = vshll.u32 %v5314, 16
      %v5569 = vrot.slane %v5567, 1
      %v5570 = vor.u32 %v5565, %v5569
      %v5572 = vshll.u32 %v5394, 16
      %v5574 = vrot.slane %v5572, 1
      %v5575 = vsel %vm1285, %v5570, %v5574
      %v5577 = vshrl.u32 %v5315, 16
      %v5579 = vshll.u32 %v5315, 16
      %v5581 = vrot.slane %v5579, 1
      %v5582 = vor.u32 %v5577, %v5581
      %v5584 = vshll.u32 %v5395, 16
      %v5586 = vrot.slane %v5584, 1
      %v5587 = vsel %vm1285, %v5582, %v5586
      %5588 = vrot.lane.b32.xlu0 %v5407, 28
      %v5589 = vpop.permute.xlu0 %5588
      %5590 = vrot.lane.b32.xlu0 %v5419, 28
      %v5591 = vpop.permute.xlu0 %5590
      %5592 = vrot.lane.b32.xlu0 %v5431, 28
      %v5593 = vpop.permute.xlu0 %5592
      %5594 = vrot.lane.b32.xlu0 %v5443, 28
      %v5595 = vpop.permute.xlu0 %5594
      %5596 = vrot.lane.b32.xlu0 %v5455, 28
      %v5597 = vpop.permute.xlu0 %5596
      %5598 = vrot.lane.b32.xlu0 %v5467, 28
      %v5599 = vpop.permute.xlu0 %5598
      %5600 = vrot.lane.b32.xlu0 %v5479, 28
      %v5601 = vpop.permute.xlu0 %5600
      %5602 = vrot.lane.b32.xlu0 %v5491, 28
      %v5603 = vpop.permute.xlu0 %5602
      %5604 = vrot.lane.b32.xlu0 %v5503, 28
      %v5605 = vpop.permute.xlu0 %5604
      %5606 = vrot.lane.b32.xlu0 %v5515, 28
      %v5607 = vpop.permute.xlu0 %5606
      %5608 = vrot.lane.b32.xlu0 %v5527, 28
      %v5609 = vpop.permute.xlu0 %5608
      %5610 = vrot.lane.b32.xlu0 %v5539, 28
      %v5611 = vpop.permute.xlu0 %5610
      %5612 = vrot.lane.b32.xlu0 %v5551, 28
      %v5613 = vpop.permute.xlu0 %5612
      %5614 = vrot.lane.b32.xlu0 %v5563, 28
      %v5615 = vpop.permute.xlu0 %5614
      %5616 = vrot.lane.b32.xlu0 %v5575, 28
      %v5617 = vpop.permute.xlu0 %5616
      %5618 = vrot.lane.b32.xlu0 %v5587, 28
      %v5619 = vpop.permute.xlu0 %5618
      %v5636 = vunpack.c.l.b16 %v4228
      %v5637 = vunpack.c.l.b16 %v4229
      %v5638 = vunpack.c.l.b16 %v4230
      %v5639 = vunpack.c.l.b16 %v4231
      %v5640 = vunpack.c.l.b16 %v4232
      %v5641 = vunpack.c.l.b16 %v4233
      %v5642 = vunpack.c.l.b16 %v4234
      %v5643 = vunpack.c.l.b16 %v4235
      %v5644 = vunpack.c.l.b16 %v4236
      %v5645 = vunpack.c.l.b16 %v4237
      %v5646 = vunpack.c.l.b16 %v4238
      %v5647 = vunpack.c.l.b16 %v4239
      %v5648 = vunpack.c.l.b16 %v4240
      %v5649 = vunpack.c.l.b16 %v4241
      %v5650 = vunpack.c.l.b16 %v4242
      %v5651 = vunpack.c.l.b16 %v4243
      %v5652 = vpack.c.b16 %v5269, %v5636
      %v5653 = vpack.c.b16 %v5271, %v5637
      %v5654 = vpack.c.b16 %v5273, %v5638
      %v5655 = vpack.c.b16 %v5275, %v5639
      %v5656 = vpack.c.b16 %v5277, %v5640
      %v5657 = vpack.c.b16 %v5279, %v5641
      %v5658 = vpack.c.b16 %v5281, %v5642
      %v5659 = vpack.c.b16 %v5283, %v5643
      %v5660 = vpack.c.b16 %v5285, %v5644
      %v5661 = vpack.c.b16 %v5287, %v5645
      %v5662 = vpack.c.b16 %v5289, %v5646
      %v5663 = vpack.c.b16 %v5291, %v5647
      %v5664 = vpack.c.b16 %v5293, %v5648
      %v5665 = vpack.c.b16 %v5295, %v5649
      %v5666 = vpack.c.b16 %v5297, %v5650
      %v5667 = vpack.c.b16 %v5299, %v5651
      %v5668 = vrot.slane %v5652, 1
      %v5669 = vrot.slane %v5380, 1
      %v5670 = vsel %vm1558, %v5668, %v5669
      %v5671 = vrot.slane %v5653, 1
      %v5672 = vrot.slane %v5381, 1
      %v5673 = vsel %vm1558, %v5671, %v5672
      %v5674 = vrot.slane %v5654, 1
      %v5675 = vrot.slane %v5382, 1
      %v5676 = vsel %vm1558, %v5674, %v5675
      %v5677 = vrot.slane %v5655, 1
      %v5678 = vrot.slane %v5383, 1
      %v5679 = vsel %vm1558, %v5677, %v5678
      %v5680 = vrot.slane %v5656, 1
      %v5681 = vrot.slane %v5384, 1
      %v5682 = vsel %vm1558, %v5680, %v5681
      %v5683 = vrot.slane %v5657, 1
      %v5684 = vrot.slane %v5385, 1
      %v5685 = vsel %vm1558, %v5683, %v5684
      %v5686 = vrot.slane %v5658, 1
      %v5687 = vrot.slane %v5386, 1
      %v5688 = vsel %vm1558, %v5686, %v5687
      %v5689 = vrot.slane %v5659, 1
      %v5690 = vrot.slane %v5387, 1
      %v5691 = vsel %vm1558, %v5689, %v5690
      %v5692 = vrot.slane %v5660, 1
      %v5693 = vrot.slane %v5388, 1
      %v5694 = vsel %vm1558, %v5692, %v5693
      %v5695 = vrot.slane %v5661, 1
      %v5696 = vrot.slane %v5389, 1
      %v5697 = vsel %vm1558, %v5695, %v5696
      %v5698 = vrot.slane %v5662, 1
      %v5699 = vrot.slane %v5390, 1
      %v5700 = vsel %vm1558, %v5698, %v5699
      %v5701 = vrot.slane %v5663, 1
      %v5702 = vrot.slane %v5391, 1
      %v5703 = vsel %vm1558, %v5701, %v5702
      %v5704 = vrot.slane %v5664, 1
      %v5705 = vrot.slane %v5392, 1
      %v5706 = vsel %vm1558, %v5704, %v5705
      %v5707 = vrot.slane %v5665, 1
      %v5708 = vrot.slane %v5393, 1
      %v5709 = vsel %vm1558, %v5707, %v5708
      %v5710 = vrot.slane %v5666, 1
      %v5711 = vrot.slane %v5394, 1
      %v5712 = vsel %vm1558, %v5710, %v5711
      %v5713 = vrot.slane %v5667, 1
      %v5714 = vrot.slane %v5395, 1
      %v5715 = vsel %vm1558, %v5713, %v5714
      %5716 = vrot.lane.b32.xlu0 %v5670, 32
      %v5717 = vpop.permute.xlu0 %5716
      %5718 = vrot.lane.b32.xlu0 %v5673, 32
      %v5719 = vpop.permute.xlu0 %5718
      %5720 = vrot.lane.b32.xlu0 %v5676, 32
      %v5721 = vpop.permute.xlu0 %5720
      %5722 = vrot.lane.b32.xlu0 %v5679, 32
      %v5723 = vpop.permute.xlu0 %5722
      %5724 = vrot.lane.b32.xlu0 %v5682, 32
      %v5725 = vpop.permute.xlu0 %5724
      %5726 = vrot.lane.b32.xlu0 %v5685, 32
      %v5727 = vpop.permute.xlu0 %5726
      %5728 = vrot.lane.b32.xlu0 %v5688, 32
      %v5729 = vpop.permute.xlu0 %5728
      %5730 = vrot.lane.b32.xlu0 %v5691, 32
      %v5731 = vpop.permute.xlu0 %5730
      %5732 = vrot.lane.b32.xlu0 %v5694, 32
      %v5733 = vpop.permute.xlu0 %5732
      %5734 = vrot.lane.b32.xlu0 %v5697, 32
      %v5735 = vpop.permute.xlu0 %5734
      %5736 = vrot.lane.b32.xlu0 %v5700, 32
      %v5737 = vpop.permute.xlu0 %5736
      %5738 = vrot.lane.b32.xlu0 %v5703, 32
      %v5739 = vpop.permute.xlu0 %5738
      %5740 = vrot.lane.b32.xlu0 %v5706, 32
      %v5741 = vpop.permute.xlu0 %5740
      %5742 = vrot.lane.b32.xlu0 %v5709, 32
      %v5743 = vpop.permute.xlu0 %5742
      %5744 = vrot.lane.b32.xlu0 %v5712, 32
      %v5745 = vpop.permute.xlu0 %5744
      %5746 = vrot.lane.b32.xlu0 %v5715, 32
      %v5747 = vpop.permute.xlu0 %5746
      %v5749 = vsel %vm2663, %v4308, %v4565
      %v5751 = vsel %vm2663, %v4309, %v4567
      %v5753 = vsel %vm2663, %v4310, %v4569
      %v5755 = vsel %vm2663, %v4311, %v4571
      %v5757 = vsel %vm2663, %v4312, %v4573
      %v5759 = vsel %vm2663, %v4313, %v4575
      %v5761 = vsel %vm2663, %v4314, %v4577
      %v5763 = vsel %vm2663, %v4315, %v4579
      %v5765 = vsel %vm2663, %v4316, %v4581
      %v5767 = vsel %vm2663, %v4317, %v4583
      %v5769 = vsel %vm2663, %v4318, %v4585
      %v5771 = vsel %vm2663, %v4319, %v4587
      %v5773 = vsel %vm2663, %v4320, %v4589
      %v5775 = vsel %vm2663, %v4321, %v4591
      %v5777 = vsel %vm2663, %v4322, %v4593
      %v5779 = vsel %vm2663, %v4323, %v4595
      %v5781 = vsel %vm2696, %v5749, %v4693
      %v5783 = vsel %vm2696, %v5751, %v4695
      %v5785 = vsel %vm2696, %v5753, %v4697
      %v5787 = vsel %vm2696, %v5755, %v4699
      %v5789 = vsel %vm2696, %v5757, %v4701
      %v5791 = vsel %vm2696, %v5759, %v4703
      %v5793 = vsel %vm2696, %v5761, %v4705
      %v5795 = vsel %vm2696, %v5763, %v4707
      %v5797 = vsel %vm2696, %v5765, %v4709
      %v5799 = vsel %vm2696, %v5767, %v4711
      %v5801 = vsel %vm2696, %v5769, %v4713
      %v5803 = vsel %vm2696, %v5771, %v4715
      %v5805 = vsel %vm2696, %v5773, %v4717
      %v5807 = vsel %vm2696, %v5775, %v4719
      %v5809 = vsel %vm2696, %v5777, %v4721
      %v5811 = vsel %vm2696, %v5779, %v4723
      %v5813 = vsel %vm2729, %v5781, %v4805
      %v5815 = vsel %vm2729, %v5783, %v4807
      %v5817 = vsel %vm2729, %v5785, %v4809
      %v5819 = vsel %vm2729, %v5787, %v4811
      %v5821 = vsel %vm2729, %v5789, %v4813
      %v5823 = vsel %vm2729, %v5791, %v4815
      %v5825 = vsel %vm2729, %v5793, %v4817
      %v5827 = vsel %vm2729, %v5795, %v4819
      %v5829 = vsel %vm2729, %v5797, %v4821
      %v5831 = vsel %vm2729, %v5799, %v4823
      %v5833 = vsel %vm2729, %v5801, %v4825
      %v5835 = vsel %vm2729, %v5803, %v4827
      %v5837 = vsel %vm2729, %v5805, %v4829
      %v5839 = vsel %vm2729, %v5807, %v4831
      %v5841 = vsel %vm2729, %v5809, %v4833
      %v5843 = vsel %vm2729, %v5811, %v4835
      %v5845 = vsel %vm2762, %v5813, %v5077
      %v5847 = vsel %vm2762, %v5815, %v5079
      %v5849 = vsel %vm2762, %v5817, %v5081
      %v5851 = vsel %vm2762, %v5819, %v5083
      %v5853 = vsel %vm2762, %v5821, %v5085
      %v5855 = vsel %vm2762, %v5823, %v5087
      %v5857 = vsel %vm2762, %v5825, %v5089
      %v5859 = vsel %vm2762, %v5827, %v5091
      %v5861 = vsel %vm2762, %v5829, %v5093
      %v5863 = vsel %vm2762, %v5831, %v5095
      %v5865 = vsel %vm2762, %v5833, %v5097
      %v5867 = vsel %vm2762, %v5835, %v5099
      %v5869 = vsel %vm2762, %v5837, %v5101
      %v5871 = vsel %vm2762, %v5839, %v5103
      %v5873 = vsel %vm2762, %v5841, %v5105
      %v5875 = vsel %vm2762, %v5843, %v5107
      %v5877 = vsel %vm2795, %v5845, %v5205
      %v5879 = vsel %vm2795, %v5847, %v5207
      %v5881 = vsel %vm2795, %v5849, %v5209
      %v5883 = vsel %vm2795, %v5851, %v5211
      %v5885 = vsel %vm2795, %v5853, %v5213
      %v5887 = vsel %vm2795, %v5855, %v5215
      %v5889 = vsel %vm2795, %v5857, %v5217
      %v5891 = vsel %vm2795, %v5859, %v5219
      %v5893 = vsel %vm2795, %v5861, %v5221
      %v5895 = vsel %vm2795, %v5863, %v5223
      %v5897 = vsel %vm2795, %v5865, %v5225
      %v5899 = vsel %vm2795, %v5867, %v5227
      %v5901 = vsel %vm2795, %v5869, %v5229
      %v5903 = vsel %vm2795, %v5871, %v5231
      %v5905 = vsel %vm2795, %v5873, %v5233
      %v5907 = vsel %vm2795, %v5875, %v5235
      %v5909 = vsel %vm2828, %v5877, %v5317
      %v5911 = vsel %vm2828, %v5879, %v5319
      %v5913 = vsel %vm2828, %v5881, %v5321
      %v5915 = vsel %vm2828, %v5883, %v5323
      %v5917 = vsel %vm2828, %v5885, %v5325
      %v5919 = vsel %vm2828, %v5887, %v5327
      %v5921 = vsel %vm2828, %v5889, %v5329
      %v5923 = vsel %vm2828, %v5891, %v5331
      %v5925 = vsel %vm2828, %v5893, %v5333
      %v5927 = vsel %vm2828, %v5895, %v5335
      %v5929 = vsel %vm2828, %v5897, %v5337
      %v5931 = vsel %vm2828, %v5899, %v5339
      %v5933 = vsel %vm2828, %v5901, %v5341
      %v5935 = vsel %vm2828, %v5903, %v5343
      %v5937 = vsel %vm2828, %v5905, %v5345
      %v5939 = vsel %vm2828, %v5907, %v5347
      %v5941 = vsel %vm2861, %v5909, %v5589
      %v5943 = vsel %vm2861, %v5911, %v5591
      %v5945 = vsel %vm2861, %v5913, %v5593
      %v5947 = vsel %vm2861, %v5915, %v5595
      %v5949 = vsel %vm2861, %v5917, %v5597
      %v5951 = vsel %vm2861, %v5919, %v5599
      %v5953 = vsel %vm2861, %v5921, %v5601
      %v5955 = vsel %vm2861, %v5923, %v5603
      %v5957 = vsel %vm2861, %v5925, %v5605
      %v5959 = vsel %vm2861, %v5927, %v5607
      %v5961 = vsel %vm2861, %v5929, %v5609
      %v5963 = vsel %vm2861, %v5931, %v5611
      %v5965 = vsel %vm2861, %v5933, %v5613
      %v5967 = vsel %vm2861, %v5935, %v5615
      %v5969 = vsel %vm2861, %v5937, %v5617
      %v5971 = vsel %vm2861, %v5939, %v5619
      %v5973 = vsel %vm2894, %v5941, %v5717
      %v5975 = vsel %vm2894, %v5943, %v5719
      %v5977 = vsel %vm2894, %v5945, %v5721
      %v5979 = vsel %vm2894, %v5947, %v5723
      %v5981 = vsel %vm2894, %v5949, %v5725
      %v5983 = vsel %vm2894, %v5951, %v5727
      %v5985 = vsel %vm2894, %v5953, %v5729
      %v5987 = vsel %vm2894, %v5955, %v5731
      %v5989 = vsel %vm2894, %v5957, %v5733
      %v5991 = vsel %vm2894, %v5959, %v5735
      %v5993 = vsel %vm2894, %v5961, %v5737
      %v5995 = vsel %vm2894, %v5963, %v5739
      %v5997 = vsel %vm2894, %v5965, %v5741
      %v5999 = vsel %vm2894, %v5967, %v5743
      %v6001 = vsel %vm2894, %v5969, %v5745
      %v6003 = vsel %vm2894, %v5971, %v5747
      %v6005 = vperm.slane %v4051, 0
      %v6012 = vunpack.c.l.b16 %v4046
      %v6013 = vunpack.c.l.b16 %v4047
      %v6014 = vunpack.c.l.b16 %v4048
      %v6015 = vunpack.c.l.b16 %v4049
      %v6016 = vunpack.c.l.b16 %v4050
      %v6017 = vpack.c.b16 %v6013, %v6012
      %v6018 = vpack.c.b16 %v6015, %v6014
      %v6019 = vpack.c.b16 %v6016, %v6016
      %v6022 = vsel %vm2945, %v5973, 0
      %v6024 = vsel %vm2945, %v5975, 0
      %v6026 = vsel %vm2945, %v5977, 0
      %v6028 = vsel %vm2945, %v5979, 0
      %v6030 = vsel %vm2945, %v5981, 0
      %v6032 = vsel %vm2945, %v5983, 0
      %v6034 = vsel %vm2945, %v5985, 0
      %v6036 = vsel %vm2945, %v5987, 0
      %v6038 = vsel %vm2945, %v5989, 0
      %v6040 = vsel %vm2945, %v5991, 0
      %v6042 = vsel %vm2945, %v5993, 0
      %v6044 = vsel %vm2945, %v5995, 0
      %v6046 = vsel %vm2945, %v5997, 0
      %v6048 = vsel %vm2945, %v5999, 0
      %v6050 = vsel %vm2945, %v6001, 0
      %v6052 = vsel %vm2945, %v6003, 0
      %v6055 = vsel %vm2978, %v6019, 0
      %6057 = vmatpush.bf16.msra.mxu0 0
      %6058 = vmatpush.bf16.msra.mxu0 0
      %6059 = vmatpush.bf16.msra.mxu0 0
      %6060 = vmatpush.bf16.msra.mxu0 0
      %6061 = vmatpush.bf16.msra.mxu0 0
      %6062 = vmatpush.bf16.msra.mxu0 %v6055
      %6063 = vmatpush.bf16.msra.mxu0 %v6018
      %6064 = vmatpush.bf16.msra.mxu0 %v6017
      %6065 = vmatmul.bf16.gmra.mxu0 %v6022
      %v6066 = vpop.f32.mrf.mxu0
      %v6067 = vadd.f32 %v6005, %v6066
      %v6068 = vpop.f32.mrf.mxu0
      %v6069 = vadd.f32 %v6005, %v6068
      %6070 = vmatmul.bf16.gmra.mxu0 %v6024
      %v6071 = vpop.f32.mrf.mxu0
      %v6072 = vadd.f32 %v6005, %v6071
      %v6073 = vpop.f32.mrf.mxu0
      %v6074 = vadd.f32 %v6005, %v6073
      %6075 = vmatmul.bf16.gmra.mxu0 %v6026
      %v6076 = vpop.f32.mrf.mxu0
      %v6077 = vadd.f32 %v6005, %v6076
      %v6078 = vpop.f32.mrf.mxu0
      %v6079 = vadd.f32 %v6005, %v6078
      %6080 = vmatmul.bf16.gmra.mxu0 %v6028
      %v6081 = vpop.f32.mrf.mxu0
      %v6082 = vadd.f32 %v6005, %v6081
      %v6083 = vpop.f32.mrf.mxu0
      %v6084 = vadd.f32 %v6005, %v6083
      %6085 = vmatmul.bf16.gmra.mxu0 %v6030
      %v6086 = vpop.f32.mrf.mxu0
      %v6087 = vadd.f32 %v6005, %v6086
      %v6088 = vpop.f32.mrf.mxu0
      %v6089 = vadd.f32 %v6005, %v6088
      %6090 = vmatmul.bf16.gmra.mxu0 %v6032
      %v6091 = vpop.f32.mrf.mxu0
      %v6092 = vadd.f32 %v6005, %v6091
      %v6093 = vpop.f32.mrf.mxu0
      %v6094 = vadd.f32 %v6005, %v6093
      %6095 = vmatmul.bf16.gmra.mxu0 %v6034
      %v6096 = vpop.f32.mrf.mxu0
      %v6097 = vadd.f32 %v6005, %v6096
      %v6098 = vpop.f32.mrf.mxu0
      %v6099 = vadd.f32 %v6005, %v6098
      %6100 = vmatmul.bf16.gmra.mxu0 %v6036
      %v6101 = vpop.f32.mrf.mxu0
      %v6102 = vadd.f32 %v6005, %v6101
      %v6103 = vpop.f32.mrf.mxu0
      %v6104 = vadd.f32 %v6005, %v6103
      %6105 = vmatmul.bf16.gmra.mxu0 %v6038
      %v6106 = vpop.f32.mrf.mxu0
      %v6107 = vadd.f32 %v6005, %v6106
      %v6108 = vpop.f32.mrf.mxu0
      %v6109 = vadd.f32 %v6005, %v6108
      %6110 = vmatmul.bf16.gmra.mxu0 %v6040
      %v6111 = vpop.f32.mrf.mxu0
      %v6112 = vadd.f32 %v6005, %v6111
      %v6113 = vpop.f32.mrf.mxu0
      %v6114 = vadd.f32 %v6005, %v6113
      %6115 = vmatmul.bf16.gmra.mxu0 %v6042
      %v6116 = vpop.f32.mrf.mxu0
      %v6117 = vadd.f32 %v6005, %v6116
      %v6118 = vpop.f32.mrf.mxu0
      %v6119 = vadd.f32 %v6005, %v6118
      %6120 = vmatmul.bf16.gmra.mxu0 %v6044
      %v6121 = vpop.f32.mrf.mxu0
      %v6122 = vadd.f32 %v6005, %v6121
      %v6123 = vpop.f32.mrf.mxu0
      %v6124 = vadd.f32 %v6005, %v6123
      %6125 = vmatmul.bf16.gmra.mxu0 %v6046
      %v6126 = vpop.f32.mrf.mxu0
      %v6127 = vadd.f32 %v6005, %v6126
      %v6128 = vpop.f32.mrf.mxu0
      %v6129 = vadd.f32 %v6005, %v6128
      %6130 = vmatmul.bf16.gmra.mxu0 %v6048
      %v6131 = vpop.f32.mrf.mxu0
      %v6132 = vadd.f32 %v6005, %v6131
      %v6133 = vpop.f32.mrf.mxu0
      %v6134 = vadd.f32 %v6005, %v6133
      %6135 = vmatmul.bf16.gmra.mxu0 %v6050
      %v6136 = vpop.f32.mrf.mxu0
      %v6137 = vadd.f32 %v6005, %v6136
      %v6138 = vpop.f32.mrf.mxu0
      %v6139 = vadd.f32 %v6005, %v6138
      %6140 = vmatmul.bf16.gmra.mxu0 %v6052
      %v6141 = vpop.f32.mrf.mxu0
      %v6142 = vadd.f32 %v6005, %v6141
      %v6143 = vpop.f32.mrf.mxu0
      %v6144 = vadd.f32 %v6005, %v6143
      %6145 = vdwg.mxu0
      %v6146 = vsel %vm2663, %v6067, 0.0
      %v6147 = vsel %vm2663, %v6069, 0.0
      %v6148 = vadd.f32 %v6146, %v6147
      %v6149 = vsel %vm2663, %v6072, 0.0
      %v6150 = vadd.f32 %v6148, %v6149
      %v6151 = vsel %vm2663, %v6074, 0.0
      %v6152 = vadd.f32 %v6150, %v6151
      %v6153 = vsel %vm2663, %v6077, 0.0
      %v6154 = vadd.f32 %v6152, %v6153
      %v6155 = vsel %vm2663, %v6079, 0.0
      %v6156 = vadd.f32 %v6154, %v6155
      %v6157 = vsel %vm2663, %v6082, 0.0
      %v6158 = vadd.f32 %v6156, %v6157
      %v6159 = vsel %vm2663, %v6084, 0.0
      %v6160 = vadd.f32 %v6158, %v6159
      %v6161 = vsel %vm2663, %v6087, 0.0
      %v6162 = vadd.f32 %v6160, %v6161
      %v6163 = vsel %vm2663, %v6089, 0.0
      %v6164 = vadd.f32 %v6162, %v6163
      %v6165 = vsel %vm2663, %v6092, 0.0
      %v6166 = vadd.f32 %v6164, %v6165
      %v6167 = vsel %vm2663, %v6094, 0.0
      %v6168 = vadd.f32 %v6166, %v6167
      %v6169 = vsel %vm2663, %v6097, 0.0
      %v6170 = vadd.f32 %v6168, %v6169
      %v6171 = vsel %vm2663, %v6099, 0.0
      %v6172 = vadd.f32 %v6170, %v6171
      %v6173 = vsel %vm2663, %v6102, 0.0
      %v6174 = vadd.f32 %v6172, %v6173
      %v6175 = vsel %vm2663, %v6104, 0.0
      %v6176 = vadd.f32 %v6174, %v6175
      %v6177 = vsel %vm2663, %v6107, 0.0
      %v6178 = vadd.f32 %v6176, %v6177
      %v6179 = vsel %vm2663, %v6109, 0.0
      %v6180 = vadd.f32 %v6178, %v6179
      %v6181 = vsel %vm2663, %v6112, 0.0
      %v6182 = vadd.f32 %v6180, %v6181
      %v6183 = vsel %vm2663, %v6114, 0.0
      %v6184 = vadd.f32 %v6182, %v6183
      %v6185 = vsel %vm2663, %v6117, 0.0
      %v6186 = vadd.f32 %v6184, %v6185
      %v6187 = vsel %vm2663, %v6119, 0.0
      %v6188 = vadd.f32 %v6186, %v6187
      %v6189 = vsel %vm2663, %v6122, 0.0
      %v6190 = vadd.f32 %v6188, %v6189
      %v6191 = vsel %vm2663, %v6124, 0.0
      %v6192 = vadd.f32 %v6190, %v6191
      %v6193 = vsel %vm2663, %v6127, 0.0
      %v6194 = vadd.f32 %v6192, %v6193
      %v6195 = vsel %vm2663, %v6129, 0.0
      %v6196 = vadd.f32 %v6194, %v6195
      %v6197 = vsel %vm2663, %v6132, 0.0
      %v6198 = vadd.f32 %v6196, %v6197
      %v6199 = vsel %vm2663, %v6134, 0.0
      %v6200 = vadd.f32 %v6198, %v6199
      %v6201 = vsel %vm2663, %v6137, 0.0
      %v6202 = vadd.f32 %v6200, %v6201
      %v6203 = vsel %vm2663, %v6139, 0.0
      %v6204 = vadd.f32 %v6202, %v6203
      %v6205 = vsel %vm2663, %v6142, 0.0
      %v6206 = vadd.f32 %v6204, %v6205
      %v6207 = vsel %vm2663, %v6144, 0.0
      %v6208 = vadd.f32 %v6206, %v6207
      %v6209 = vrot.slane %v6208, 4
      %v6210 = vadd.f32 %v6208, %v6209
      %v6211 = vrot.slane %v6210, 2
      %v6212 = vadd.f32 %v6210, %v6211
      %v6213 = vrot.slane %v6212, 1
      %v6214 = vadd.f32 %v6212, %v6213
      %v6215 = vmul.f32 %v6214, 0.00390625
      %v6216 = vmul.f32 %v6067, %v6067
      %v6217 = vmul.f32 %v6069, %v6069
      %v6218 = vmul.f32 %v6072, %v6072
      %v6219 = vmul.f32 %v6074, %v6074
      %v6220 = vmul.f32 %v6077, %v6077
      %v6221 = vmul.f32 %v6079, %v6079
      %v6222 = vmul.f32 %v6082, %v6082
      %v6223 = vmul.f32 %v6084, %v6084
      %v6224 = vmul.f32 %v6087, %v6087
      %v6225 = vmul.f32 %v6089, %v6089
      %v6226 = vmul.f32 %v6092, %v6092
      %v6227 = vmul.f32 %v6094, %v6094
      %v6228 = vmul.f32 %v6097, %v6097
      %v6229 = vmul.f32 %v6099, %v6099
      %v6230 = vmul.f32 %v6102, %v6102
      %v6231 = vmul.f32 %v6104, %v6104
      %v6232 = vmul.f32 %v6107, %v6107
      %v6233 = vmul.f32 %v6109, %v6109
      %v6234 = vmul.f32 %v6112, %v6112
      %v6235 = vmul.f32 %v6114, %v6114
      %v6236 = vmul.f32 %v6117, %v6117
      %v6237 = vmul.f32 %v6119, %v6119
      %v6238 = vmul.f32 %v6122, %v6122
      %v6239 = vmul.f32 %v6124, %v6124
      %v6240 = vmul.f32 %v6127, %v6127
      %v6241 = vmul.f32 %v6129, %v6129
      %v6242 = vmul.f32 %v6132, %v6132
      %v6243 = vmul.f32 %v6134, %v6134
      %v6244 = vmul.f32 %v6137, %v6137
      %v6245 = vmul.f32 %v6139, %v6139
      %v6246 = vmul.f32 %v6142, %v6142
      %v6247 = vmul.f32 %v6144, %v6144
      %v6248 = vsel %vm2663, %v6216, 0.0
      %v6249 = vsel %vm2663, %v6217, 0.0
      %v6250 = vadd.f32 %v6248, %v6249
      %v6251 = vsel %vm2663, %v6218, 0.0
      %v6252 = vadd.f32 %v6250, %v6251
      %v6253 = vsel %vm2663, %v6219, 0.0
      %v6254 = vadd.f32 %v6252, %v6253
      %v6255 = vsel %vm2663, %v6220, 0.0
      %v6256 = vadd.f32 %v6254, %v6255
      %v6257 = vsel %vm2663, %v6221, 0.0
      %v6258 = vadd.f32 %v6256, %v6257
      %v6259 = vsel %vm2663, %v6222, 0.0
      %v6260 = vadd.f32 %v6258, %v6259
      %v6261 = vsel %vm2663, %v6223, 0.0
      %v6262 = vadd.f32 %v6260, %v6261
      %v6263 = vsel %vm2663, %v6224, 0.0
      %v6264 = vadd.f32 %v6262, %v6263
      %v6265 = vsel %vm2663, %v6225, 0.0
      %v6266 = vadd.f32 %v6264, %v6265
      %v6267 = vsel %vm2663, %v6226, 0.0
      %v6268 = vadd.f32 %v6266, %v6267
      %v6269 = vsel %vm2663, %v6227, 0.0
      %v6270 = vadd.f32 %v6268, %v6269
      %v6271 = vsel %vm2663, %v6228, 0.0
      %v6272 = vadd.f32 %v6270, %v6271
      %v6273 = vsel %vm2663, %v6229, 0.0
      %v6274 = vadd.f32 %v6272, %v6273
      %v6275 = vsel %vm2663, %v6230, 0.0
      %v6276 = vadd.f32 %v6274, %v6275
      %v6277 = vsel %vm2663, %v6231, 0.0
      %v6278 = vadd.f32 %v6276, %v6277
      %v6279 = vsel %vm2663, %v6232, 0.0
      %v6280 = vadd.f32 %v6278, %v6279
      %v6281 = vsel %vm2663, %v6233, 0.0
      %v6282 = vadd.f32 %v6280, %v6281
      %v6283 = vsel %vm2663, %v6234, 0.0
      %v6284 = vadd.f32 %v6282, %v6283
      %v6285 = vsel %vm2663, %v6235, 0.0
      %v6286 = vadd.f32 %v6284, %v6285
      %v6287 = vsel %vm2663, %v6236, 0.0
      %v6288 = vadd.f32 %v6286, %v6287
      %v6289 = vsel %vm2663, %v6237, 0.0
      %v6290 = vadd.f32 %v6288, %v6289
      %v6291 = vsel %vm2663, %v6238, 0.0
      %v6292 = vadd.f32 %v6290, %v6291
      %v6293 = vsel %vm2663, %v6239, 0.0
      %v6294 = vadd.f32 %v6292, %v6293
      %v6295 = vsel %vm2663, %v6240, 0.0
      %v6296 = vadd.f32 %v6294, %v6295
      %v6297 = vsel %vm2663, %v6241, 0.0
      %v6298 = vadd.f32 %v6296, %v6297
      %v6299 = vsel %vm2663, %v6242, 0.0
      %v6300 = vadd.f32 %v6298, %v6299
      %v6301 = vsel %vm2663, %v6243, 0.0
      %v6302 = vadd.f32 %v6300, %v6301
      %v6303 = vsel %vm2663, %v6244, 0.0
      %v6304 = vadd.f32 %v6302, %v6303
      %v6305 = vsel %vm2663, %v6245, 0.0
      %v6306 = vadd.f32 %v6304, %v6305
      %v6307 = vsel %vm2663, %v6246, 0.0
      %v6308 = vadd.f32 %v6306, %v6307
      %v6309 = vsel %vm2663, %v6247, 0.0
      %v6310 = vadd.f32 %v6308, %v6309
      %v6311 = vrot.slane %v6310, 4
      %v6312 = vadd.f32 %v6310, %v6311
      %v6313 = vrot.slane %v6312, 2
      %v6314 = vadd.f32 %v6312, %v6313
      %v6315 = vrot.slane %v6314, 1
      %v6316 = vadd.f32 %v6314, %v6315
      %v6317 = vmul.f32 %v6316, 0.00390625
      %v6318 = vmul.f32 %v6215, %v6215
      %v6319 = vsub.f32 %v6317, %v6318
      %v6320 = vsub.f32 %v6067, %v6215
      %v6321 = vsub.f32 %v6069, %v6215
      %v6322 = vsub.f32 %v6072, %v6215
      %v6323 = vsub.f32 %v6074, %v6215
      %v6324 = vsub.f32 %v6077, %v6215
      %v6325 = vsub.f32 %v6079, %v6215
      %v6326 = vsub.f32 %v6082, %v6215
      %v6327 = vsub.f32 %v6084, %v6215
      %v6328 = vsub.f32 %v6087, %v6215
      %v6329 = vsub.f32 %v6089, %v6215
      %v6330 = vsub.f32 %v6092, %v6215
      %v6331 = vsub.f32 %v6094, %v6215
      %v6332 = vsub.f32 %v6097, %v6215
      %v6333 = vsub.f32 %v6099, %v6215
      %v6334 = vsub.f32 %v6102, %v6215
      %v6335 = vsub.f32 %v6104, %v6215
      %v6336 = vsub.f32 %v6107, %v6215
      %v6337 = vsub.f32 %v6109, %v6215
      %v6338 = vsub.f32 %v6112, %v6215
      %v6339 = vsub.f32 %v6114, %v6215
      %v6340 = vsub.f32 %v6117, %v6215
      %v6341 = vsub.f32 %v6119, %v6215
      %v6342 = vsub.f32 %v6122, %v6215
      %v6343 = vsub.f32 %v6124, %v6215
      %v6344 = vsub.f32 %v6127, %v6215
      %v6345 = vsub.f32 %v6129, %v6215
      %v6346 = vsub.f32 %v6132, %v6215
      %v6347 = vsub.f32 %v6134, %v6215
      %v6348 = vsub.f32 %v6137, %v6215
      %v6349 = vsub.f32 %v6139, %v6215
      %v6350 = vsub.f32 %v6142, %v6215
      %v6351 = vsub.f32 %v6144, %v6215
      %v6352 = vadd.f32 %v6319, 1e-05
      %v6353 = vrsqrt.pop %v6352
      %v6354 = vmul.f32 %v6353, %v6352
      %v6355 = vmul.f32 %v6354, %v6353
      %v6356 = vmul.f32 0.5, %v6355
      %v6357 = vsub.f32 1.5, %v6356
      %v6358 = vmul.f32 %v6353, %v6357
      %vm6359 = vweird.f32 %v6352
      %vm6360 = vweird.f32 %v6353
      %vm6361 = vmor %vm6359, %vm6360
      %v6362 = vsel %vm6361, %v6353, %v6358
      %v6363 = vmul.f32 %v6320, %v6362
      %v6364 = vmul.f32 %v6321, %v6362
      %v6365 = vmul.f32 %v6322, %v6362
      %v6366 = vmul.f32 %v6323, %v6362
      %v6367 = vmul.f32 %v6324, %v6362
      %v6368 = vmul.f32 %v6325, %v6362
      %v6369 = vmul.f32 %v6326, %v6362
      %v6370 = vmul.f32 %v6327, %v6362
      %v6371 = vmul.f32 %v6328, %v6362
      %v6372 = vmul.f32 %v6329, %v6362
      %v6373 = vmul.f32 %v6330, %v6362
      %v6374 = vmul.f32 %v6331, %v6362
      %v6375 = vmul.f32 %v6332, %v6362
      %v6376 = vmul.f32 %v6333, %v6362
      %v6377 = vmul.f32 %v6334, %v6362
      %v6378 = vmul.f32 %v6335, %v6362
      %v6379 = vmul.f32 %v6336, %v6362
      %v6380 = vmul.f32 %v6337, %v6362
      %v6381 = vmul.f32 %v6338, %v6362
      %v6382 = vmul.f32 %v6339, %v6362
      %v6383 = vmul.f32 %v6340, %v6362
      %v6384 = vmul.f32 %v6341, %v6362
      %v6385 = vmul.f32 %v6342, %v6362
      %v6386 = vmul.f32 %v6343, %v6362
      %v6387 = vmul.f32 %v6344, %v6362
      %v6388 = vmul.f32 %v6345, %v6362
      %v6389 = vmul.f32 %v6346, %v6362
      %v6390 = vmul.f32 %v6347, %v6362
      %v6391 = vmul.f32 %v6348, %v6362
      %v6392 = vmul.f32 %v6349, %v6362
      %v6393 = vmul.f32 %v6350, %v6362
      %v6394 = vmul.f32 %v6351, %v6362
      %v6395 = vadd.f32 %v226, %v6363
      %v6396 = vadd.f32 %v227, %v6364
      %v6397 = vadd.f32 %v228, %v6365
      %v6398 = vadd.f32 %v229, %v6366
      %v6399 = vadd.f32 %v230, %v6367
      %v6400 = vadd.f32 %v231, %v6368
      %v6401 = vadd.f32 %v232, %v6369
      %v6402 = vadd.f32 %v233, %v6370
      %v6403 = vadd.f32 %v234, %v6371
      %v6404 = vadd.f32 %v235, %v6372
      %v6405 = vadd.f32 %v236, %v6373
      %v6406 = vadd.f32 %v237, %v6374
      %v6407 = vadd.f32 %v238, %v6375
      %v6408 = vadd.f32 %v239, %v6376
      %v6409 = vadd.f32 %v240, %v6377
      %v6410 = vadd.f32 %v241, %v6378
      %v6411 = vadd.f32 %v242, %v6379
      %v6412 = vadd.f32 %v243, %v6380
      %v6413 = vadd.f32 %v244, %v6381
      %v6414 = vadd.f32 %v245, %v6382
      %v6415 = vadd.f32 %v246, %v6383
      %v6416 = vadd.f32 %v247, %v6384
      %v6417 = vadd.f32 %v248, %v6385
      %v6418 = vadd.f32 %v249, %v6386
      %v6419 = vadd.f32 %v250, %v6387
      %v6420 = vadd.f32 %v251, %v6388
      %v6421 = vadd.f32 %v252, %v6389
      %v6422 = vadd.f32 %v253, %v6390
      %v6423 = vadd.f32 %v254, %v6391
      %v6424 = vadd.f32 %v255, %v6392
      %v6425 = vadd.f32 %v256, %v6393
      %v6426 = vadd.f32 %v257, %v6394
      %6427 = vst.msk [vmem:[%s224] sm:$0xff] %vm2663, %v6395
      %6428 = vst.msk [vmem:[%s224 + $0x8] sm:$0xff] %vm2663, %v6396
      %6429 = vst.msk [vmem:[%s224 + $0x10] sm:$0xff] %vm2663, %v6397
      %6430 = vst.msk [vmem:[%s224 + $0x18] sm:$0xff] %vm2663, %v6398
      %6431 = vst.msk [vmem:[%s224 + $0x20] sm:$0xff] %vm2663, %v6399
      %6432 = vst.msk [vmem:[%s224 + $0x28] sm:$0xff] %vm2663, %v6400
      %6433 = vst.msk [vmem:[%s224 + $0x30] sm:$0xff] %vm2663, %v6401
      %6434 = vst.msk [vmem:[%s224 + $0x38] sm:$0xff] %vm2663, %v6402
      %6435 = vst.msk [vmem:[%s224 + $0x40] sm:$0xff] %vm2663, %v6403
      %6436 = vst.msk [vmem:[%s224 + $0x48] sm:$0xff] %vm2663, %v6404
      %6437 = vst.msk [vmem:[%s224 + $0x50] sm:$0xff] %vm2663, %v6405
      %6438 = vst.msk [vmem:[%s224 + $0x58] sm:$0xff] %vm2663, %v6406
      %6439 = vst.msk [vmem:[%s224 + $0x60] sm:$0xff] %vm2663, %v6407
      %6440 = vst.msk [vmem:[%s224 + $0x68] sm:$0xff] %vm2663, %v6408
      %6441 = vst.msk [vmem:[%s224 + $0x70] sm:$0xff] %vm2663, %v6409
      %6442 = vst.msk [vmem:[%s224 + $0x78] sm:$0xff] %vm2663, %v6410
      %6443 = vst.msk [vmem:[%s224 + $0x80] sm:$0xff] %vm2663, %v6411
      %6444 = vst.msk [vmem:[%s224 + $0x88] sm:$0xff] %vm2663, %v6412
      %6445 = vst.msk [vmem:[%s224 + $0x90] sm:$0xff] %vm2663, %v6413
      %6446 = vst.msk [vmem:[%s224 + $0x98] sm:$0xff] %vm2663, %v6414
      %6447 = vst.msk [vmem:[%s224 + $0xa0] sm:$0xff] %vm2663, %v6415
      %6448 = vst.msk [vmem:[%s224 + $0xa8] sm:$0xff] %vm2663, %v6416
      %6449 = vst.msk [vmem:[%s224 + $0xb0] sm:$0xff] %vm2663, %v6417
      %6450 = vst.msk [vmem:[%s224 + $0xb8] sm:$0xff] %vm2663, %v6418
      %6451 = vst.msk [vmem:[%s224 + $0xc0] sm:$0xff] %vm2663, %v6419
      %6452 = vst.msk [vmem:[%s224 + $0xc8] sm:$0xff] %vm2663, %v6420
      %6453 = vst.msk [vmem:[%s224 + $0xd0] sm:$0xff] %vm2663, %v6421
      %6454 = vst.msk [vmem:[%s224 + $0xd8] sm:$0xff] %vm2663, %v6422
      %6455 = vst.msk [vmem:[%s224 + $0xe0] sm:$0xff] %vm2663, %v6423
      %6456 = vst.msk [vmem:[%s224 + $0xe8] sm:$0xff] %vm2663, %v6424
      %6457 = vst.msk [vmem:[%s224 + $0xf0] sm:$0xff] %vm2663, %v6425
      %6458 = vst.msk [vmem:[%s224 + $0xf8] sm:$0xff] %vm2663, %v6426
      %p6459 = scmp.lt.s32.totalorder %s16, 1
      %s6460 = scalar_select %p6459, %s16, 1
      %s6461 = smul.addr %s6460, 32
      %s6462 = smul.addr %s6461, 8
      %s6463 = scalar_lea.vmem %s5, %s6462
      // Predicated region
      $region41: #{resnet_block_nhwc.1} parent=39 // pred_check
        %p6464 = pneg %p144
      $region42: #{resnet_block_nhwc.1} parent=39 // pred_check_branch
        %6466 = sbr.rel (%p6464) target = $region44
      $region43: #{resnet_block_nhwc.1} parent=39 // pred_region
        _
      $region44: #{resnet_block_nhwc.1} parent=39 // pred_fallthru
        _
    $region40: #{resnet_block_nhwc.1} parent=5 // pred_fallthru
      _
    %p6467 = scmp.le.s32.totalorder 2, %s11
    // Predicated region
    $region45: #{resnet_block_nhwc.1} parent=5 // pred_check
      %p6468 = pneg %p6467
    $region46: #{resnet_block_nhwc.1} parent=5 // pred_check_branch
      %6470 = sbr.rel (%p6468) target = $region48
    $region47: #{resnet_block_nhwc.1} parent=5 // pred_region
      %s6471 = ssub.s32 %s11, 2
      // Predicated region
      $region49: #{resnet_block_nhwc.1} parent=47 // pred_check
        %p6472 = pneg %p150
      $region50: #{resnet_block_nhwc.1} parent=47 // pred_check_branch
        %6474 = sbr.rel (%p6472) target = $region52
      $region51: #{resnet_block_nhwc.1} parent=47 // pred_region
        %p6475 = scmp.lt.s32.totalorder %s17, 1
        %s6476 = scalar_select %p6475, %s17, 1
        %s6477 = smul.addr %s6476, 32
        %s6478 = smul.addr %s6477, 8
        %s6479 = scalar_lea.vmem %s5, %s6478
      $region52: #{resnet_block_nhwc.1} parent=47 // pred_fallthru
        _
    $region48: #{resnet_block_nhwc.1} parent=5 // pred_fallthru
      _
  $region6: #{resnet_block_nhwc.1} parent=0 // loop_footer
    %s15 = sadd.s32 1, %s11
  $region7: #{resnet_block_nhwc.1} parent=0 // loop_footer_branch
    %10 = sbr.rel target = $region3
  $region8: #{resnet_block_nhwc.1} parent=0 // loop_exit
    _

</llo_original>
